<compile_context>
chip_gen: v6e
topology: v6e:2x2x1
jax: 0.10.0
libtpu: 0.0.40
codegen_flags: <defaults>
</compile_context>

<pallas_src>
import jax
import jax.numpy as jnp
import numpy as np
from jax import lax
from jax.experimental import pallas as pl
from jax.experimental.pallas import tpu as pltpu

EPS = 1e-5
VMEM_LIMIT = 32 * 1024 * 1024          # explicit scoped-VMEM budget (all gens)
ACT_DTYPE = jnp.float32                # set to jnp.bfloat16 to halve HBM traffic
                                       # for the h1/h2/h3 intermediates on v6e/v7x


# --------------------------------------------------------------------------
# kernels
# --------------------------------------------------------------------------
def _conv1_kernel(x_ref, w1_ref, h1_ref, st_ref):
    """1x1 conv (Cin -> P) + per-tile BN partial sums of the raw output."""
    blk = x_ref[...]                                   # (1, TH, W, Cin)
    _, th, w, cin = blk.shape
    p = w1_ref.shape[1]
    lhs = blk.reshape(th * w, cin).astype(jnp.bfloat16)
    h = jnp.dot(lhs, w1_ref[...], preferred_element_type=jnp.float32)   # (TH*W, P)
    h1_ref[...] = h.reshape(1, th, w, p).astype(h1_ref.dtype)
    s = jnp.sum(h, axis=0, keepdims=True)              # (1, P)
    ss = jnp.sum(h * h, axis=0, keepdims=True)         # (1, P)
    st_ref[...] = jnp.concatenate([s, ss], axis=0).reshape(1, 1, 2, p)


def _conv3_kernel(sc_ref, sh_ref, h1_ref, w3_ref, h2_ref, st_ref):
    """Apply BN1+ReLU (precomputed scale/shift), 3x3 conv as ONE fat matmul
    (K = 9*P), emit BN2 partial sums.  One full image per grid step (halo
    handled in-register, no padded HBM/VMEM scratch)."""
    h1 = h1_ref[...]                                   # (1, H, W, P)
    _, H, W, P = h1.shape
    a = jnp.maximum(h1 * sc_ref[...] + sh_ref[...], 0.0)[0]     # (H, W, P) f32

    zrow = jnp.zeros((1, W, P), jnp.float32)
    ap = jnp.concatenate([zrow, a, zrow], axis=0)      # (H+2, W, P) — halo rows only
    col = lax.broadcasted_iota(jnp.int32, (H, W, P), 1)

    taps = []
    for kh in range(3):
        rows = ap[kh:kh + H]                           # static slice along major dim
        for kw in range(3):
            if kw == 1:
                taps.append(rows)
            elif kw == 0:                              # needs column w-1
                r = pltpu.roll(rows, shift=1, axis=1)
                taps.append(jnp.where(col == 0, 0.0, r))
            else:                                      # needs column w+1
                r = pltpu.roll(rows, shift=W - 1, axis=1)
                taps.append(jnp.where(col == W - 1, 0.0, r))

    lhs = jnp.concatenate(taps, axis=-1).reshape(H * W, 9 * P).astype(jnp.bfloat16)
    h2 = jnp.dot(lhs, w3_ref[...], preferred_element_type=jnp.float32)   # (H*W, P)

    h2_ref[...] = h2.reshape(1, H, W, P).astype(h2_ref.dtype)
    s = jnp.sum(h2, axis=0, keepdims=True)
    ss = jnp.sum(h2 * h2, axis=0, keepdims=True)
    st_ref[...] = jnp.concatenate([s, ss], axis=0).reshape(1, 2, P)


def _conv2_kernel(sc_ref, sh_ref, h2_ref, w2_ref, h3_ref, st_ref):
    """Apply BN2+ReLU, 1x1 conv (P -> 4P), emit BN3 partial sums."""
    h2 = h2_ref[...]                                   # (1, TH, W, P)
    _, th, w, p = h2.shape
    c4 = w2_ref.shape[1]
    a = jnp.maximum(h2 * sc_ref[...] + sh_ref[...], 0.0)
    lhs = a.reshape(th * w, p).astype(jnp.bfloat16)
    h3 = jnp.dot(lhs, w2_ref[...], preferred_element_type=jnp.float32)   # (TH*W, 4P)
    h3_ref[...] = h3.reshape(1, th, w, c4).astype(h3_ref.dtype)
    s = jnp.sum(h3, axis=0, keepdims=True)
    ss = jnp.sum(h3 * h3, axis=0, keepdims=True)
    st_ref[...] = jnp.concatenate([s, ss], axis=0).reshape(1, 1, 2, c4)


def _final_kernel(sc_ref, sh_ref, h3_ref, x_ref, o_ref):
    """Apply BN3, residual add (x re-streamed per tile, never kept live), ReLU."""
    o = h3_ref[...] * sc_ref[...] + sh_ref[...] + x_ref[...]
    o_ref[...] = jnp.maximum(o, 0.0).astype(o_ref.dtype)


# --------------------------------------------------------------------------
# wrapper
# --------------------------------------------------------------------------
def _const_spec(shape):
    nd = len(shape)
    return pl.BlockSpec(shape, lambda *args: (0,) * nd)


def _finalize_bn(stats, gamma, beta, count):
    """Reduce per-tile (sum, sumsq) partials -> per-channel scale/shift."""
    c = stats.shape[-1]
    tot = jnp.sum(stats.reshape(-1, 2, c), axis=0)          # (2, C)
    mean = tot[0] / count
    var = jnp.maximum(tot[1] / count - mean * mean, 0.0)    # biased variance
    scale = gamma.reshape(-1) * lax.rsqrt(var + EPS)
    shift = beta.reshape(-1) - mean * scale
    return (scale.reshape(1, c).astype(jnp.float32),
            shift.reshape(1, c).astype(jnp.float32))


def bottleneck_forward(x_nhwc, params):
    """x_nhwc: (N, H, W, Cin) float32 with Cin == 4*planes. Returns NHWC output."""
    x = x_nhwc.astype(jnp.float32)
    N, H, W, Cin = x.shape
    P = params["w1"].shape[1]
    C4 = 4 * P
    if Cin != C4:
        raise ValueError("identity residual requires in_planes == 4*planes")
    TH = 8 if H % 8 == 0 else H
    nH = H // TH
    count = float(N * H * W)

    # weights pre-cast to bf16 (MXU inputs); 3x3 weights flattened to (9P, P)
    w1 = params["w1"].astype(jnp.bfloat16)                       # (Cin, P)
    w3 = params["w3"].reshape(9 * P, P).astype(jnp.bfloat16)     # (kh,kw,ci)->rows
    w2 = params["w2"].astype(jnp.bfloat16)                       # (P, 4P)

    cp2 = pltpu.CompilerParams(dimension_semantics=("parallel", "parallel"),
                               vmem_limit_bytes=VMEM_LIMIT)
    cp1 = pltpu.CompilerParams(dimension_semantics=("parallel",),
                               vmem_limit_bytes=VMEM_LIMIT)

    # ---- pass 1: conv1x1 (Cin -> P) + BN1 partial stats -----------------
    h1_raw, st1 = pl.pallas_call(
        _conv1_kernel,
        grid=(N, nH),
        in_specs=[pl.BlockSpec((1, TH, W, Cin), lambda n, i: (n, i, 0, 0)),
                  _const_spec((Cin, P))],
        out_specs=[pl.BlockSpec((1, TH, W, P), lambda n, i: (n, i, 0, 0)),
                   pl.BlockSpec((1, 1, 2, P), lambda n, i: (n, i, 0, 0))],
        out_shape=[jax.ShapeDtypeStruct((N, H, W, P), ACT_DTYPE),
                   jax.ShapeDtypeStruct((N, nH, 2, P), jnp.float32)],
        compiler_params=cp2,
    )(x, w1)
    sc1, sh1 = _finalize_bn(st1, params["g1"], params["b1"], count)

    # ---- pass 2: BN1+ReLU + conv3x3 (P -> P) + BN2 partial stats --------
    h2_raw, st2 = pl.pallas_call(
        _conv3_kernel,
        grid=(N,),
        in_specs=[_const_spec((1, P)), _const_spec((1, P)),
                  pl.BlockSpec((1, H, W, P), lambda n: (n, 0, 0, 0)),
                  _const_spec((9 * P, P))],
        out_specs=[pl.BlockSpec((1, H, W, P), lambda n: (n, 0, 0, 0)),
                   pl.BlockSpec((1, 2, P), lambda n: (n, 0, 0))],
        out_shape=[jax.ShapeDtypeStruct((N, H, W, P), ACT_DTYPE),
                   jax.ShapeDtypeStruct((N, 2, P), jnp.float32)],
        compiler_params=cp1,
    )(sc1, sh1, h1_raw, w3)
    sc2, sh2 = _finalize_bn(st2, params["g2"], params["b2"], count)

    # ---- pass 3: BN2+ReLU + conv1x1 (P -> 4P) + BN3 partial stats -------
    h3_raw, st3 = pl.pallas_call(
        _conv2_kernel,
        grid=(N, nH),
        in_specs=[_const_spec((1, P)), _const_spec((1, P)),
                  pl.BlockSpec((1, TH, W, P), lambda n, i: (n, i, 0, 0)),
                  _const_spec((P, C4))],
        out_specs=[pl.BlockSpec((1, TH, W, C4), lambda n, i: (n, i, 0, 0)),
                   pl.BlockSpec((1, 1, 2, C4), lambda n, i: (n, i, 0, 0))],
        out_shape=[jax.ShapeDtypeStruct((N, H, W, C4), ACT_DTYPE),
                   jax.ShapeDtypeStruct((N, nH, 2, C4), jnp.float32)],
        compiler_params=cp2,
    )(sc2, sh2, h2_raw, w2)
    sc3, sh3 = _finalize_bn(st3, params["g3"], params["b3"], count)

    # ---- pass 4: BN3 + residual add + ReLU ------------------------------
    out = pl.pallas_call(
        _final_kernel,
        grid=(N, nH),
        in_specs=[_const_spec((1, C4)), _const_spec((1, C4)),
                  pl.BlockSpec((1, TH, W, C4), lambda n, i: (n, i, 0, 0)),
                  pl.BlockSpec((1, TH, W, C4), lambda n, i: (n, i, 0, 0))],
        out_specs=pl.BlockSpec((1, TH, W, C4), lambda n, i: (n, i, 0, 0)),
        out_shape=jax.ShapeDtypeStruct((N, H, W, C4), jnp.float32),
        compiler_params=cp2,
    )(sc3, sh3, h3_raw, x)
    return out


def bottleneck_forward_nchw(x_nchw, params):
    """PyTorch-layout convenience wrapper.  Per the perf review, keep the model
    NHWC and pay this transpose once at the model boundary, not per block."""
    x = jnp.transpose(x_nchw, (0, 2, 3, 1))
    return jnp.transpose(bottleneck_forward(x, params), (0, 3, 1, 2))


# --------------------------------------------------------------------------
# pure-JAX reference (f32 everywhere) for the correctness check
# --------------------------------------------------------------------------
def bottleneck_ref(x_nhwc, params):
    x = x_nhwc.astype(jnp.float32)

    def bn(h, g, b):
        m = jnp.mean(h, axis=(0, 1, 2), keepdims=True)
        v = jnp.mean((h - m) ** 2, axis=(0, 1, 2), keepdims=True)
        return (h - m) * lax.rsqrt(v + EPS) * g + b

    h = jnp.einsum("nhwc,cd->nhwd", x, params["w1"])
    h = jax.nn.relu(bn(h, params["g1"], params["b1"]))
    h = lax.conv_general_dilated(
        h, params["w3"], window_strides=(1, 1), padding=((1, 1), (1, 1)),
        dimension_numbers=("NHWC", "HWIO", "NHWC"))
    h = jax.nn.relu(bn(h, params["g2"], params["b2"]))
    h = jnp.einsum("nhwc,cd->nhwd", h, params["w2"])
    h = bn(h, params["g3"], params["b3"])
    return jax.nn.relu(h + x)


def make_params(key, in_planes, planes):
    ks = jax.random.split(key, 9)
    exp = 4 * planes
    return {
        "w1": 0.1 * jax.random.normal(ks[0], (in_planes, planes), jnp.float32),
        "g1": 1.0 + 0.1 * jax.random.normal(ks[1], (1, planes), jnp.float32),
        "b1": 0.1 * jax.random.normal(ks[2], (1, planes), jnp.float32),
        "w3": 0.1 * jax.random.normal(ks[3], (3, 3, planes, planes), jnp.float32),
        "g2": 1.0 + 0.1 * jax.random.normal(ks[4], (1, planes), jnp.float32),
        "b2": 0.1 * jax.random.normal(ks[5], (1, planes), jnp.float32),
        "w2": 0.1 * jax.random.normal(ks[6], (planes, exp), jnp.float32),
        "g3": 1.0 + 0.1 * jax.random.normal(ks[7], (1, exp), jnp.float32),
        "b3": 0.1 * jax.random.normal(ks[8], (1, exp), jnp.float32),
    }


if __name__ == "__main__":
    key = jax.random.PRNGKey(0)
    k_x, k_p = jax.random.split(key)

    planes = 32
    in_planes = 4 * planes          # 128: lane-dense residual / output channels
    N, H, W = 2, 16, 16

    x = jax.random.normal(k_x, (N, H, W, in_planes), jnp.float32)   # NHWC
    params = make_params(k_p, in_planes, planes)

    out = jax.block_until_ready(jax.jit(bottleneck_forward)(x, params))
    ref = jax.block_until_ready(bottleneck_ref(x, params))

    assert out.shape == (N, H, W, in_planes)
    # tolerance accounts for bf16 MXU inputs (f32 accumulation) vs the pure-f32
    # reference; BN normalization re-scales the small rounding error to ~1e-2.
    np.testing.assert_allclose(np.asarray(out), np.asarray(ref),
                               rtol=5e-2, atol=5e-2)
    print("KERNEL_OK")
</pallas_src>

<mosaic_0001>
module attributes {stable_mosaic.version = 11 : i64} {
  func.func @_conv1_kernel(%arg0: i32, %arg1: i32, %arg2: memref<1x8x16x128xf32, #tpu.memory_space<vmem>>, %arg3: memref<128x32xbf16, #tpu.memory_space<vmem>>, %arg4: memref<1x8x16x32xf32, #tpu.memory_space<vmem>>, %arg5: memref<1x1x2x32xf32, #tpu.memory_space<vmem>>) attributes {dimension_semantics = [#tpu.dimension_semantics<parallel>, #tpu.dimension_semantics<parallel>], iteration_bounds = array<i64: 2, 2>, scalar_prefetch = 0 : i64, scratch_operands = 0 : i64, tpu.core_type = #tpu.core_type<tc>, window_params = [{transform_indices = @transform_0, window_bounds = array<i64: 1, 8, 16, 128>}, {pipeline_mode = #tpu.pipeline_mode<synchronous>, transform_indices = @transform_1, window_bounds = array<i64: 128, 32>}, {transform_indices = @transform_2, window_bounds = array<i64: 1, 8, 16, 32>}, {transform_indices = @transform_3, window_bounds = array<i64: 1, 1, 2, 32>}]} {
    %c0 = arith.constant 0 : index
    %c0_0 = arith.constant 0 : index
    %c0_1 = arith.constant 0 : index
    %c0_2 = arith.constant 0 : index
    %0 = vector.load %arg2[%c0, %c0_0, %c0_1, %c0_2] : memref<1x8x16x128xf32, #tpu.memory_space<vmem>>, vector<1x8x16x128xf32>
    %1 = vector.shape_cast %0 : vector<1x8x16x128xf32> to vector<128x128xf32>
    %2 = arith.truncf %1 : vector<128x128xf32> to vector<128x128xbf16>
    %c0_3 = arith.constant 0 : index
    %c0_4 = arith.constant 0 : index
    %3 = vector.load %arg3[%c0_3, %c0_4] : memref<128x32xbf16, #tpu.memory_space<vmem>>, vector<128x32xbf16>
    %cst = arith.constant dense<0.000000e+00> : vector<128x32xf32>
    %4 = tpu.matmul %2, %3, %cst {dimension_numbers = #tpu.dot_dimension_numbers<[1], [0], [0], [1], [0, 0, 1, 1], [], []>} : vector<128x128xbf16>, vector<128x32xbf16>, vector<128x32xf32> -> vector<128x32xf32>
    %5 = vector.shape_cast %4 : vector<128x32xf32> to vector<1x8x16x32xf32>
    %c0_5 = arith.constant 0 : index
    %c0_6 = arith.constant 0 : index
    %c0_7 = arith.constant 0 : index
    %c0_8 = arith.constant 0 : index
    %6 = vector.load %arg4[%c0_5, %c0_6, %c0_7, %c0_8] : memref<1x8x16x32xf32, #tpu.memory_space<vmem>>, vector<1x8x16x32xf32>
    tpu.vector_store %arg4[%c0_5, %c0_6, %c0_7, %c0_8], %5 {strides = array<i32>} : memref<1x8x16x32xf32, #tpu.memory_space<vmem>>, vector<1x8x16x32xf32>,
    %cst_9 = arith.constant dense<0.000000e+00> : vector<32xf32>
    %7 = vector.multi_reduction <add>, %4, %cst_9 [0] : vector<128x32xf32> to vector<32xf32>
    %8 = vector.shape_cast %7 : vector<32xf32> to vector<1x32xf32>
    %9 = arith.mulf %4, %4 : vector<128x32xf32>
    %cst_10 = arith.constant dense<0.000000e+00> : vector<32xf32>
    %10 = vector.multi_reduction <add>, %9, %cst_10 [0] : vector<128x32xf32> to vector<32xf32>
    %11 = vector.shape_cast %10 : vector<32xf32> to vector<1x32xf32>
    %12 = tpu.concatenate %8, %11 in 0 : vector<1x32xf32>, vector<1x32xf32> -> vector<2x32xf32>
    %13 = vector.shape_cast %12 : vector<2x32xf32> to vector<1x1x2x32xf32>
    %c0_11 = arith.constant 0 : index
    %c0_12 = arith.constant 0 : index
    %c0_13 = arith.constant 0 : index
    %c0_14 = arith.constant 0 : index
    %14 = vector.load %arg5[%c0_11, %c0_12, %c0_13, %c0_14] : memref<1x1x2x32xf32, #tpu.memory_space<vmem>>, vector<1x1x2x32xf32>
    tpu.vector_store %arg5[%c0_11, %c0_12, %c0_13, %c0_14], %13 {strides = array<i32>} : memref<1x1x2x32xf32, #tpu.memory_space<vmem>>, vector<1x1x2x32xf32>,
    return
  }
  func.func @transform_0(%arg0: i32, %arg1: i32) -> (i32, i32, i32, i32) {
    %c0_i32 = arith.constant 0 : i32
    %c0_i32_0 = arith.constant 0 : i32
    %c0_i32_1 = arith.constant 0 : i32
    return %arg0, %arg1, %c0_i32, %c0_i32_0 : i32, i32, i32, i32
  }
  func.func @transform_1(%arg0: i32, %arg1: i32) -> (i32, i32) {
    %c0_i32 = arith.constant 0 : i32
    %c0_i32_0 = arith.constant 0 : i32
    %c0_i32_1 = arith.constant 0 : i32
    return %c0_i32, %c0_i32_0 : i32, i32
  }
  func.func @transform_2(%arg0: i32, %arg1: i32) -> (i32, i32, i32, i32) {
    %c0_i32 = arith.constant 0 : i32
    %c0_i32_0 = arith.constant 0 : i32
    %c0_i32_1 = arith.constant 0 : i32
    return %arg0, %arg1, %c0_i32, %c0_i32_0 : i32, i32, i32, i32
  }
  func.func @transform_3(%arg0: i32, %arg1: i32) -> (i32, i32, i32, i32) {
    %c0_i32 = arith.constant 0 : i32
    %c0_i32_0 = arith.constant 0 : i32
    %c0_i32_1 = arith.constant 0 : i32
    return %arg0, %arg1, %c0_i32, %c0_i32_0 : i32, i32, i32, i32
  }
}

module attributes {stable_mosaic.version = 11 : i64} {
  func.func @_conv2_kernel(%arg0: i32, %arg1: i32, %arg2: memref<1x32xf32, #tpu.memory_space<vmem>>, %arg3: memref<1x32xf32, #tpu.memory_space<vmem>>, %arg4: memref<1x8x16x32xf32, #tpu.memory_space<vmem>>, %arg5: memref<32x128xbf16, #tpu.memory_space<vmem>>, %arg6: memref<1x8x16x128xf32, #tpu.memory_space<vmem>>, %arg7: memref<1x1x2x128xf32, #tpu.memory_space<vmem>>) attributes {dimension_semantics = [#tpu.dimension_semantics<parallel>, #tpu.dimension_semantics<parallel>], iteration_bounds = array<i64: 2, 2>, scalar_prefetch = 0 : i64, scratch_operands = 0 : i64, tpu.core_type = #tpu.core_type<tc>, window_params = [{pipeline_mode = #tpu.pipeline_mode<synchronous>, transform_indices = @transform_0, window_bounds = array<i64: 1, 32>}, {pipeline_mode = #tpu.pipeline_mode<synchronous>, transform_indices = @transform_1, window_bounds = array<i64: 1, 32>}, {transform_indices = @transform_2, window_bounds = array<i64: 1, 8, 16, 32>}, {pipeline_mode = #tpu.pipeline_mode<synchronous>, transform_indices = @transform_3, window_bounds = array<i64: 32, 128>}, {transform_indices = @transform_4, window_bounds = array<i64: 1, 8, 16, 128>}, {transform_indices = @transform_5, window_bounds = array<i64: 1, 1, 2, 128>}]} {
    %c0 = arith.constant 0 : index
    %c0_0 = arith.constant 0 : index
    %c0_1 = arith.constant 0 : index
    %c0_2 = arith.constant 0 : index
    %0 = vector.load %arg4[%c0, %c0_0, %c0_1, %c0_2] : memref<1x8x16x32xf32, #tpu.memory_space<vmem>>, vector<1x8x16x32xf32>
    %c0_3 = arith.constant 0 : index
    %c0_4 = arith.constant 0 : index
    %1 = vector.load %arg2[%c0_3, %c0_4] : memref<1x32xf32, #tpu.memory_space<vmem>>, vector<1x32xf32>
    %2 = vector.shape_cast %1 : vector<1x32xf32> to vector<1x1x1x32xf32>
    %3 = vector.broadcast %2 : vector<1x1x1x32xf32> to vector<1x8x16x32xf32>
    %4 = arith.mulf %0, %3 : vector<1x8x16x32xf32>
    %c0_5 = arith.constant 0 : index
    %c0_6 = arith.constant 0 : index
    %5 = vector.load %arg3[%c0_5, %c0_6] : memref<1x32xf32, #tpu.memory_space<vmem>>, vector<1x32xf32>
    %6 = vector.shape_cast %5 : vector<1x32xf32> to vector<1x1x1x32xf32>
    %7 = vector.broadcast %6 : vector<1x1x1x32xf32> to vector<1x8x16x32xf32>
    %8 = arith.addf %4, %7 : vector<1x8x16x32xf32>
    %cst = arith.constant 0.000000e+00 : f32
    %9 = vector.broadcast %cst : f32 to vector<1x8x16x32xf32>
    %10 = arith.maximumf %8, %9 : vector<1x8x16x32xf32>
    %11 = vector.shape_cast %10 : vector<1x8x16x32xf32> to vector<128x32xf32>
    %12 = arith.truncf %11 : vector<128x32xf32> to vector<128x32xbf16>
    %c0_7 = arith.constant 0 : index
    %c0_8 = arith.constant 0 : index
    %13 = vector.load %arg5[%c0_7, %c0_8] : memref<32x128xbf16, #tpu.memory_space<vmem>>, vector<32x128xbf16>
    %cst_9 = arith.constant dense<0.000000e+00> : vector<128x128xf32>
    %14 = tpu.matmul %12, %13, %cst_9 {dimension_numbers = #tpu.dot_dimension_numbers<[1], [0], [0], [1], [0, 0, 1, 1], [], []>} : vector<128x32xbf16>, vector<32x128xbf16>, vector<128x128xf32> -> vector<128x128xf32>
    %15 = vector.shape_cast %14 : vector<128x128xf32> to vector<1x8x16x128xf32>
    %c0_10 = arith.constant 0 : index
    %c0_11 = arith.constant 0 : index
    %c0_12 = arith.constant 0 : index
    %c0_13 = arith.constant 0 : index
    %16 = vector.load %arg6[%c0_10, %c0_11, %c0_12, %c0_13] : memref<1x8x16x128xf32, #tpu.memory_space<vmem>>, vector<1x8x16x128xf32>
    tpu.vector_store %arg6[%c0_10, %c0_11, %c0_12, %c0_13], %15 {strides = array<i32>} : memref<1x8x16x128xf32, #tpu.memory_space<vmem>>, vector<1x8x16x128xf32>,
    %cst_14 = arith.constant dense<0.000000e+00> : vector<128xf32>
    %17 = vector.multi_reduction <add>, %14, %cst_14 [0] : vector<128x128xf32> to vector<128xf32>
    %18 = vector.shape_cast %17 : vector<128xf32> to vector<1x128xf32>
    %19 = arith.mulf %14, %14 : vector<128x128xf32>
    %cst_15 = arith.constant dense<0.000000e+00> : vector<128xf32>
    %20 = vector.multi_reduction <add>, %19, %cst_15 [0] : vector<128x128xf32> to vector<128xf32>
    %21 = vector.shape_cast %20 : vector<128xf32> to vector<1x128xf32>
    %22 = tpu.concatenate %18, %21 in 0 : vector<1x128xf32>, vector<1x128xf32> -> vector<2x128xf32>
    %23 = vector.shape_cast %22 : vector<2x128xf32> to vector<1x1x2x128xf32>
    %c0_16 = arith.constant 0 : index
    %c0_17 = arith.constant 0 : index
    %c0_18 = arith.constant 0 : index
    %c0_19 = arith.constant 0 : index
    %24 = vector.load %arg7[%c0_16, %c0_17, %c0_18, %c0_19] : memref<1x1x2x128xf32, #tpu.memory_space<vmem>>, vector<1x1x2x128xf32>
    tpu.vector_store %arg7[%c0_16, %c0_17, %c0_18, %c0_19], %23 {strides = array<i32>} : memref<1x1x2x128xf32, #tpu.memory_space<vmem>>, vector<1x1x2x128xf32>,
    return
  }
  func.func @transform_0(%arg0: i32, %arg1: i32) -> (i32, i32) {
    %c0_i32 = arith.constant 0 : i32
    %c0_i32_0 = arith.constant 0 : i32
    %c0_i32_1 = arith.constant 0 : i32
    return %c0_i32, %c0_i32_0 : i32, i32
  }
  func.func @transform_1(%arg0: i32, %arg1: i32) -> (i32, i32) {
    %c0_i32 = arith.constant 0 : i32
    %c0_i32_0 = arith.constant 0 : i32
    %c0_i32_1 = arith.constant 0 : i32
    return %c0_i32, %c0_i32_0 : i32, i32
  }
  func.func @transform_2(%arg0: i32, %arg1: i32) -> (i32, i32, i32, i32) {
    %c0_i32 = arith.constant 0 : i32
    %c0_i32_0 = arith.constant 0 : i32
    %c0_i32_1 = arith.constant 0 : i32
    return %arg0, %arg1, %c0_i32, %c0_i32_0 : i32, i32, i32, i32
  }
  func.func @transform_3(%arg0: i32, %arg1: i32) -> (i32, i32) {
    %c0_i32 = arith.constant 0 : i32
    %c0_i32_0 = arith.constant 0 : i32
    %c0_i32_1 = arith.constant 0 : i32
    return %c0_i32, %c0_i32_0 : i32, i32
  }
  func.func @transform_4(%arg0: i32, %arg1: i32) -> (i32, i32, i32, i32) {
    %c0_i32 = arith.constant 0 : i32
    %c0_i32_0 = arith.constant 0 : i32
    %c0_i32_1 = arith.constant 0 : i32
    return %arg0, %arg1, %c0_i32, %c0_i32_0 : i32, i32, i32, i32
  }
  func.func @transform_5(%arg0: i32, %arg1: i32) -> (i32, i32, i32, i32) {
    %c0_i32 = arith.constant 0 : i32
    %c0_i32_0 = arith.constant 0 : i32
    %c0_i32_1 = arith.constant 0 : i32
    return %arg0, %arg1, %c0_i32, %c0_i32_0 : i32, i32, i32, i32
  }
}

module attributes {stable_mosaic.version = 11 : i64} {
  func.func @_conv3_kernel(%arg0: i32, %arg1: memref<1x32xf32, #tpu.memory_space<vmem>>, %arg2: memref<1x32xf32, #tpu.memory_space<vmem>>, %arg3: memref<1x16x16x32xf32, #tpu.memory_space<vmem>>, %arg4: memref<288x32xbf16, #tpu.memory_space<vmem>>, %arg5: memref<1x16x16x32xf32, #tpu.memory_space<vmem>>, %arg6: memref<1x2x32xf32, #tpu.memory_space<vmem>>) attributes {dimension_semantics = [#tpu.dimension_semantics<parallel>], iteration_bounds = array<i64: 2>, scalar_prefetch = 0 : i64, scratch_operands = 0 : i64, tpu.core_type = #tpu.core_type<tc>, window_params = [{pipeline_mode = #tpu.pipeline_mode<synchronous>, transform_indices = @transform_0, window_bounds = array<i64: 1, 32>}, {pipeline_mode = #tpu.pipeline_mode<synchronous>, transform_indices = @transform_1, window_bounds = array<i64: 1, 32>}, {transform_indices = @transform_2, window_bounds = array<i64: 1, 16, 16, 32>}, {pipeline_mode = #tpu.pipeline_mode<synchronous>, transform_indices = @transform_3, window_bounds = array<i64: 288, 32>}, {transform_indices = @transform_4, window_bounds = array<i64: 1, 16, 16, 32>}, {transform_indices = @transform_5, window_bounds = array<i64: 1, 2, 32>}]} {
    %c0 = arith.constant 0 : index
    %c0_0 = arith.constant 0 : index
    %c0_1 = arith.constant 0 : index
    %c0_2 = arith.constant 0 : index
    %0 = vector.load %arg3[%c0, %c0_0, %c0_1, %c0_2] : memref<1x16x16x32xf32, #tpu.memory_space<vmem>>, vector<1x16x16x32xf32>
    %c0_3 = arith.constant 0 : index
    %c0_4 = arith.constant 0 : index
    %1 = vector.load %arg1[%c0_3, %c0_4] : memref<1x32xf32, #tpu.memory_space<vmem>>, vector<1x32xf32>
    %2 = vector.shape_cast %1 : vector<1x32xf32> to vector<1x1x1x32xf32>
    %3 = vector.broadcast %2 : vector<1x1x1x32xf32> to vector<1x16x16x32xf32>
    %4 = arith.mulf %0, %3 : vector<1x16x16x32xf32>
    %c0_5 = arith.constant 0 : index
    %c0_6 = arith.constant 0 : index
    %5 = vector.load %arg2[%c0_5, %c0_6] : memref<1x32xf32, #tpu.memory_space<vmem>>, vector<1x32xf32>
    %6 = vector.shape_cast %5 : vector<1x32xf32> to vector<1x1x1x32xf32>
    %7 = vector.broadcast %6 : vector<1x1x1x32xf32> to vector<1x16x16x32xf32>
    %8 = arith.addf %4, %7 : vector<1x16x16x32xf32>
    %cst = arith.constant 0.000000e+00 : f32
    %9 = vector.broadcast %cst : f32 to vector<1x16x16x32xf32>
    %10 = arith.maximumf %8, %9 : vector<1x16x16x32xf32>
    %11 = vector.shape_cast %10 : vector<1x16x16x32xf32> to vector<16x16x32xf32>
    %cst_7 = arith.constant 0.000000e+00 : f32
    %12 = vector.broadcast %cst_7 : f32 to vector<1x16x32xf32>
    %13 = tpu.concatenate %12, %11, %12 in 0 : vector<1x16x32xf32>, vector<16x16x32xf32>, vector<1x16x32xf32> -> vector<18x16x32xf32>
    %14 = tpu.iota {dimensions = array<i32: 1>} : vector<16x16x32xi32>
    %15 = vector.extract_strided_slice %13 {offsets = [0, 0, 0], sizes = [16, 16, 32], strides = [1, 1, 1]} : vector<18x16x32xf32> to vector<16x16x32xf32>
    %c1_i32 = arith.constant 1 : i32
    %16 = tpu.dynamic_rotate %15 by %c1_i32 dim 1 : vector<16x16x32xf32>, i32 -> vector<16x16x32xf32>
    %c0_i32 = arith.constant 0 : i32
    %17 = vector.broadcast %c0_i32 : i32 to vector<16x16x32xi32>
    %18 = arith.cmpi eq, %14, %17 : vector<16x16x32xi32>
    %cst_8 = arith.constant 0.000000e+00 : f32
    %19 = vector.broadcast %cst_8 : f32 to vector<16x16x32xf32>
    %20 = arith.select %18, %19, %16 : vector<16x16x32xi1>, vector<16x16x32xf32>
    %c15_i32 = arith.constant 15 : i32
    %21 = tpu.dynamic_rotate %15 by %c15_i32 dim 1 : vector<16x16x32xf32>, i32 -> vector<16x16x32xf32>
    %c15_i32_9 = arith.constant 15 : i32
    %22 = vector.broadcast %c15_i32_9 : i32 to vector<16x16x32xi32>
    %23 = arith.cmpi eq, %14, %22 : vector<16x16x32xi32>
    %cst_10 = arith.constant 0.000000e+00 : f32
    %24 = vector.broadcast %cst_10 : f32 to vector<16x16x32xf32>
    %25 = arith.select %23, %24, %21 : vector<16x16x32xi1>, vector<16x16x32xf32>
    %26 = vector.extract_strided_slice %13 {offsets = [1, 0, 0], sizes = [16, 16, 32], strides = [1, 1, 1]} : vector<18x16x32xf32> to vector<16x16x32xf32>
    %c1_i32_11 = arith.constant 1 : i32
    %27 = tpu.dynamic_rotate %26 by %c1_i32_11 dim 1 : vector<16x16x32xf32>, i32 -> vector<16x16x32xf32>
    %c0_i32_12 = arith.constant 0 : i32
    %28 = vector.broadcast %c0_i32_12 : i32 to vector<16x16x32xi32>
    %29 = arith.cmpi eq, %14, %28 : vector<16x16x32xi32>
    %cst_13 = arith.constant 0.000000e+00 : f32
    %30 = vector.broadcast %cst_13 : f32 to vector<16x16x32xf32>
    %31 = arith.select %29, %30, %27 : vector<16x16x32xi1>, vector<16x16x32xf32>
    %c15_i32_14 = arith.constant 15 : i32
    %32 = tpu.dynamic_rotate %26 by %c15_i32_14 dim 1 : vector<16x16x32xf32>, i32 -> vector<16x16x32xf32>
    %c15_i32_15 = arith.constant 15 : i32
    %33 = vector.broadcast %c15_i32_15 : i32 to vector<16x16x32xi32>
    %34 = arith.cmpi eq, %14, %33 : vector<16x16x32xi32>
    %cst_16 = arith.constant 0.000000e+00 : f32
    %35 = vector.broadcast %cst_16 : f32 to vector<16x16x32xf32>
    %36 = arith.select %34, %35, %32 : vector<16x16x32xi1>, vector<16x16x32xf32>
    %37 = vector.extract_strided_slice %13 {offsets = [2, 0, 0], sizes = [16, 16, 32], strides = [1, 1, 1]} : vector<18x16x32xf32> to vector<16x16x32xf32>
    %c1_i32_17 = arith.constant 1 : i32
    %38 = tpu.dynamic_rotate %37 by %c1_i32_17 dim 1 : vector<16x16x32xf32>, i32 -> vector<16x16x32xf32>
    %c0_i32_18 = arith.constant 0 : i32
    %39 = vector.broadcast %c0_i32_18 : i32 to vector<16x16x32xi32>
    %40 = arith.cmpi eq, %14, %39 : vector<16x16x32xi32>
    %cst_19 = arith.constant 0.000000e+00 : f32
    %41 = vector.broadcast %cst_19 : f32 to vector<16x16x32xf32>
    %42 = arith.select %40, %41, %38 : vector<16x16x32xi1>, vector<16x16x32xf32>
    %c15_i32_20 = arith.constant 15 : i32
    %43 = tpu.dynamic_rotate %37 by %c15_i32_20 dim 1 : vector<16x16x32xf32>, i32 -> vector<16x16x32xf32>
    %c15_i32_21 = arith.constant 15 : i32
    %44 = vector.broadcast %c15_i32_21 : i32 to vector<16x16x32xi32>
    %45 = arith.cmpi eq, %14, %44 : vector<16x16x32xi32>
    %cst_22 = arith.constant 0.000000e+00 : f32
    %46 = vector.broadcast %cst_22 : f32 to vector<16x16x32xf32>
    %47 = arith.select %45, %46, %43 : vector<16x16x32xi1>, vector<16x16x32xf32>
    %48 = tpu.concatenate %20, %15, %25, %31, %26, %36, %42, %37, %47 in 2 : vector<16x16x32xf32>, vector<16x16x32xf32>, vector<16x16x32xf32>, vector<16x16x32xf32>, vector<16x16x32xf32>, vector<16x16x32xf32>, vector<16x16x32xf32>, vector<16x16x32xf32>, vector<16x16x32xf32> -> vector<16x16x288xf32>
    %49 = vector.shape_cast %48 : vector<16x16x288xf32> to vector<256x288xf32>
    %50 = arith.truncf %49 : vector<256x288xf32> to vector<256x288xbf16>
    %c0_23 = arith.constant 0 : index
    %c0_24 = arith.constant 0 : index
    %51 = vector.load %arg4[%c0_23, %c0_24] : memref<288x32xbf16, #tpu.memory_space<vmem>>, vector<288x32xbf16>
    %cst_25 = arith.constant dense<0.000000e+00> : vector<256x32xf32>
    %52 = tpu.matmul %50, %51, %cst_25 {dimension_numbers = #tpu.dot_dimension_numbers<[1], [0], [0], [1], [0, 0, 1, 1], [], []>} : vector<256x288xbf16>, vector<288x32xbf16>, vector<256x32xf32> -> vector<256x32xf32>
    %53 = vector.shape_cast %52 : vector<256x32xf32> to vector<1x16x16x32xf32>
    %c0_26 = arith.constant 0 : index
    %c0_27 = arith.constant 0 : index
    %c0_28 = arith.constant 0 : index
    %c0_29 = arith.constant 0 : index
    %54 = vector.load %arg5[%c0_26, %c0_27, %c0_28, %c0_29] : memref<1x16x16x32xf32, #tpu.memory_space<vmem>>, vector<1x16x16x32xf32>
    tpu.vector_store %arg5[%c0_26, %c0_27, %c0_28, %c0_29], %53 {strides = array<i32>} : memref<1x16x16x32xf32, #tpu.memory_space<vmem>>, vector<1x16x16x32xf32>,
    %cst_30 = arith.constant dense<0.000000e+00> : vector<32xf32>
    %55 = vector.multi_reduction <add>, %52, %cst_30 [0] : vector<256x32xf32> to vector<32xf32>
    %56 = vector.shape_cast %55 : vector<32xf32> to vector<1x32xf32>
    %57 = arith.mulf %52, %52 : vector<256x32xf32>
    %cst_31 = arith.constant dense<0.000000e+00> : vector<32xf32>
    %58 = vector.multi_reduction <add>, %57, %cst_31 [0] : vector<256x32xf32> to vector<32xf32>
    %59 = vector.shape_cast %58 : vector<32xf32> to vector<1x32xf32>
    %60 = tpu.concatenate %56, %59 in 0 : vector<1x32xf32>, vector<1x32xf32> -> vector<2x32xf32>
    %61 = vector.shape_cast %60 : vector<2x32xf32> to vector<1x2x32xf32>
    %c0_32 = arith.constant 0 : index
    %c0_33 = arith.constant 0 : index
    %c0_34 = arith.constant 0 : index
    %62 = vector.load %arg6[%c0_32, %c0_33, %c0_34] : memref<1x2x32xf32, #tpu.memory_space<vmem>>, vector<1x2x32xf32>
    tpu.vector_store %arg6[%c0_32, %c0_33, %c0_34], %61 {strides = array<i32>} : memref<1x2x32xf32, #tpu.memory_space<vmem>>, vector<1x2x32xf32>,
    return
  }
  func.func @transform_0(%arg0: i32) -> (i32, i32) {
    %c0_i32 = arith.constant 0 : i32
    %c0_i32_0 = arith.constant 0 : i32
    %c0_i32_1 = arith.constant 0 : i32
    return %c0_i32, %c0_i32_0 : i32, i32
  }
  func.func @transform_1(%arg0: i32) -> (i32, i32) {
    %c0_i32 = arith.constant 0 : i32
    %c0_i32_0 = arith.constant 0 : i32
    %c0_i32_1 = arith.constant 0 : i32
    return %c0_i32, %c0_i32_0 : i32, i32
  }
  func.func @transform_2(%arg0: i32) -> (i32, i32, i32, i32) {
    %c0_i32 = arith.constant 0 : i32
    %c0_i32_0 = arith.constant 0 : i32
    %c0_i32_1 = arith.constant 0 : i32
    %c0_i32_2 = arith.constant 0 : i32
    return %arg0, %c0_i32, %c0_i32_0, %c0_i32_1 : i32, i32, i32, i32
  }
  func.func @transform_3(%arg0: i32) -> (i32, i32) {
    %c0_i32 = arith.constant 0 : i32
    %c0_i32_0 = arith.constant 0 : i32
    %c0_i32_1 = arith.constant 0 : i32
    return %c0_i32, %c0_i32_0 : i32, i32
  }
  func.func @transform_4(%arg0: i32) -> (i32, i32, i32, i32) {
    %c0_i32 = arith.constant 0 : i32
    %c0_i32_0 = arith.constant 0 : i32
    %c0_i32_1 = arith.constant 0 : i32
    %c0_i32_2 = arith.constant 0 : i32
    return %arg0, %c0_i32, %c0_i32_0, %c0_i32_1 : i32, i32, i32, i32
  }
  func.func @transform_5(%arg0: i32) -> (i32, i32, i32) {
    %c0_i32 = arith.constant 0 : i32
    %c0_i32_0 = arith.constant 0 : i32
    %c0_i32_1 = arith.constant 0 : i32
    return %arg0, %c0_i32, %c0_i32_0 : i32, i32, i32
  }
}

module attributes {stable_mosaic.version = 11 : i64} {
  func.func @_final_kernel(%arg0: i32, %arg1: i32, %arg2: memref<1x128xf32, #tpu.memory_space<vmem>>, %arg3: memref<1x128xf32, #tpu.memory_space<vmem>>, %arg4: memref<1x8x16x128xf32, #tpu.memory_space<vmem>>, %arg5: memref<1x8x16x128xf32, #tpu.memory_space<vmem>>, %arg6: memref<1x8x16x128xf32, #tpu.memory_space<vmem>>) attributes {dimension_semantics = [#tpu.dimension_semantics<parallel>, #tpu.dimension_semantics<parallel>], iteration_bounds = array<i64: 2, 2>, scalar_prefetch = 0 : i64, scratch_operands = 0 : i64, tpu.core_type = #tpu.core_type<tc>, window_params = [{pipeline_mode = #tpu.pipeline_mode<synchronous>, transform_indices = @transform_0, window_bounds = array<i64: 1, 128>}, {pipeline_mode = #tpu.pipeline_mode<synchronous>, transform_indices = @transform_1, window_bounds = array<i64: 1, 128>}, {transform_indices = @transform_2, window_bounds = array<i64: 1, 8, 16, 128>}, {transform_indices = @transform_3, window_bounds = array<i64: 1, 8, 16, 128>}, {transform_indices = @transform_4, window_bounds = array<i64: 1, 8, 16, 128>}]} {
    %c0 = arith.constant 0 : index
    %c0_0 = arith.constant 0 : index
    %c0_1 = arith.constant 0 : index
    %c0_2 = arith.constant 0 : index
    %0 = vector.load %arg4[%c0, %c0_0, %c0_1, %c0_2] : memref<1x8x16x128xf32, #tpu.memory_space<vmem>>, vector<1x8x16x128xf32>
    %c0_3 = arith.constant 0 : index
    %c0_4 = arith.constant 0 : index
    %1 = vector.load %arg2[%c0_3, %c0_4] : memref<1x128xf32, #tpu.memory_space<vmem>>, vector<1x128xf32>
    %2 = vector.shape_cast %1 : vector<1x128xf32> to vector<1x1x1x128xf32>
    %3 = vector.broadcast %2 : vector<1x1x1x128xf32> to vector<1x8x16x128xf32>
    %4 = arith.mulf %0, %3 : vector<1x8x16x128xf32>
    %c0_5 = arith.constant 0 : index
    %c0_6 = arith.constant 0 : index
    %5 = vector.load %arg3[%c0_5, %c0_6] : memref<1x128xf32, #tpu.memory_space<vmem>>, vector<1x128xf32>
    %6 = vector.shape_cast %5 : vector<1x128xf32> to vector<1x1x1x128xf32>
    %7 = vector.broadcast %6 : vector<1x1x1x128xf32> to vector<1x8x16x128xf32>
    %8 = arith.addf %4, %7 : vector<1x8x16x128xf32>
    %c0_7 = arith.constant 0 : index
    %c0_8 = arith.constant 0 : index
    %c0_9 = arith.constant 0 : index
    %c0_10 = arith.constant 0 : index
    %9 = vector.load %arg5[%c0_7, %c0_8, %c0_9, %c0_10] : memref<1x8x16x128xf32, #tpu.memory_space<vmem>>, vector<1x8x16x128xf32>
    %10 = arith.addf %8, %9 : vector<1x8x16x128xf32>
    %cst = arith.constant 0.000000e+00 : f32
    %11 = vector.broadcast %cst : f32 to vector<1x8x16x128xf32>
    %12 = arith.maximumf %10, %11 : vector<1x8x16x128xf32>
    %c0_11 = arith.constant 0 : index
    %c0_12 = arith.constant 0 : index
    %c0_13 = arith.constant 0 : index
    %c0_14 = arith.constant 0 : index
    %13 = vector.load %arg6[%c0_11, %c0_12, %c0_13, %c0_14] : memref<1x8x16x128xf32, #tpu.memory_space<vmem>>, vector<1x8x16x128xf32>
    tpu.vector_store %arg6[%c0_11, %c0_12, %c0_13, %c0_14], %12 {strides = array<i32>} : memref<1x8x16x128xf32, #tpu.memory_space<vmem>>, vector<1x8x16x128xf32>,
    return
  }
  func.func @transform_0(%arg0: i32, %arg1: i32) -> (i32, i32) {
    %c0_i32 = arith.constant 0 : i32
    %c0_i32_0 = arith.constant 0 : i32
    %c0_i32_1 = arith.constant 0 : i32
    return %c0_i32, %c0_i32_0 : i32, i32
  }
  func.func @transform_1(%arg0: i32, %arg1: i32) -> (i32, i32) {
    %c0_i32 = arith.constant 0 : i32
    %c0_i32_0 = arith.constant 0 : i32
    %c0_i32_1 = arith.constant 0 : i32
    return %c0_i32, %c0_i32_0 : i32, i32
  }
  func.func @transform_2(%arg0: i32, %arg1: i32) -> (i32, i32, i32, i32) {
    %c0_i32 = arith.constant 0 : i32
    %c0_i32_0 = arith.constant 0 : i32
    %c0_i32_1 = arith.constant 0 : i32
    return %arg0, %arg1, %c0_i32, %c0_i32_0 : i32, i32, i32, i32
  }
  func.func @transform_3(%arg0: i32, %arg1: i32) -> (i32, i32, i32, i32) {
    %c0_i32 = arith.constant 0 : i32
    %c0_i32_0 = arith.constant 0 : i32
    %c0_i32_1 = arith.constant 0 : i32
    return %arg0, %arg1, %c0_i32, %c0_i32_0 : i32, i32, i32, i32
  }
  func.func @transform_4(%arg0: i32, %arg1: i32) -> (i32, i32, i32, i32) {
    %c0_i32 = arith.constant 0 : i32
    %c0_i32_0 = arith.constant 0 : i32
    %c0_i32_1 = arith.constant 0 : i32
    return %arg0, %arg1, %c0_i32, %c0_i32_0 : i32, i32, i32, i32
  }
}

</mosaic_0001>

<llo_original>
// kernel: bottleneck_forward.4
$region0: #{bottleneck_forward.4}
  #allocation0 [shape = 'u32[]', space=smem, size = 0x4, offset = 0x4, fixed_abs, tag = 'smem constant byte address 0x4 - core index']
  #allocation1 [shape = 'u32[144,128]{1,0:T(1,128)}', space=vmem, size = 0x12000, scoped, tag = 'internal scratch']
  %s0 = inlined_call_operand.hbm [shape: f32[2,16,16,128], index: 0, kind: input, shape index: {}]
  %s1 = inlined_call_operand.vmem [shape: bf16[128,32], index: 1, kind: input, shape index: {}]
  %s2 = inlined_call_operand.vmem [shape: f32[2,16,16,32], index: 2, kind: output, shape index: {0}]
  %s3 = inlined_call_operand.vmem [shape: f32[2,2,2,32], index: 3, kind: output, shape index: {1}]
  %4 = xla_tuple %s2, %s3
  %s5 = sld [smem:[#allocation0]]
  $region53: #{bottleneck_forward.4} parent=0
    _
  %s7 = ssub.s32 1, %s5
  %s8 = scalar_select 0, %s7, %s5
  $region1: #{bottleneck_forward.4} parent=0
    #allocation2 [shape = 'u8[131072]{0}', space=vmem, size = 0x20000, scoped, tag = 'input window, operand 0']
    #allocation3 [shape = 's32[2]{0}', space=sflag, size = 0x8, scoped, tag = 'scoped memory for bottleneck_forward.4']
    %9 = vsyncpa [#allocation3], 0
    %s10 = scalar_lea.sflag [#allocation3], 1
    %11 = vsyncpa %s10, 0
    loop: start=0, step=1, limit=6
    $region2: #{bottleneck_forward.4} parent=1 // loop_pre_header
      _
    $region3: #{bottleneck_forward.4} parent=1 // loop_header
      %s13 = sphi 0, %s17
      %p14 = scmp.ge.s32.totalorder %s13, 6
      %s20 = sphi 0, %s32
      %s21 = sphi 0, %s28
      %s22 = sphi 0, %s20
      %s23 = sphi 0, %s21
      %s24 = sphi 0, %s22
      %s25 = sphi 0, %s23
      %s37 = sphi 0, %s39
      %s40 = sphi 0, %s37
      %s41 = sphi 0, %s40
      %s57 = sphi 0, %s41
      %s61 = sphi 0, %s61
      %s63 = sphi 0, %s61
      %s64 = sphi 0, %s63
      %s78 = sphi 0, %s64
      %s86 = sphi 0, %s88
      %s89 = sphi 0, %s86
      %s90 = sphi 0, %s89
      %s106 = sphi 0, %s90
      %s114 = sphi 0, %s116
      %s117 = sphi 0, %s114
      %s118 = sphi 0, %s117
      %s134 = sphi 0, %s118
    $region4: #{bottleneck_forward.4} parent=1 // loop_header_branch
      %16 = sbr.rel (%p14) target = $region8
    $region5: #{bottleneck_forward.4} parent=1 // loop_body
      %s18 = ssub.s32 %s13, 1
      %s19 = ssub.s32 %s13, 2
      %s26 = sadd.s32 1, %s21
      %p27 = scmp.ge.s32.totalorder %s26, 2
      %s28 = scalar_select %p27, 0, %s26
      %s29 = sadd.s32 1, %s20
      %s30 = scalar_select %p27, %s29, %s20
      %p31 = scmp.ge.s32.totalorder %s30, 2
      %s32 = scalar_select %p31, 0, %s30
      %s33 = ssub.s32 %s20, %s32
      %s34 = ssub.s32 %s21, %s28
      %s35 = sor.u32 %s33, %s34
      %p36 = scmp.eq.s32.totalorder %s35, 0
      %s38 = sadd.s32 %s37, 1
      %s39 = scalar_select %p36, %s37, %s38
      %p42 = pneg %p36
      %p43 = scmp.eq.s32.totalorder %s13, 3
      %p44 = por %p42, %p43
      %p45 = scmp.ne.s32.totalorder %s37, %s40
      %p46 = scmp.eq.s32.totalorder %s13, 0
      %p47 = por %p45, %p46
      %p48 = scmp.ne.s32.totalorder %s37, %s40
      %p49 = scmp.eq.s32.totalorder %s18, 3
      %p50 = por %p48, %p49
      %p51 = scmp.ne.s32.totalorder %s40, %s41
      %p52 = scmp.eq.s32.totalorder %s18, 0
      %p53 = por %p51, %p52
      %p54 = scmp.ne.s32.totalorder %s40, %s41
      %p55 = scmp.eq.s32.totalorder %s19, 3
      %p56 = por %p54, %p55
      %p58 = scmp.ne.s32.totalorder %s41, %s57
      %p59 = scmp.eq.s32.totalorder %s19, 0
      %p60 = por %p58, %p59
      %s62 = sadd.s32 %s61, 1
      %p65 = scmp.eq.s32.totalorder %s13, 3
      %p66 = scmp.ne.s32.totalorder %s61, %s63
      %p67 = scmp.eq.s32.totalorder %s13, 0
      %p68 = por %p66, %p67
      %p69 = scmp.ne.s32.totalorder %s61, %s63
      %p70 = scmp.eq.s32.totalorder %s18, 3
      %p71 = por %p69, %p70
      %p72 = scmp.ne.s32.totalorder %s63, %s64
      %p73 = scmp.eq.s32.totalorder %s18, 0
      %p74 = por %p72, %p73
      %p75 = scmp.ne.s32.totalorder %s63, %s64
      %p76 = scmp.eq.s32.totalorder %s19, 3
      %p77 = por %p75, %p76
      %p79 = scmp.ne.s32.totalorder %s64, %s78
      %p80 = scmp.eq.s32.totalorder %s19, 0
      %p81 = por %p79, %p80
      %s82 = ssub.s32 %s20, %s32
      %s83 = ssub.s32 %s21, %s28
      %s84 = sor.u32 %s82, %s83
      %p85 = scmp.eq.s32.totalorder %s84, 0
      %s87 = sadd.s32 %s86, 1
      %s88 = scalar_select %p85, %s86, %s87
      %p91 = pneg %p85
      %p92 = scmp.eq.s32.totalorder %s13, 3
      %p93 = por %p91, %p92
      %p94 = scmp.ne.s32.totalorder %s86, %s89
      %p95 = scmp.eq.s32.totalorder %s13, 0
      %p96 = por %p94, %p95
      %p97 = scmp.ne.s32.totalorder %s86, %s89
      %p98 = scmp.eq.s32.totalorder %s18, 3
      %p99 = por %p97, %p98
      %p100 = scmp.ne.s32.totalorder %s89, %s90
      %p101 = scmp.eq.s32.totalorder %s18, 0
      %p102 = por %p100, %p101
      %p103 = scmp.ne.s32.totalorder %s89, %s90
      %p104 = scmp.eq.s32.totalorder %s19, 3
      %p105 = por %p103, %p104
      %p107 = scmp.ne.s32.totalorder %s90, %s106
      %p108 = scmp.eq.s32.totalorder %s19, 0
      %p109 = por %p107, %p108
      %s110 = ssub.s32 %s20, %s32
      %s111 = ssub.s32 %s21, %s28
      %s112 = sor.u32 %s110, %s111
      %p113 = scmp.eq.s32.totalorder %s112, 0
      %s115 = sadd.s32 %s114, 1
      %s116 = scalar_select %p113, %s114, %s115
      %p119 = pneg %p113
      %p120 = scmp.eq.s32.totalorder %s13, 3
      %p121 = por %p119, %p120
      %p122 = scmp.ne.s32.totalorder %s114, %s117
      %p123 = scmp.eq.s32.totalorder %s13, 0
      %p124 = por %p122, %p123
      %p125 = scmp.ne.s32.totalorder %s114, %s117
      %p126 = scmp.eq.s32.totalorder %s18, 3
      %p127 = por %p125, %p126
      %p128 = scmp.ne.s32.totalorder %s117, %s118
      %p129 = scmp.eq.s32.totalorder %s18, 0
      %p130 = por %p128, %p129
      %p131 = scmp.ne.s32.totalorder %s117, %s118
      %p132 = scmp.eq.s32.totalorder %s19, 3
      %p133 = por %p131, %p132
      %p135 = scmp.ne.s32.totalorder %s118, %s134
      %p136 = scmp.eq.s32.totalorder %s19, 0
      %p137 = por %p135, %p136
      %p138 = scmp.le.s32.totalorder 1, %s13
      %p139 = scmp.lt.s32.totalorder %s13, 5
      %p140 = pnand %p138, %p139
      %p141 = pneg %p140
      // Predicated region
      $region9: #{bottleneck_forward.4} parent=5 // pred_check
        _
      $region10: #{bottleneck_forward.4} parent=5 // pred_check_branch
        %143 = sbr.rel (%p140) target = $region12
      $region11: #{bottleneck_forward.4} parent=5 // pred_region
        %s144 = ssub.s32 %s13, 1
        // Predicated region
        $region13: #{bottleneck_forward.4} parent=11 // pred_check
          %p145 = pneg %p74
        $region14: #{bottleneck_forward.4} parent=11 // pred_check_branch
          %147 = sbr.rel (%p145) target = $region16
        $region15: #{bottleneck_forward.4} parent=11 // pred_region
          _
        $region16: #{bottleneck_forward.4} parent=11 // pred_fallthru
          _
      $region12: #{bottleneck_forward.4} parent=5 // pred_fallthru
        _
      %p148 = scmp.lt.s32.totalorder %s13, 4
      // Predicated region
      $region17: #{bottleneck_forward.4} parent=5 // pred_check
        %p149 = pneg %p148
      $region18: #{bottleneck_forward.4} parent=5 // pred_check_branch
        %151 = sbr.rel (%p149) target = $region20
      $region19: #{bottleneck_forward.4} parent=5 // pred_region
        // Predicated region
        $region21: #{bottleneck_forward.4} parent=19 // pred_check
          %p152 = pneg %p47
        $region22: #{bottleneck_forward.4} parent=19 // pred_check_branch
          %154 = sbr.rel (%p152) target = $region24
        $region23: #{bottleneck_forward.4} parent=19 // pred_region
          %s155 = sand.u32 %s37, 1
          %s156 = scalar_lea.sflag [#allocation3], %s155
          %s157 = sand.u32 %s37, 1
          %s158 = smul.addr %s157, 128
          %s159 = scalar_lea.vmem [#allocation2], %s158
          %s160 = smul.u32 8, %s21
          %s162 = ssub.s32 2048, 2048
          %163 = vsyncadd %s156, %s162
          %s164 = smul.addr %s160, 2
          %s165 = smul.addr %s20, 32
          %s166 = sadd.s32 %s164, %s165
          %s167 = smul.addr %s166, 128
          %s168 = scalar_lea.hbm %s0, %s167
          %s169 = sshll.u32 %s159, 4
          %s170 = int_to_ptr.vmem [resolvable:$true] %s169
          %175 = dma.hbm_to_vmem [thread:$0]  %s168, 2048, %s170, %s156, 128, 128, 8
        $region24: #{bottleneck_forward.4} parent=19 // pred_fallthru
          _
      $region20: #{bottleneck_forward.4} parent=5 // pred_fallthru
        _
      %p176 = scmp.le.s32.totalorder 1, %s13
      %p177 = scmp.lt.s32.totalorder %s13, 5
      %p178 = pnand %p176, %p177
      %p179 = pneg %p178
      // Predicated region
      $region25: #{bottleneck_forward.4} parent=5 // pred_check
        _
      $region26: #{bottleneck_forward.4} parent=5 // pred_check_branch
        %181 = sbr.rel (%p178) target = $region28
      $region27: #{bottleneck_forward.4} parent=5 // pred_region
        %s182 = ssub.s32 %s13, 1
        %s183 = sand.u32 %s40, 1
        %s184 = scalar_lea.sflag [#allocation3], %s183
        %s185 = sand.u32 %s40, 1
        %s186 = smul.addr %s185, 128
        %s187 = scalar_lea.vmem [#allocation2], %s186
        // Predicated region
        $region29: #{bottleneck_forward.4} parent=27 // pred_check
          %p188 = pneg %p53
        $region30: #{bottleneck_forward.4} parent=27 // pred_check_branch
          %190 = sbr.rel (%p188) target = $region32
        $region31: #{bottleneck_forward.4} parent=27 // pred_region
          %191 = dma.done %s184, 2048
        $region32: #{bottleneck_forward.4} parent=27 // pred_fallthru
          _
        %s192 = sand.u32 %s40, 1
        %s193 = scalar_lea.sflag [#allocation3], %s192
        %s194 = sand.u32 %s40, 1
        %s195 = smul.addr %s194, 128
        %s196 = scalar_lea.vmem [#allocation2], %s195
        %p197 = pneg %p53
        %p198 = pneg %p50
        %p199 = pneg %p74
        %p200 = pneg %p71
        %p201 = pneg %p102
        %p202 = pneg %p99
        %s203 = smul.u32 8, %s23
        %p204 = scmp.lt.s32.totalorder %s22, 1
        %s205 = scalar_select %p204, %s22, 1
        %p206 = scmp.lt.s32.totalorder %s203, 15
        %s207 = scalar_select %p206, %s203, 15
        %s208 = smul.addr %s207, 2
        %s209 = smul.addr %s205, 32
        %s210 = sadd.s32 %s208, %s209
        %s211 = smul.addr %s210, 8
        %s212 = scalar_lea.vmem %s2, %s211
        %p213 = pneg %p130
        %p214 = pneg %p127
        %p215 = scmp.lt.s32.totalorder %s22, 1
        %s216 = scalar_select %p215, %s22, 1
        %p217 = scmp.lt.s32.totalorder %s23, 1
        %s218 = scalar_select %p217, %s23, 1
        %s219 = smul.addr %s216, 2
        %s220 = sadd.s32 %s218, %s219
        %s221 = smul.addr %s220, 2
        %s222 = scalar_lea.vmem %s3, %s221
        %s223 = smul.u32 8, %s23
        %s224 = smul.u32 8, %s23
        %p225 = scmp.lt.s32.totalorder %s22, 1
        %s226 = scalar_select %p225, %s22, 1
        %p227 = scmp.lt.s32.totalorder %s224, 15
        %s228 = scalar_select %p227, %s224, 15
        %s229 = smul.addr %s228, 2
        %s230 = smul.addr %s226, 32
        %s231 = sadd.s32 %s229, %s230
        %s232 = smul.addr %s231, 8
        %s233 = scalar_lea.vmem %s2, %s232
        %s234 = smul.u32 8, %s23
        %p235 = scmp.lt.s32.totalorder %s22, 1
        %s236 = scalar_select %p235, %s22, 1
        %p237 = scmp.lt.s32.totalorder %s23, 1
        %s238 = scalar_select %p237, %s23, 1
        %s239 = smul.addr %s236, 2
        %s240 = sadd.s32 %s238, %s239
        %s241 = smul.addr %s240, 2
        %s242 = scalar_lea.vmem %s3, %s241
        %v244 = vld [vmem:[%s187] sm:$0xff]
        %v245 = vld [vmem:[%s187 + $0x8] sm:$0xff]
        %v246 = vld [vmem:[%s187 + $0x10] sm:$0xff]
        %v247 = vld [vmem:[%s187 + $0x18] sm:$0xff]
        %v248 = vld [vmem:[%s187 + $0x20] sm:$0xff]
        %v249 = vld [vmem:[%s187 + $0x28] sm:$0xff]
        %v250 = vld [vmem:[%s187 + $0x30] sm:$0xff]
        %v251 = vld [vmem:[%s187 + $0x38] sm:$0xff]
        %v252 = vld [vmem:[%s187 + $0x40] sm:$0xff]
        %v253 = vld [vmem:[%s187 + $0x48] sm:$0xff]
        %v254 = vld [vmem:[%s187 + $0x50] sm:$0xff]
        %v255 = vld [vmem:[%s187 + $0x58] sm:$0xff]
        %v256 = vld [vmem:[%s187 + $0x60] sm:$0xff]
        %v257 = vld [vmem:[%s187 + $0x68] sm:$0xff]
        %v258 = vld [vmem:[%s187 + $0x70] sm:$0xff]
        %v259 = vld [vmem:[%s187 + $0x78] sm:$0xff]
        %v260 = vpack.c.bf16 %v245, %v244
        %v261 = vpack.c.bf16 %v247, %v246
        %v262 = vpack.c.bf16 %v249, %v248
        %v263 = vpack.c.bf16 %v251, %v250
        %v264 = vpack.c.bf16 %v253, %v252
        %v265 = vpack.c.bf16 %v255, %v254
        %v266 = vpack.c.bf16 %v257, %v256
        %v267 = vpack.c.bf16 %v259, %v258
        %v268 = vld [vmem:[%s1] sm:$0xf]
        %v269 = vld [vmem:[%s1 + $0x4] sm:$0xf]
        %v270 = vld [vmem:[%s1 + $0x8] sm:$0xf]
        %v271 = vld [vmem:[%s1 + $0xc] sm:$0xf]
        %v272 = vld [vmem:[%s1 + $0x10] sm:$0xf]
        %v273 = vld [vmem:[%s1 + $0x14] sm:$0xf]
        %v274 = vld [vmem:[%s1 + $0x18] sm:$0xf]
        %v275 = vld [vmem:[%s1 + $0x1c] sm:$0xf]
        %v276 = vld [vmem:[%s1 + $0x20] sm:$0xf]
        %v277 = vld [vmem:[%s1 + $0x24] sm:$0xf]
        %v278 = vld [vmem:[%s1 + $0x28] sm:$0xf]
        %v279 = vld [vmem:[%s1 + $0x2c] sm:$0xf]
        %v280 = vld [vmem:[%s1 + $0x30] sm:$0xf]
        %v281 = vld [vmem:[%s1 + $0x34] sm:$0xf]
        %v282 = vld [vmem:[%s1 + $0x38] sm:$0xf]
        %v283 = vld [vmem:[%s1 + $0x3c] sm:$0xf]
        %v300 = vunpack.c.l.b16 %v268
        %v301 = vunpack.c.l.b16 %v269
        %v302 = vunpack.c.l.b16 %v270
        %v303 = vunpack.c.l.b16 %v271
        %v304 = vunpack.c.l.b16 %v272
        %v305 = vunpack.c.l.b16 %v273
        %v306 = vunpack.c.l.b16 %v274
        %v307 = vunpack.c.l.b16 %v275
        %v308 = vunpack.c.l.b16 %v276
        %v309 = vunpack.c.l.b16 %v277
        %v310 = vunpack.c.l.b16 %v278
        %v311 = vunpack.c.l.b16 %v279
        %v312 = vunpack.c.l.b16 %v280
        %v313 = vunpack.c.l.b16 %v281
        %v314 = vunpack.c.l.b16 %v282
        %v315 = vunpack.c.l.b16 %v283
        %v316 = vpack.c.b16 %v301, %v300
        %v317 = vpack.c.b16 %v303, %v302
        %v318 = vpack.c.b16 %v305, %v304
        %v319 = vpack.c.b16 %v307, %v306
        %v320 = vpack.c.b16 %v309, %v308
        %v321 = vpack.c.b16 %v311, %v310
        %v322 = vpack.c.b16 %v313, %v312
        %v323 = vpack.c.b16 %v315, %v314
        %332 = vmatprep.subr.bf16.mxu0 0
        %333 = vmatpush1.bf16.msra.mxu0 %v323
        %334 = vmatprep.subr.bf16.mxu0 0
        %335 = vmatpush1.bf16.msra.mxu0 %v322
        %336 = vmatprep.subr.bf16.mxu0 0
        %337 = vmatpush1.bf16.msra.mxu0 %v321
        %338 = vmatprep.subr.bf16.mxu0 0
        %339 = vmatpush1.bf16.msra.mxu0 %v320
        %340 = vmatprep.subr.bf16.mxu0 0
        %341 = vmatpush1.bf16.msra.mxu0 %v319
        %342 = vmatprep.subr.bf16.mxu0 0
        %343 = vmatpush1.bf16.msra.mxu0 %v318
        %344 = vmatprep.subr.bf16.mxu0 0
        %345 = vmatpush1.bf16.msra.mxu0 %v317
        %346 = vmatprep.subr.bf16.mxu0 0
        %347 = vmatpush1.bf16.msra.mxu0 %v316
        %348 = vmatprep.subr.bf16.mxu0 0
        %349 = vmatpush2.bf16.msra.mxu0 0
        %350 = vmatprep.subr.bf16.mxu0 0
        %351 = vmatpush2.bf16.msra.mxu0 0
        %352 = vmatprep.subr.bf16.mxu0 0
        %353 = vmatpush2.bf16.msra.mxu0 0
        %354 = vmatprep.subr.bf16.mxu0 0
        %355 = vmatpush2.bf16.msra.mxu0 0
        %356 = vmatprep.subr.bf16.mxu0 0
        %357 = vmatpush2.bf16.msra.mxu0 0
        %358 = vmatprep.subr.bf16.mxu0 0
        %359 = vmatpush2.bf16.msra.mxu0 0
        %360 = vmatprep.subr.bf16.mxu0 0
        %361 = vmatpush2.bf16.msra.mxu0 0
        %362 = vmatprep.subr.bf16.mxu0 0
        %363 = vmatpush2.bf16.msra.mxu0 0
        %364 = vmatprep.mubr.bf16.mxu0 0
        %365 = vmatmul.mubr.bf16.gmra.mxu0 %v260
        %v366 = vpop.f32.mrf.mxu0
        %v367 = vadd.f32 0.0, %v366
        %v368 = vpop.f32.mrf.mxu0
        %v369 = vpop.f32.mrf.mxu0
        %v370 = vadd.f32 0.0, %v369
        %v371 = vpop.f32.mrf.mxu0
        %372 = vmatprep.mubr.bf16.mxu0 0
        %373 = vmatmul.mubr.bf16.gmra.mxu0 %v261
        %v374 = vpop.f32.mrf.mxu0
        %v375 = vadd.f32 0.0, %v374
        %v376 = vpop.f32.mrf.mxu0
        %v377 = vpop.f32.mrf.mxu0
        %v378 = vadd.f32 0.0, %v377
        %v379 = vpop.f32.mrf.mxu0
        %380 = vmatprep.mubr.bf16.mxu0 0
        %381 = vmatmul.mubr.bf16.gmra.mxu0 %v262
        %v382 = vpop.f32.mrf.mxu0
        %v383 = vadd.f32 0.0, %v382
        %v384 = vpop.f32.mrf.mxu0
        %v385 = vpop.f32.mrf.mxu0
        %v386 = vadd.f32 0.0, %v385
        %v387 = vpop.f32.mrf.mxu0
        %388 = vmatprep.mubr.bf16.mxu0 0
        %389 = vmatmul.mubr.bf16.gmra.mxu0 %v263
        %v390 = vpop.f32.mrf.mxu0
        %v391 = vadd.f32 0.0, %v390
        %v392 = vpop.f32.mrf.mxu0
        %v393 = vpop.f32.mrf.mxu0
        %v394 = vadd.f32 0.0, %v393
        %v395 = vpop.f32.mrf.mxu0
        %396 = vmatprep.mubr.bf16.mxu0 0
        %397 = vmatmul.mubr.bf16.gmra.mxu0 %v264
        %v398 = vpop.f32.mrf.mxu0
        %v399 = vadd.f32 0.0, %v398
        %v400 = vpop.f32.mrf.mxu0
        %v401 = vpop.f32.mrf.mxu0
        %v402 = vadd.f32 0.0, %v401
        %v403 = vpop.f32.mrf.mxu0
        %404 = vmatprep.mubr.bf16.mxu0 0
        %405 = vmatmul.mubr.bf16.gmra.mxu0 %v265
        %v406 = vpop.f32.mrf.mxu0
        %v407 = vadd.f32 0.0, %v406
        %v408 = vpop.f32.mrf.mxu0
        %v409 = vpop.f32.mrf.mxu0
        %v410 = vadd.f32 0.0, %v409
        %v411 = vpop.f32.mrf.mxu0
        %412 = vmatprep.mubr.bf16.mxu0 0
        %413 = vmatmul.mubr.bf16.gmra.mxu0 %v266
        %v414 = vpop.f32.mrf.mxu0
        %v415 = vadd.f32 0.0, %v414
        %v416 = vpop.f32.mrf.mxu0
        %v417 = vpop.f32.mrf.mxu0
        %v418 = vadd.f32 0.0, %v417
        %v419 = vpop.f32.mrf.mxu0
        %420 = vmatprep.mubr.bf16.mxu0 0
        %421 = vmatmul.mubr.bf16.gmra.mxu0 %v267
        %v422 = vpop.f32.mrf.mxu0
        %v423 = vadd.f32 0.0, %v422
        %v424 = vpop.f32.mrf.mxu0
        %v425 = vpop.f32.mrf.mxu0
        %v426 = vadd.f32 0.0, %v425
        %v427 = vpop.f32.mrf.mxu0
        %428 = vdwg.mxu0
        %vm429 = vcmask 261120
        %430 = vst.msk [vmem:[%s233] sm:$0xff] %vm429, %v367
        %431 = vst.msk [vmem:[%s233 + $0x8] sm:$0xff] %vm429, %v370
        %432 = vst.msk [vmem:[%s233 + $0x10] sm:$0xff] %vm429, %v375
        %433 = vst.msk [vmem:[%s233 + $0x18] sm:$0xff] %vm429, %v378
        %434 = vst.msk [vmem:[%s233 + $0x20] sm:$0xff] %vm429, %v383
        %435 = vst.msk [vmem:[%s233 + $0x28] sm:$0xff] %vm429, %v386
        %436 = vst.msk [vmem:[%s233 + $0x30] sm:$0xff] %vm429, %v391
        %437 = vst.msk [vmem:[%s233 + $0x38] sm:$0xff] %vm429, %v394
        %438 = vst.msk [vmem:[%s233 + $0x40] sm:$0xff] %vm429, %v399
        %439 = vst.msk [vmem:[%s233 + $0x48] sm:$0xff] %vm429, %v402
        %440 = vst.msk [vmem:[%s233 + $0x50] sm:$0xff] %vm429, %v407
        %441 = vst.msk [vmem:[%s233 + $0x58] sm:$0xff] %vm429, %v410
        %442 = vst.msk [vmem:[%s233 + $0x60] sm:$0xff] %vm429, %v415
        %443 = vst.msk [vmem:[%s233 + $0x68] sm:$0xff] %vm429, %v418
        %444 = vst.msk [vmem:[%s233 + $0x70] sm:$0xff] %vm429, %v423
        %445 = vst.msk [vmem:[%s233 + $0x78] sm:$0xff] %vm429, %v426
        %v446 = vsel %vm429, %v367, 0.0
        %v447 = vsel %vm429, %v370, 0.0
        %v448 = vadd.f32 %v446, %v447
        %v449 = vsel %vm429, %v375, 0.0
        %v450 = vadd.f32 %v448, %v449
        %v451 = vsel %vm429, %v378, 0.0
        %v452 = vadd.f32 %v450, %v451
        %v453 = vsel %vm429, %v383, 0.0
        %v454 = vadd.f32 %v452, %v453
        %v455 = vsel %vm429, %v386, 0.0
        %v456 = vadd.f32 %v454, %v455
        %v457 = vsel %vm429, %v391, 0.0
        %v458 = vadd.f32 %v456, %v457
        %v459 = vsel %vm429, %v394, 0.0
        %v460 = vadd.f32 %v458, %v459
        %v461 = vsel %vm429, %v399, 0.0
        %v462 = vadd.f32 %v460, %v461
        %v463 = vsel %vm429, %v402, 0.0
        %v464 = vadd.f32 %v462, %v463
        %v465 = vsel %vm429, %v407, 0.0
        %v466 = vadd.f32 %v464, %v465
        %v467 = vsel %vm429, %v410, 0.0
        %v468 = vadd.f32 %v466, %v467
        %v469 = vsel %vm429, %v415, 0.0
        %v470 = vadd.f32 %v468, %v469
        %v471 = vsel %vm429, %v418, 0.0
        %v472 = vadd.f32 %v470, %v471
        %v473 = vsel %vm429, %v423, 0.0
        %v474 = vadd.f32 %v472, %v473
        %v475 = vsel %vm429, %v426, 0.0
        %v476 = vadd.f32 %v474, %v475
        %v477 = vrot.slane %v476, 4
        %v478 = vadd.f32 %v476, %v477
        %v479 = vrot.slane %v478, 2
        %v480 = vadd.f32 %v478, %v479
        %v481 = vrot.slane %v480, 1
        %v482 = vadd.f32 %v480, %v481
        %v483 = vmul.f32 %v367, %v367
        %v484 = vmul.f32 %v370, %v370
        %v485 = vmul.f32 %v375, %v375
        %v486 = vmul.f32 %v378, %v378
        %v487 = vmul.f32 %v383, %v383
        %v488 = vmul.f32 %v386, %v386
        %v489 = vmul.f32 %v391, %v391
        %v490 = vmul.f32 %v394, %v394
        %v491 = vmul.f32 %v399, %v399
        %v492 = vmul.f32 %v402, %v402
        %v493 = vmul.f32 %v407, %v407
        %v494 = vmul.f32 %v410, %v410
        %v495 = vmul.f32 %v415, %v415
        %v496 = vmul.f32 %v418, %v418
        %v497 = vmul.f32 %v423, %v423
        %v498 = vmul.f32 %v426, %v426
        %v499 = vsel %vm429, %v483, 0.0
        %v500 = vsel %vm429, %v484, 0.0
        %v501 = vadd.f32 %v499, %v500
        %v502 = vsel %vm429, %v485, 0.0
        %v503 = vadd.f32 %v501, %v502
        %v504 = vsel %vm429, %v486, 0.0
        %v505 = vadd.f32 %v503, %v504
        %v506 = vsel %vm429, %v487, 0.0
        %v507 = vadd.f32 %v505, %v506
        %v508 = vsel %vm429, %v488, 0.0
        %v509 = vadd.f32 %v507, %v508
        %v510 = vsel %vm429, %v489, 0.0
        %v511 = vadd.f32 %v509, %v510
        %v512 = vsel %vm429, %v490, 0.0
        %v513 = vadd.f32 %v511, %v512
        %v514 = vsel %vm429, %v491, 0.0
        %v515 = vadd.f32 %v513, %v514
        %v516 = vsel %vm429, %v492, 0.0
        %v517 = vadd.f32 %v515, %v516
        %v518 = vsel %vm429, %v493, 0.0
        %v519 = vadd.f32 %v517, %v518
        %v520 = vsel %vm429, %v494, 0.0
        %v521 = vadd.f32 %v519, %v520
        %v522 = vsel %vm429, %v495, 0.0
        %v523 = vadd.f32 %v521, %v522
        %v524 = vsel %vm429, %v496, 0.0
        %v525 = vadd.f32 %v523, %v524
        %v526 = vsel %vm429, %v497, 0.0
        %v527 = vadd.f32 %v525, %v526
        %v528 = vsel %vm429, %v498, 0.0
        %v529 = vadd.f32 %v527, %v528
        %v530 = vrot.slane %v529, 4
        %v531 = vadd.f32 %v529, %v530
        %v532 = vrot.slane %v531, 2
        %v533 = vadd.f32 %v531, %v532
        %v534 = vrot.slane %v533, 1
        %v535 = vadd.f32 %v533, %v534
        %vm536 = vcmask 1040384
        %v537 = vsel %vm536, %v482, %v535
        %vm538 = vcmask 254976
        %539 = vst.msk [vmem:[%s242] sm:$0x3] %vm538, %v537
        %s540 = smul.u32 8, %s23
        %p541 = scmp.lt.s32.totalorder %s22, 1
        %s542 = scalar_select %p541, %s22, 1
        %p543 = scmp.lt.s32.totalorder %s540, 15
        %s544 = scalar_select %p543, %s540, 15
        %s545 = smul.addr %s544, 2
        %s546 = smul.addr %s542, 32
        %s547 = sadd.s32 %s545, %s546
        %s548 = smul.addr %s547, 8
        %s549 = scalar_lea.vmem %s2, %s548
        %p550 = scmp.lt.s32.totalorder %s22, 1
        %s551 = scalar_select %p550, %s22, 1
        %p552 = scmp.lt.s32.totalorder %s23, 1
        %s553 = scalar_select %p552, %s23, 1
        %s554 = smul.addr %s551, 2
        %s555 = sadd.s32 %s553, %s554
        %s556 = smul.addr %s555, 2
        %s557 = scalar_lea.vmem %s3, %s556
        // Predicated region
        $region33: #{bottleneck_forward.4} parent=27 // pred_check
          %p558 = pneg %p99
        $region34: #{bottleneck_forward.4} parent=27 // pred_check_branch
          %560 = sbr.rel (%p558) target = $region36
        $region35: #{bottleneck_forward.4} parent=27 // pred_region
          %s561 = smul.u32 8, %s23
        $region36: #{bottleneck_forward.4} parent=27 // pred_fallthru
          _
        // Predicated region
        $region37: #{bottleneck_forward.4} parent=27 // pred_check
          %p562 = pneg %p127
        $region38: #{bottleneck_forward.4} parent=27 // pred_check_branch
          %564 = sbr.rel (%p562) target = $region40
        $region39: #{bottleneck_forward.4} parent=27 // pred_region
          _
        $region40: #{bottleneck_forward.4} parent=27 // pred_fallthru
          _
      $region28: #{bottleneck_forward.4} parent=5 // pred_fallthru
        _
      %p565 = scmp.le.s32.totalorder 2, %s13
      // Predicated region
      $region41: #{bottleneck_forward.4} parent=5 // pred_check
        %p566 = pneg %p565
      $region42: #{bottleneck_forward.4} parent=5 // pred_check_branch
        %568 = sbr.rel (%p566) target = $region44
      $region43: #{bottleneck_forward.4} parent=5 // pred_region
        %s569 = ssub.s32 %s13, 2
        // Predicated region
        $region45: #{bottleneck_forward.4} parent=43 // pred_check
          %p570 = pneg %p105
        $region46: #{bottleneck_forward.4} parent=43 // pred_check_branch
          %572 = sbr.rel (%p570) target = $region48
        $region47: #{bottleneck_forward.4} parent=43 // pred_region
          %s573 = smul.u32 8, %s25
          %p574 = scmp.lt.s32.totalorder %s24, 1
          %s575 = scalar_select %p574, %s24, 1
          %p576 = scmp.lt.s32.totalorder %s573, 15
          %s577 = scalar_select %p576, %s573, 15
          %s578 = smul.addr %s577, 2
          %s579 = smul.addr %s575, 32
          %s580 = sadd.s32 %s578, %s579
          %s581 = smul.addr %s580, 8
          %s582 = scalar_lea.vmem %s2, %s581
        $region48: #{bottleneck_forward.4} parent=43 // pred_fallthru
          _
        // Predicated region
        $region49: #{bottleneck_forward.4} parent=43 // pred_check
          %p583 = pneg %p133
        $region50: #{bottleneck_forward.4} parent=43 // pred_check_branch
          %585 = sbr.rel (%p583) target = $region52
        $region51: #{bottleneck_forward.4} parent=43 // pred_region
          %p586 = scmp.lt.s32.totalorder %s24, 1
          %s587 = scalar_select %p586, %s24, 1
          %p588 = scmp.lt.s32.totalorder %s25, 1
          %s589 = scalar_select %p588, %s25, 1
          %s590 = smul.addr %s587, 2
          %s591 = sadd.s32 %s589, %s590
          %s592 = smul.addr %s591, 2
          %s593 = scalar_lea.vmem %s3, %s592
        $region52: #{bottleneck_forward.4} parent=43 // pred_fallthru
          _
      $region44: #{bottleneck_forward.4} parent=5 // pred_fallthru
        _
    $region6: #{bottleneck_forward.4} parent=1 // loop_footer
      %s17 = sadd.s32 1, %s13
    $region7: #{bottleneck_forward.4} parent=1 // loop_footer_branch
      %12 = sbr.rel target = $region3
    $region8: #{bottleneck_forward.4} parent=1 // loop_exit
      _
    %594 = vsyncpa [#allocation3], 1
    %s595 = scalar_lea.sflag [#allocation3], 1
    %596 = vsyncpa %s595, 1

// kernel: bottleneck_forward.7
$region0: #{bottleneck_forward.7}
  #allocation0 [shape = 'u32[]', space=smem, size = 0x4, offset = 0x4, fixed_abs, tag = 'smem constant byte address 0x4 - core index']
  #allocation1 [shape = 'u32[144,128]{1,0:T(1,128)}', space=vmem, size = 0x12000, scoped, tag = 'internal scratch']
  %s0 = inlined_call_operand.vmem [shape: f32[1,128], index: 0, kind: input, shape index: {}]
  %s1 = inlined_call_operand.vmem [shape: f32[1,128], index: 1, kind: input, shape index: {}]
  %s2 = inlined_call_operand.vmem [shape: f32[2,16,16,128], index: 2, kind: input, shape index: {}]
  %s3 = inlined_call_operand.vmem [shape: f32[2,16,16,128], index: 3, kind: input, shape index: {}]
  %s4 = inlined_call_operand.hbm [shape: f32[2,16,16,128], index: 4, kind: output, shape index: {}]
  %s5 = sld [smem:[#allocation0]]
  $region49: #{bottleneck_forward.7} parent=0
    _
  %s7 = ssub.s32 1, %s5
  %s8 = scalar_select 0, %s7, %s5
  $region1: #{bottleneck_forward.7} parent=0
    #allocation2 [shape = 'u8[131072]{0}', space=vmem, size = 0x20000, scoped, tag = 'output window, operand 0']
    #allocation3 [shape = 's32[2]{0}', space=sflag, size = 0x8, scoped, tag = 'scoped memory for bottleneck_forward.7']
    %9 = vsyncpa [#allocation3], 0
    %s10 = scalar_lea.sflag [#allocation3], 1
    %11 = vsyncpa %s10, 0
    loop: start=0, step=1, limit=6
    $region2: #{bottleneck_forward.7} parent=1 // loop_pre_header
      _
    $region3: #{bottleneck_forward.7} parent=1 // loop_header
      %s13 = sphi 0, %s17
      %p14 = scmp.ge.s32.totalorder %s13, 6
      %s20 = sphi 0, %s32
      %s21 = sphi 0, %s28
      %s22 = sphi 0, %s20
      %s23 = sphi 0, %s21
      %s24 = sphi 0, %s22
      %s25 = sphi 0, %s23
      %s33 = sphi 0, %s33
      %s35 = sphi 0, %s33
      %s36 = sphi 0, %s35
      %s50 = sphi 0, %s36
      %s54 = sphi 0, %s54
      %s56 = sphi 0, %s54
      %s57 = sphi 0, %s56
      %s71 = sphi 0, %s57
      %s79 = sphi 0, %s81
      %s82 = sphi 0, %s79
      %s83 = sphi 0, %s82
      %s99 = sphi 0, %s83
      %s107 = sphi 0, %s109
      %s110 = sphi 0, %s107
      %s111 = sphi 0, %s110
      %s127 = sphi 0, %s111
      %s135 = sphi 0, %s137
      %s138 = sphi 0, %s135
      %s139 = sphi 0, %s138
      %s155 = sphi 0, %s139
    $region4: #{bottleneck_forward.7} parent=1 // loop_header_branch
      %16 = sbr.rel (%p14) target = $region8
    $region5: #{bottleneck_forward.7} parent=1 // loop_body
      %s18 = ssub.s32 %s13, 1
      %s19 = ssub.s32 %s13, 2
      %s26 = sadd.s32 1, %s21
      %p27 = scmp.ge.s32.totalorder %s26, 2
      %s28 = scalar_select %p27, 0, %s26
      %s29 = sadd.s32 1, %s20
      %s30 = scalar_select %p27, %s29, %s20
      %p31 = scmp.ge.s32.totalorder %s30, 2
      %s32 = scalar_select %p31, 0, %s30
      %s34 = sadd.s32 %s33, 1
      %p37 = scmp.eq.s32.totalorder %s13, 3
      %p38 = scmp.ne.s32.totalorder %s33, %s35
      %p39 = scmp.eq.s32.totalorder %s13, 0
      %p40 = por %p38, %p39
      %p41 = scmp.ne.s32.totalorder %s33, %s35
      %p42 = scmp.eq.s32.totalorder %s18, 3
      %p43 = por %p41, %p42
      %p44 = scmp.ne.s32.totalorder %s35, %s36
      %p45 = scmp.eq.s32.totalorder %s18, 0
      %p46 = por %p44, %p45
      %p47 = scmp.ne.s32.totalorder %s35, %s36
      %p48 = scmp.eq.s32.totalorder %s19, 3
      %p49 = por %p47, %p48
      %p51 = scmp.ne.s32.totalorder %s36, %s50
      %p52 = scmp.eq.s32.totalorder %s19, 0
      %p53 = por %p51, %p52
      %s55 = sadd.s32 %s54, 1
      %p58 = scmp.eq.s32.totalorder %s13, 3
      %p59 = scmp.ne.s32.totalorder %s54, %s56
      %p60 = scmp.eq.s32.totalorder %s13, 0
      %p61 = por %p59, %p60
      %p62 = scmp.ne.s32.totalorder %s54, %s56
      %p63 = scmp.eq.s32.totalorder %s18, 3
      %p64 = por %p62, %p63
      %p65 = scmp.ne.s32.totalorder %s56, %s57
      %p66 = scmp.eq.s32.totalorder %s18, 0
      %p67 = por %p65, %p66
      %p68 = scmp.ne.s32.totalorder %s56, %s57
      %p69 = scmp.eq.s32.totalorder %s19, 3
      %p70 = por %p68, %p69
      %p72 = scmp.ne.s32.totalorder %s57, %s71
      %p73 = scmp.eq.s32.totalorder %s19, 0
      %p74 = por %p72, %p73
      %s75 = ssub.s32 %s20, %s32
      %s76 = ssub.s32 %s21, %s28
      %s77 = sor.u32 %s75, %s76
      %p78 = scmp.eq.s32.totalorder %s77, 0
      %s80 = sadd.s32 %s79, 1
      %s81 = scalar_select %p78, %s79, %s80
      %p84 = pneg %p78
      %p85 = scmp.eq.s32.totalorder %s13, 3
      %p86 = por %p84, %p85
      %p87 = scmp.ne.s32.totalorder %s79, %s82
      %p88 = scmp.eq.s32.totalorder %s13, 0
      %p89 = por %p87, %p88
      %p90 = scmp.ne.s32.totalorder %s79, %s82
      %p91 = scmp.eq.s32.totalorder %s18, 3
      %p92 = por %p90, %p91
      %p93 = scmp.ne.s32.totalorder %s82, %s83
      %p94 = scmp.eq.s32.totalorder %s18, 0
      %p95 = por %p93, %p94
      %p96 = scmp.ne.s32.totalorder %s82, %s83
      %p97 = scmp.eq.s32.totalorder %s19, 3
      %p98 = por %p96, %p97
      %p100 = scmp.ne.s32.totalorder %s83, %s99
      %p101 = scmp.eq.s32.totalorder %s19, 0
      %p102 = por %p100, %p101
      %s103 = ssub.s32 %s20, %s32
      %s104 = ssub.s32 %s21, %s28
      %s105 = sor.u32 %s103, %s104
      %p106 = scmp.eq.s32.totalorder %s105, 0
      %s108 = sadd.s32 %s107, 1
      %s109 = scalar_select %p106, %s107, %s108
      %p112 = pneg %p106
      %p113 = scmp.eq.s32.totalorder %s13, 3
      %p114 = por %p112, %p113
      %p115 = scmp.ne.s32.totalorder %s107, %s110
      %p116 = scmp.eq.s32.totalorder %s13, 0
      %p117 = por %p115, %p116
      %p118 = scmp.ne.s32.totalorder %s107, %s110
      %p119 = scmp.eq.s32.totalorder %s18, 3
      %p120 = por %p118, %p119
      %p121 = scmp.ne.s32.totalorder %s110, %s111
      %p122 = scmp.eq.s32.totalorder %s18, 0
      %p123 = por %p121, %p122
      %p124 = scmp.ne.s32.totalorder %s110, %s111
      %p125 = scmp.eq.s32.totalorder %s19, 3
      %p126 = por %p124, %p125
      %p128 = scmp.ne.s32.totalorder %s111, %s127
      %p129 = scmp.eq.s32.totalorder %s19, 0
      %p130 = por %p128, %p129
      %s131 = ssub.s32 %s20, %s32
      %s132 = ssub.s32 %s21, %s28
      %s133 = sor.u32 %s131, %s132
      %p134 = scmp.eq.s32.totalorder %s133, 0
      %s136 = sadd.s32 %s135, 1
      %s137 = scalar_select %p134, %s135, %s136
      %p140 = pneg %p134
      %p141 = scmp.eq.s32.totalorder %s13, 3
      %p142 = por %p140, %p141
      %p143 = scmp.ne.s32.totalorder %s135, %s138
      %p144 = scmp.eq.s32.totalorder %s13, 0
      %p145 = por %p143, %p144
      %p146 = scmp.ne.s32.totalorder %s135, %s138
      %p147 = scmp.eq.s32.totalorder %s18, 3
      %p148 = por %p146, %p147
      %p149 = scmp.ne.s32.totalorder %s138, %s139
      %p150 = scmp.eq.s32.totalorder %s18, 0
      %p151 = por %p149, %p150
      %p152 = scmp.ne.s32.totalorder %s138, %s139
      %p153 = scmp.eq.s32.totalorder %s19, 3
      %p154 = por %p152, %p153
      %p156 = scmp.ne.s32.totalorder %s139, %s155
      %p157 = scmp.eq.s32.totalorder %s19, 0
      %p158 = por %p156, %p157
      %p159 = scmp.le.s32.totalorder 1, %s13
      %p160 = scmp.lt.s32.totalorder %s13, 5
      %p161 = pnand %p159, %p160
      %p162 = pneg %p161
      // Predicated region
      $region9: #{bottleneck_forward.7} parent=5 // pred_check
        _
      $region10: #{bottleneck_forward.7} parent=5 // pred_check_branch
        %164 = sbr.rel (%p161) target = $region12
      $region11: #{bottleneck_forward.7} parent=5 // pred_region
        %s165 = ssub.s32 %s13, 1
        // Predicated region
        $region13: #{bottleneck_forward.7} parent=11 // pred_check
          %p166 = pneg %p46
        $region14: #{bottleneck_forward.7} parent=11 // pred_check_branch
          %168 = sbr.rel (%p166) target = $region16
        $region15: #{bottleneck_forward.7} parent=11 // pred_region
          _
        $region16: #{bottleneck_forward.7} parent=11 // pred_fallthru
          _
        // Predicated region
        $region17: #{bottleneck_forward.7} parent=11 // pred_check
          %p169 = pneg %p67
        $region18: #{bottleneck_forward.7} parent=11 // pred_check_branch
          %171 = sbr.rel (%p169) target = $region20
        $region19: #{bottleneck_forward.7} parent=11 // pred_region
          _
        $region20: #{bottleneck_forward.7} parent=11 // pred_fallthru
          _
      $region12: #{bottleneck_forward.7} parent=5 // pred_fallthru
        _
      %p172 = scmp.lt.s32.totalorder %s13, 4
      // Predicated region
      $region21: #{bottleneck_forward.7} parent=5 // pred_check
        %p173 = pneg %p172
      $region22: #{bottleneck_forward.7} parent=5 // pred_check_branch
        %175 = sbr.rel (%p173) target = $region24
      $region23: #{bottleneck_forward.7} parent=5 // pred_region
        // Predicated region
        $region25: #{bottleneck_forward.7} parent=23 // pred_check
          %p176 = pneg %p89
        $region26: #{bottleneck_forward.7} parent=23 // pred_check_branch
          %178 = sbr.rel (%p176) target = $region28
        $region27: #{bottleneck_forward.7} parent=23 // pred_region
          %s179 = smul.u32 8, %s21
          %p180 = scmp.lt.s32.totalorder %s20, 1
          %s181 = scalar_select %p180, %s20, 1
          %p182 = scmp.lt.s32.totalorder %s179, 15
          %s183 = scalar_select %p182, %s179, 15
          %s184 = smul.addr %s183, 2
          %s185 = smul.addr %s181, 32
          %s186 = sadd.s32 %s184, %s185
          %s187 = smul.addr %s186, 8
          %s188 = scalar_lea.vmem %s2, %s187
          %s189 = smul.u32 8, %s21
        $region28: #{bottleneck_forward.7} parent=23 // pred_fallthru
          _
        // Predicated region
        $region29: #{bottleneck_forward.7} parent=23 // pred_check
          %p190 = pneg %p117
        $region30: #{bottleneck_forward.7} parent=23 // pred_check_branch
          %192 = sbr.rel (%p190) target = $region32
        $region31: #{bottleneck_forward.7} parent=23 // pred_region
          %s193 = smul.u32 8, %s21
          %p194 = scmp.lt.s32.totalorder %s20, 1
          %s195 = scalar_select %p194, %s20, 1
          %p196 = scmp.lt.s32.totalorder %s193, 15
          %s197 = scalar_select %p196, %s193, 15
          %s198 = smul.addr %s197, 2
          %s199 = smul.addr %s195, 32
          %s200 = sadd.s32 %s198, %s199
          %s201 = smul.addr %s200, 8
          %s202 = scalar_lea.vmem %s3, %s201
          %s203 = smul.u32 8, %s21
        $region32: #{bottleneck_forward.7} parent=23 // pred_fallthru
          _
      $region24: #{bottleneck_forward.7} parent=5 // pred_fallthru
        _
      %p204 = scmp.le.s32.totalorder 1, %s13
      %p205 = scmp.lt.s32.totalorder %s13, 5
      %p206 = pnand %p204, %p205
      %p207 = pneg %p206
      // Predicated region
      $region33: #{bottleneck_forward.7} parent=5 // pred_check
        _
      $region34: #{bottleneck_forward.7} parent=5 // pred_check_branch
        %209 = sbr.rel (%p206) target = $region36
      $region35: #{bottleneck_forward.7} parent=5 // pred_region
        %s210 = ssub.s32 %s13, 1
        %p211 = pneg %p46
        %p212 = pneg %p43
        %p213 = pneg %p67
        %p214 = pneg %p64
        %s215 = smul.u32 8, %s23
        %p216 = scmp.lt.s32.totalorder %s22, 1
        %s217 = scalar_select %p216, %s22, 1
        %p218 = scmp.lt.s32.totalorder %s215, 15
        %s219 = scalar_select %p218, %s215, 15
        %s220 = smul.addr %s219, 2
        %s221 = smul.addr %s217, 32
        %s222 = sadd.s32 %s220, %s221
        %s223 = smul.addr %s222, 8
        %s224 = scalar_lea.vmem %s2, %s223
        %p225 = pneg %p95
        %p226 = pneg %p92
        %s227 = smul.u32 8, %s23
        %p228 = scmp.lt.s32.totalorder %s22, 1
        %s229 = scalar_select %p228, %s22, 1
        %p230 = scmp.lt.s32.totalorder %s227, 15
        %s231 = scalar_select %p230, %s227, 15
        %s232 = smul.addr %s231, 2
        %s233 = smul.addr %s229, 32
        %s234 = sadd.s32 %s232, %s233
        %s235 = smul.addr %s234, 8
        %s236 = scalar_lea.vmem %s3, %s235
        %p237 = pneg %p123
        %p238 = pneg %p120
        %p239 = pneg %p151
        %p240 = pneg %p148
        %s241 = sand.u32 %s138, 1
        %s242 = scalar_lea.sflag [#allocation3], %s241
        %s243 = sand.u32 %s138, 1
        %s244 = smul.addr %s243, 128
        %s245 = scalar_lea.vmem [#allocation2], %s244
        %s246 = smul.u32 8, %s23
        %p247 = scmp.lt.s32.totalorder %s22, 1
        %s248 = scalar_select %p247, %s22, 1
        %p249 = scmp.lt.s32.totalorder %s246, 15
        %s250 = scalar_select %p249, %s246, 15
        %s251 = smul.addr %s250, 2
        %s252 = smul.addr %s248, 32
        %s253 = sadd.s32 %s251, %s252
        %s254 = smul.addr %s253, 8
        %s255 = scalar_lea.vmem %s2, %s254
        %s256 = smul.u32 8, %s23
        %s257 = smul.u32 8, %s23
        %p258 = scmp.lt.s32.totalorder %s22, 1
        %s259 = scalar_select %p258, %s22, 1
        %p260 = scmp.lt.s32.totalorder %s257, 15
        %s261 = scalar_select %p260, %s257, 15
        %s262 = smul.addr %s261, 2
        %s263 = smul.addr %s259, 32
        %s264 = sadd.s32 %s262, %s263
        %s265 = smul.addr %s264, 8
        %s266 = scalar_lea.vmem %s3, %s265
        %s267 = smul.u32 8, %s23
        %s268 = smul.u32 8, %s23
        %v269 = vld [vmem:[%s255] sm:$0xff]
        %v270 = vld [vmem:[%s255 + $0x8] sm:$0xff]
        %v271 = vld [vmem:[%s255 + $0x10] sm:$0xff]
        %v272 = vld [vmem:[%s255 + $0x18] sm:$0xff]
        %v273 = vld [vmem:[%s255 + $0x20] sm:$0xff]
        %v274 = vld [vmem:[%s255 + $0x28] sm:$0xff]
        %v275 = vld [vmem:[%s255 + $0x30] sm:$0xff]
        %v276 = vld [vmem:[%s255 + $0x38] sm:$0xff]
        %v277 = vld [vmem:[%s255 + $0x40] sm:$0xff]
        %v278 = vld [vmem:[%s255 + $0x48] sm:$0xff]
        %v279 = vld [vmem:[%s255 + $0x50] sm:$0xff]
        %v280 = vld [vmem:[%s255 + $0x58] sm:$0xff]
        %v281 = vld [vmem:[%s255 + $0x60] sm:$0xff]
        %v282 = vld [vmem:[%s255 + $0x68] sm:$0xff]
        %v283 = vld [vmem:[%s255 + $0x70] sm:$0xff]
        %v284 = vld [vmem:[%s255 + $0x78] sm:$0xff]
        %v285 = vld [vmem:[%s0] sm:$0x1]
        %v287 = vlaneseq
        %v288 = vshrl.u32 %v287, 7
        %v289 = vsub.s32 0, %v288
        %v290 = vrot.slane %v285, %v289
        %v292 = vmul.f32 %v269, %v290
        %v293 = vmul.f32 %v270, %v290
        %v294 = vmul.f32 %v271, %v290
        %v295 = vmul.f32 %v272, %v290
        %v296 = vmul.f32 %v273, %v290
        %v297 = vmul.f32 %v274, %v290
        %v298 = vmul.f32 %v275, %v290
        %v299 = vmul.f32 %v276, %v290
        %v300 = vmul.f32 %v277, %v290
        %v301 = vmul.f32 %v278, %v290
        %v302 = vmul.f32 %v279, %v290
        %v303 = vmul.f32 %v280, %v290
        %v304 = vmul.f32 %v281, %v290
        %v305 = vmul.f32 %v282, %v290
        %v306 = vmul.f32 %v283, %v290
        %v307 = vmul.f32 %v284, %v290
        %v308 = vld [vmem:[%s1] sm:$0x1]
        %v310 = vlaneseq
        %v311 = vshrl.u32 %v310, 7
        %v312 = vsub.s32 0, %v311
        %v313 = vrot.slane %v308, %v312
        %v315 = vadd.f32 %v292, %v313
        %v316 = vadd.f32 %v293, %v313
        %v317 = vadd.f32 %v294, %v313
        %v318 = vadd.f32 %v295, %v313
        %v319 = vadd.f32 %v296, %v313
        %v320 = vadd.f32 %v297, %v313
        %v321 = vadd.f32 %v298, %v313
        %v322 = vadd.f32 %v299, %v313
        %v323 = vadd.f32 %v300, %v313
        %v324 = vadd.f32 %v301, %v313
        %v325 = vadd.f32 %v302, %v313
        %v326 = vadd.f32 %v303, %v313
        %v327 = vadd.f32 %v304, %v313
        %v328 = vadd.f32 %v305, %v313
        %v329 = vadd.f32 %v306, %v313
        %v330 = vadd.f32 %v307, %v313
        %v331 = vld [vmem:[%s266] sm:$0xff]
        %v332 = vld [vmem:[%s266 + $0x8] sm:$0xff]
        %v333 = vld [vmem:[%s266 + $0x10] sm:$0xff]
        %v334 = vld [vmem:[%s266 + $0x18] sm:$0xff]
        %v335 = vld [vmem:[%s266 + $0x20] sm:$0xff]
        %v336 = vld [vmem:[%s266 + $0x28] sm:$0xff]
        %v337 = vld [vmem:[%s266 + $0x30] sm:$0xff]
        %v338 = vld [vmem:[%s266 + $0x38] sm:$0xff]
        %v339 = vld [vmem:[%s266 + $0x40] sm:$0xff]
        %v340 = vld [vmem:[%s266 + $0x48] sm:$0xff]
        %v341 = vld [vmem:[%s266 + $0x50] sm:$0xff]
        %v342 = vld [vmem:[%s266 + $0x58] sm:$0xff]
        %v343 = vld [vmem:[%s266 + $0x60] sm:$0xff]
        %v344 = vld [vmem:[%s266 + $0x68] sm:$0xff]
        %v345 = vld [vmem:[%s266 + $0x70] sm:$0xff]
        %v346 = vld [vmem:[%s266 + $0x78] sm:$0xff]
        %v347 = vadd.f32 %v315, %v331
        %v348 = vadd.f32 %v316, %v332
        %v349 = vadd.f32 %v317, %v333
        %v350 = vadd.f32 %v318, %v334
        %v351 = vadd.f32 %v319, %v335
        %v352 = vadd.f32 %v320, %v336
        %v353 = vadd.f32 %v321, %v337
        %v354 = vadd.f32 %v322, %v338
        %v355 = vadd.f32 %v323, %v339
        %v356 = vadd.f32 %v324, %v340
        %v357 = vadd.f32 %v325, %v341
        %v358 = vadd.f32 %v326, %v342
        %v359 = vadd.f32 %v327, %v343
        %v360 = vadd.f32 %v328, %v344
        %v361 = vadd.f32 %v329, %v345
        %v362 = vadd.f32 %v330, %v346
        %v363 = vmax.f32 %v347, 0.0
        %v364 = vmax.f32 %v348, 0.0
        %v365 = vmax.f32 %v349, 0.0
        %v366 = vmax.f32 %v350, 0.0
        %v367 = vmax.f32 %v351, 0.0
        %v368 = vmax.f32 %v352, 0.0
        %v369 = vmax.f32 %v353, 0.0
        %v370 = vmax.f32 %v354, 0.0
        %v371 = vmax.f32 %v355, 0.0
        %v372 = vmax.f32 %v356, 0.0
        %v373 = vmax.f32 %v357, 0.0
        %v374 = vmax.f32 %v358, 0.0
        %v375 = vmax.f32 %v359, 0.0
        %v376 = vmax.f32 %v360, 0.0
        %v377 = vmax.f32 %v361, 0.0
        %v378 = vmax.f32 %v362, 0.0
        %379 = vst [vmem:[%s245] sm:$0xff] %v363
        %380 = vst [vmem:[%s245 + $0x8] sm:$0xff] %v364
        %381 = vst [vmem:[%s245 + $0x10] sm:$0xff] %v365
        %382 = vst [vmem:[%s245 + $0x18] sm:$0xff] %v366
        %383 = vst [vmem:[%s245 + $0x20] sm:$0xff] %v367
        %384 = vst [vmem:[%s245 + $0x28] sm:$0xff] %v368
        %385 = vst [vmem:[%s245 + $0x30] sm:$0xff] %v369
        %386 = vst [vmem:[%s245 + $0x38] sm:$0xff] %v370
        %387 = vst [vmem:[%s245 + $0x40] sm:$0xff] %v371
        %388 = vst [vmem:[%s245 + $0x48] sm:$0xff] %v372
        %389 = vst [vmem:[%s245 + $0x50] sm:$0xff] %v373
        %390 = vst [vmem:[%s245 + $0x58] sm:$0xff] %v374
        %391 = vst [vmem:[%s245 + $0x60] sm:$0xff] %v375
        %392 = vst [vmem:[%s245 + $0x68] sm:$0xff] %v376
        %393 = vst [vmem:[%s245 + $0x70] sm:$0xff] %v377
        %394 = vst [vmem:[%s245 + $0x78] sm:$0xff] %v378
        %s395 = sand.u32 %s138, 1
        %s396 = scalar_lea.sflag [#allocation3], %s395
        %s397 = sand.u32 %s138, 1
        %s398 = smul.addr %s397, 128
        %s399 = scalar_lea.vmem [#allocation2], %s398
        // Predicated region
        $region37: #{bottleneck_forward.7} parent=35 // pred_check
          %p400 = pneg %p148
        $region38: #{bottleneck_forward.7} parent=35 // pred_check_branch
          %402 = sbr.rel (%p400) target = $region40
        $region39: #{bottleneck_forward.7} parent=35 // pred_region
          %s403 = smul.u32 8, %s23
          %s405 = ssub.s32 2048, 2048
          %406 = vsyncadd %s396, %s405
          %s407 = smul.addr %s403, 2
          %s408 = smul.addr %s22, 32
          %s409 = sadd.s32 %s407, %s408
          %s410 = smul.addr %s409, 128
          %s411 = scalar_lea.hbm %s4, %s410
          %s412 = sshll.u32 %s399, 4
          %s413 = int_to_ptr.vmem [resolvable:$true] %s412
          %418 = dma.vmem_to_hbm [thread:$0]  %s413, 2048, %s411, %s396, 128, 128, 8
        $region40: #{bottleneck_forward.7} parent=35 // pred_fallthru
          _
      $region36: #{bottleneck_forward.7} parent=5 // pred_fallthru
        _
      %p419 = scmp.le.s32.totalorder 2, %s13
      // Predicated region
      $region41: #{bottleneck_forward.7} parent=5 // pred_check
        %p420 = pneg %p419
      $region42: #{bottleneck_forward.7} parent=5 // pred_check_branch
        %422 = sbr.rel (%p420) target = $region44
      $region43: #{bottleneck_forward.7} parent=5 // pred_region
        %s423 = ssub.s32 %s13, 2
        // Predicated region
        $region45: #{bottleneck_forward.7} parent=43 // pred_check
          %p424 = pneg %p154
        $region46: #{bottleneck_forward.7} parent=43 // pred_check_branch
          %426 = sbr.rel (%p424) target = $region48
        $region47: #{bottleneck_forward.7} parent=43 // pred_region
          %s427 = sand.u32 %s139, 1
          %s428 = scalar_lea.sflag [#allocation3], %s427
          %s429 = sand.u32 %s139, 1
          %s430 = smul.addr %s429, 128
          %s431 = scalar_lea.vmem [#allocation2], %s430
          %432 = dma.done %s428, 2048
        $region48: #{bottleneck_forward.7} parent=43 // pred_fallthru
          _
      $region44: #{bottleneck_forward.7} parent=5 // pred_fallthru
        _
    $region6: #{bottleneck_forward.7} parent=1 // loop_footer
      %s17 = sadd.s32 1, %s13
    $region7: #{bottleneck_forward.7} parent=1 // loop_footer_branch
      %12 = sbr.rel target = $region3
    $region8: #{bottleneck_forward.7} parent=1 // loop_exit
      _
    %433 = vsyncpa [#allocation3], 1
    %s434 = scalar_lea.sflag [#allocation3], 1
    %435 = vsyncpa %s434, 1

// kernel: bottleneck_forward.6
$region0: #{bottleneck_forward.6}
  #allocation0 [shape = 'u32[]', space=smem, size = 0x4, offset = 0x4, fixed_abs, tag = 'smem constant byte address 0x4 - core index']
  #allocation1 [shape = 'u32[144,128]{1,0:T(1,128)}', space=vmem, size = 0x12000, scoped, tag = 'internal scratch']
  %s0 = inlined_call_operand.vmem [shape: f32[1,32], index: 0, kind: input, shape index: {}]
  %s1 = inlined_call_operand.vmem [shape: f32[1,32], index: 1, kind: input, shape index: {}]
  %s2 = inlined_call_operand.vmem [shape: f32[2,16,16,32], index: 2, kind: input, shape index: {}]
  %s3 = inlined_call_operand.vmem [shape: bf16[32,128], index: 3, kind: input, shape index: {}]
  %s4 = inlined_call_operand.vmem [shape: f32[2,16,16,128], index: 4, kind: output, shape index: {0}]
  %s5 = inlined_call_operand.vmem [shape: f32[2,2,2,128], index: 5, kind: output, shape index: {1}]
  %6 = xla_tuple %s4, %s5
  %s7 = sld [smem:[#allocation0]]
  $region57: #{bottleneck_forward.6} parent=0
    _
  %s9 = ssub.s32 1, %s7
  %s10 = scalar_select 0, %s9, %s7
  loop: start=0, step=1, limit=6
  $region2: #{bottleneck_forward.6} parent=0 // loop_pre_header
    _
  $region3: #{bottleneck_forward.6} parent=0 // loop_header
    %s12 = sphi 0, %s16
    %p13 = scmp.ge.s32.totalorder %s12, 6
    %s19 = sphi 0, %s31
    %s20 = sphi 0, %s27
    %s21 = sphi 0, %s19
    %s22 = sphi 0, %s20
    %s23 = sphi 0, %s21
    %s24 = sphi 0, %s22
    %s32 = sphi 0, %s32
    %s34 = sphi 0, %s32
    %s35 = sphi 0, %s34
    %s49 = sphi 0, %s35
    %s53 = sphi 0, %s53
    %s55 = sphi 0, %s53
    %s56 = sphi 0, %s55
    %s70 = sphi 0, %s56
    %s78 = sphi 0, %s80
    %s81 = sphi 0, %s78
    %s82 = sphi 0, %s81
    %s98 = sphi 0, %s82
    %s102 = sphi 0, %s102
    %s104 = sphi 0, %s102
    %s105 = sphi 0, %s104
    %s119 = sphi 0, %s105
    %s127 = sphi 0, %s129
    %s130 = sphi 0, %s127
    %s131 = sphi 0, %s130
    %s147 = sphi 0, %s131
    %s155 = sphi 0, %s157
    %s158 = sphi 0, %s155
    %s159 = sphi 0, %s158
    %s175 = sphi 0, %s159
  $region4: #{bottleneck_forward.6} parent=0 // loop_header_branch
    %15 = sbr.rel (%p13) target = $region8
  $region5: #{bottleneck_forward.6} parent=0 // loop_body
    %s17 = ssub.s32 %s12, 1
    %s18 = ssub.s32 %s12, 2
    %s25 = sadd.s32 1, %s20
    %p26 = scmp.ge.s32.totalorder %s25, 2
    %s27 = scalar_select %p26, 0, %s25
    %s28 = sadd.s32 1, %s19
    %s29 = scalar_select %p26, %s28, %s19
    %p30 = scmp.ge.s32.totalorder %s29, 2
    %s31 = scalar_select %p30, 0, %s29
    %s33 = sadd.s32 %s32, 1
    %p36 = scmp.eq.s32.totalorder %s12, 3
    %p37 = scmp.ne.s32.totalorder %s32, %s34
    %p38 = scmp.eq.s32.totalorder %s12, 0
    %p39 = por %p37, %p38
    %p40 = scmp.ne.s32.totalorder %s32, %s34
    %p41 = scmp.eq.s32.totalorder %s17, 3
    %p42 = por %p40, %p41
    %p43 = scmp.ne.s32.totalorder %s34, %s35
    %p44 = scmp.eq.s32.totalorder %s17, 0
    %p45 = por %p43, %p44
    %p46 = scmp.ne.s32.totalorder %s34, %s35
    %p47 = scmp.eq.s32.totalorder %s18, 3
    %p48 = por %p46, %p47
    %p50 = scmp.ne.s32.totalorder %s35, %s49
    %p51 = scmp.eq.s32.totalorder %s18, 0
    %p52 = por %p50, %p51
    %s54 = sadd.s32 %s53, 1
    %p57 = scmp.eq.s32.totalorder %s12, 3
    %p58 = scmp.ne.s32.totalorder %s53, %s55
    %p59 = scmp.eq.s32.totalorder %s12, 0
    %p60 = por %p58, %p59
    %p61 = scmp.ne.s32.totalorder %s53, %s55
    %p62 = scmp.eq.s32.totalorder %s17, 3
    %p63 = por %p61, %p62
    %p64 = scmp.ne.s32.totalorder %s55, %s56
    %p65 = scmp.eq.s32.totalorder %s17, 0
    %p66 = por %p64, %p65
    %p67 = scmp.ne.s32.totalorder %s55, %s56
    %p68 = scmp.eq.s32.totalorder %s18, 3
    %p69 = por %p67, %p68
    %p71 = scmp.ne.s32.totalorder %s56, %s70
    %p72 = scmp.eq.s32.totalorder %s18, 0
    %p73 = por %p71, %p72
    %s74 = ssub.s32 %s19, %s31
    %s75 = ssub.s32 %s20, %s27
    %s76 = sor.u32 %s74, %s75
    %p77 = scmp.eq.s32.totalorder %s76, 0
    %s79 = sadd.s32 %s78, 1
    %s80 = scalar_select %p77, %s78, %s79
    %p83 = pneg %p77
    %p84 = scmp.eq.s32.totalorder %s12, 3
    %p85 = por %p83, %p84
    %p86 = scmp.ne.s32.totalorder %s78, %s81
    %p87 = scmp.eq.s32.totalorder %s12, 0
    %p88 = por %p86, %p87
    %p89 = scmp.ne.s32.totalorder %s78, %s81
    %p90 = scmp.eq.s32.totalorder %s17, 3
    %p91 = por %p89, %p90
    %p92 = scmp.ne.s32.totalorder %s81, %s82
    %p93 = scmp.eq.s32.totalorder %s17, 0
    %p94 = por %p92, %p93
    %p95 = scmp.ne.s32.totalorder %s81, %s82
    %p96 = scmp.eq.s32.totalorder %s18, 3
    %p97 = por %p95, %p96
    %p99 = scmp.ne.s32.totalorder %s82, %s98
    %p100 = scmp.eq.s32.totalorder %s18, 0
    %p101 = por %p99, %p100
    %s103 = sadd.s32 %s102, 1
    %p106 = scmp.eq.s32.totalorder %s12, 3
    %p107 = scmp.ne.s32.totalorder %s102, %s104
    %p108 = scmp.eq.s32.totalorder %s12, 0
    %p109 = por %p107, %p108
    %p110 = scmp.ne.s32.totalorder %s102, %s104
    %p111 = scmp.eq.s32.totalorder %s17, 3
    %p112 = por %p110, %p111
    %p113 = scmp.ne.s32.totalorder %s104, %s105
    %p114 = scmp.eq.s32.totalorder %s17, 0
    %p115 = por %p113, %p114
    %p116 = scmp.ne.s32.totalorder %s104, %s105
    %p117 = scmp.eq.s32.totalorder %s18, 3
    %p118 = por %p116, %p117
    %p120 = scmp.ne.s32.totalorder %s105, %s119
    %p121 = scmp.eq.s32.totalorder %s18, 0
    %p122 = por %p120, %p121
    %s123 = ssub.s32 %s19, %s31
    %s124 = ssub.s32 %s20, %s27
    %s125 = sor.u32 %s123, %s124
    %p126 = scmp.eq.s32.totalorder %s125, 0
    %s128 = sadd.s32 %s127, 1
    %s129 = scalar_select %p126, %s127, %s128
    %p132 = pneg %p126
    %p133 = scmp.eq.s32.totalorder %s12, 3
    %p134 = por %p132, %p133
    %p135 = scmp.ne.s32.totalorder %s127, %s130
    %p136 = scmp.eq.s32.totalorder %s12, 0
    %p137 = por %p135, %p136
    %p138 = scmp.ne.s32.totalorder %s127, %s130
    %p139 = scmp.eq.s32.totalorder %s17, 3
    %p140 = por %p138, %p139
    %p141 = scmp.ne.s32.totalorder %s130, %s131
    %p142 = scmp.eq.s32.totalorder %s17, 0
    %p143 = por %p141, %p142
    %p144 = scmp.ne.s32.totalorder %s130, %s131
    %p145 = scmp.eq.s32.totalorder %s18, 3
    %p146 = por %p144, %p145
    %p148 = scmp.ne.s32.totalorder %s131, %s147
    %p149 = scmp.eq.s32.totalorder %s18, 0
    %p150 = por %p148, %p149
    %s151 = ssub.s32 %s19, %s31
    %s152 = ssub.s32 %s20, %s27
    %s153 = sor.u32 %s151, %s152
    %p154 = scmp.eq.s32.totalorder %s153, 0
    %s156 = sadd.s32 %s155, 1
    %s157 = scalar_select %p154, %s155, %s156
    %p160 = pneg %p154
    %p161 = scmp.eq.s32.totalorder %s12, 3
    %p162 = por %p160, %p161
    %p163 = scmp.ne.s32.totalorder %s155, %s158
    %p164 = scmp.eq.s32.totalorder %s12, 0
    %p165 = por %p163, %p164
    %p166 = scmp.ne.s32.totalorder %s155, %s158
    %p167 = scmp.eq.s32.totalorder %s17, 3
    %p168 = por %p166, %p167
    %p169 = scmp.ne.s32.totalorder %s158, %s159
    %p170 = scmp.eq.s32.totalorder %s17, 0
    %p171 = por %p169, %p170
    %p172 = scmp.ne.s32.totalorder %s158, %s159
    %p173 = scmp.eq.s32.totalorder %s18, 3
    %p174 = por %p172, %p173
    %p176 = scmp.ne.s32.totalorder %s159, %s175
    %p177 = scmp.eq.s32.totalorder %s18, 0
    %p178 = por %p176, %p177
    %p179 = scmp.le.s32.totalorder 1, %s12
    %p180 = scmp.lt.s32.totalorder %s12, 5
    %p181 = pnand %p179, %p180
    %p182 = pneg %p181
    // Predicated region
    $region9: #{bottleneck_forward.6} parent=5 // pred_check
      _
    $region10: #{bottleneck_forward.6} parent=5 // pred_check_branch
      %184 = sbr.rel (%p181) target = $region12
    $region11: #{bottleneck_forward.6} parent=5 // pred_region
      %s185 = ssub.s32 %s12, 1
      // Predicated region
      $region13: #{bottleneck_forward.6} parent=11 // pred_check
        %p186 = pneg %p45
      $region14: #{bottleneck_forward.6} parent=11 // pred_check_branch
        %188 = sbr.rel (%p186) target = $region16
      $region15: #{bottleneck_forward.6} parent=11 // pred_region
        _
      $region16: #{bottleneck_forward.6} parent=11 // pred_fallthru
        _
      // Predicated region
      $region17: #{bottleneck_forward.6} parent=11 // pred_check
        %p189 = pneg %p66
      $region18: #{bottleneck_forward.6} parent=11 // pred_check_branch
        %191 = sbr.rel (%p189) target = $region20
      $region19: #{bottleneck_forward.6} parent=11 // pred_region
        _
      $region20: #{bottleneck_forward.6} parent=11 // pred_fallthru
        _
      // Predicated region
      $region21: #{bottleneck_forward.6} parent=11 // pred_check
        %p192 = pneg %p115
      $region22: #{bottleneck_forward.6} parent=11 // pred_check_branch
        %194 = sbr.rel (%p192) target = $region24
      $region23: #{bottleneck_forward.6} parent=11 // pred_region
        _
      $region24: #{bottleneck_forward.6} parent=11 // pred_fallthru
        _
    $region12: #{bottleneck_forward.6} parent=5 // pred_fallthru
      _
    %p195 = scmp.lt.s32.totalorder %s12, 4
    // Predicated region
    $region25: #{bottleneck_forward.6} parent=5 // pred_check
      %p196 = pneg %p195
    $region26: #{bottleneck_forward.6} parent=5 // pred_check_branch
      %198 = sbr.rel (%p196) target = $region28
    $region27: #{bottleneck_forward.6} parent=5 // pred_region
      // Predicated region
      $region29: #{bottleneck_forward.6} parent=27 // pred_check
        %p199 = pneg %p88
      $region30: #{bottleneck_forward.6} parent=27 // pred_check_branch
        %201 = sbr.rel (%p199) target = $region32
      $region31: #{bottleneck_forward.6} parent=27 // pred_region
        %s202 = smul.u32 8, %s20
        %p203 = scmp.lt.s32.totalorder %s19, 1
        %s204 = scalar_select %p203, %s19, 1
        %p205 = scmp.lt.s32.totalorder %s202, 15
        %s206 = scalar_select %p205, %s202, 15
        %s207 = smul.addr %s206, 2
        %s208 = smul.addr %s204, 32
        %s209 = sadd.s32 %s207, %s208
        %s210 = smul.addr %s209, 8
        %s211 = scalar_lea.vmem %s2, %s210
        %s212 = smul.u32 8, %s20
      $region32: #{bottleneck_forward.6} parent=27 // pred_fallthru
        _
    $region28: #{bottleneck_forward.6} parent=5 // pred_fallthru
      _
    %p213 = scmp.le.s32.totalorder 1, %s12
    %p214 = scmp.lt.s32.totalorder %s12, 5
    %p215 = pnand %p213, %p214
    %p216 = pneg %p215
    // Predicated region
    $region33: #{bottleneck_forward.6} parent=5 // pred_check
      _
    $region34: #{bottleneck_forward.6} parent=5 // pred_check_branch
      %218 = sbr.rel (%p215) target = $region36
    $region35: #{bottleneck_forward.6} parent=5 // pred_region
      %s219 = ssub.s32 %s12, 1
      %p220 = pneg %p45
      %p221 = pneg %p42
      %p222 = pneg %p66
      %p223 = pneg %p63
      %s224 = smul.u32 8, %s22
      %p225 = scmp.lt.s32.totalorder %s21, 1
      %s226 = scalar_select %p225, %s21, 1
      %p227 = scmp.lt.s32.totalorder %s224, 15
      %s228 = scalar_select %p227, %s224, 15
      %s229 = smul.addr %s228, 2
      %s230 = smul.addr %s226, 32
      %s231 = sadd.s32 %s229, %s230
      %s232 = smul.addr %s231, 8
      %s233 = scalar_lea.vmem %s2, %s232
      %p234 = pneg %p94
      %p235 = pneg %p91
      %p236 = pneg %p115
      %p237 = pneg %p112
      %p238 = pneg %p143
      %p239 = pneg %p140
      %s240 = smul.u32 8, %s22
      %p241 = scmp.lt.s32.totalorder %s21, 1
      %s242 = scalar_select %p241, %s21, 1
      %p243 = scmp.lt.s32.totalorder %s240, 15
      %s244 = scalar_select %p243, %s240, 15
      %s245 = smul.addr %s244, 2
      %s246 = smul.addr %s242, 32
      %s247 = sadd.s32 %s245, %s246
      %s248 = smul.addr %s247, 8
      %s249 = scalar_lea.vmem %s4, %s248
      %p250 = pneg %p171
      %p251 = pneg %p168
      %p252 = scmp.lt.s32.totalorder %s21, 1
      %s253 = scalar_select %p252, %s21, 1
      %p254 = scmp.lt.s32.totalorder %s22, 1
      %s255 = scalar_select %p254, %s22, 1
      %s256 = smul.addr %s253, 2
      %s257 = sadd.s32 %s255, %s256
      %s258 = smul.addr %s257, 2
      %s259 = scalar_lea.vmem %s5, %s258
      %s260 = smul.u32 8, %s22
      %p261 = scmp.lt.s32.totalorder %s21, 1
      %s262 = scalar_select %p261, %s21, 1
      %p263 = scmp.lt.s32.totalorder %s260, 15
      %s264 = scalar_select %p263, %s260, 15
      %s265 = smul.addr %s264, 2
      %s266 = smul.addr %s262, 32
      %s267 = sadd.s32 %s265, %s266
      %s268 = smul.addr %s267, 8
      %s269 = scalar_lea.vmem %s2, %s268
      %s270 = smul.u32 8, %s22
      %s271 = smul.u32 8, %s22
      %p272 = scmp.lt.s32.totalorder %s21, 1
      %s273 = scalar_select %p272, %s21, 1
      %p274 = scmp.lt.s32.totalorder %s271, 15
      %s275 = scalar_select %p274, %s271, 15
      %s276 = smul.addr %s275, 2
      %s277 = smul.addr %s273, 32
      %s278 = sadd.s32 %s276, %s277
      %s279 = smul.addr %s278, 8
      %s280 = scalar_lea.vmem %s4, %s279
      %s281 = smul.u32 8, %s22
      %p282 = scmp.lt.s32.totalorder %s21, 1
      %s283 = scalar_select %p282, %s21, 1
      %p284 = scmp.lt.s32.totalorder %s22, 1
      %s285 = scalar_select %p284, %s22, 1
      %s286 = smul.addr %s283, 2
      %s287 = sadd.s32 %s285, %s286
      %s288 = smul.addr %s287, 2
      %s289 = scalar_lea.vmem %s5, %s288
      %v291 = vld [vmem:[%s269] sm:$0xff]
      %v292 = vld [vmem:[%s269 + $0x8] sm:$0xff]
      %v293 = vld [vmem:[%s269 + $0x10] sm:$0xff]
      %v294 = vld [vmem:[%s269 + $0x18] sm:$0xff]
      %v295 = vld [vmem:[%s269 + $0x20] sm:$0xff]
      %v296 = vld [vmem:[%s269 + $0x28] sm:$0xff]
      %v297 = vld [vmem:[%s269 + $0x30] sm:$0xff]
      %v298 = vld [vmem:[%s269 + $0x38] sm:$0xff]
      %v299 = vld [vmem:[%s269 + $0x40] sm:$0xff]
      %v300 = vld [vmem:[%s269 + $0x48] sm:$0xff]
      %v301 = vld [vmem:[%s269 + $0x50] sm:$0xff]
      %v302 = vld [vmem:[%s269 + $0x58] sm:$0xff]
      %v303 = vld [vmem:[%s269 + $0x60] sm:$0xff]
      %v304 = vld [vmem:[%s269 + $0x68] sm:$0xff]
      %v305 = vld [vmem:[%s269 + $0x70] sm:$0xff]
      %v306 = vld [vmem:[%s269 + $0x78] sm:$0xff]
      %v307 = vld [vmem:[%s0] sm:$0x1]
      %v309 = vlaneseq
      %v310 = vshrl.u32 %v309, 7
      %v311 = vsub.s32 0, %v310
      %v312 = vrot.slane %v307, %v311
      %v314 = vmul.f32 %v291, %v312
      %v315 = vmul.f32 %v292, %v312
      %v316 = vmul.f32 %v293, %v312
      %v317 = vmul.f32 %v294, %v312
      %v318 = vmul.f32 %v295, %v312
      %v319 = vmul.f32 %v296, %v312
      %v320 = vmul.f32 %v297, %v312
      %v321 = vmul.f32 %v298, %v312
      %v322 = vmul.f32 %v299, %v312
      %v323 = vmul.f32 %v300, %v312
      %v324 = vmul.f32 %v301, %v312
      %v325 = vmul.f32 %v302, %v312
      %v326 = vmul.f32 %v303, %v312
      %v327 = vmul.f32 %v304, %v312
      %v328 = vmul.f32 %v305, %v312
      %v329 = vmul.f32 %v306, %v312
      %v330 = vld [vmem:[%s1] sm:$0x1]
      %v332 = vlaneseq
      %v333 = vshrl.u32 %v332, 7
      %v334 = vsub.s32 0, %v333
      %v335 = vrot.slane %v330, %v334
      %v337 = vadd.f32 %v314, %v335
      %v338 = vadd.f32 %v315, %v335
      %v339 = vadd.f32 %v316, %v335
      %v340 = vadd.f32 %v317, %v335
      %v341 = vadd.f32 %v318, %v335
      %v342 = vadd.f32 %v319, %v335
      %v343 = vadd.f32 %v320, %v335
      %v344 = vadd.f32 %v321, %v335
      %v345 = vadd.f32 %v322, %v335
      %v346 = vadd.f32 %v323, %v335
      %v347 = vadd.f32 %v324, %v335
      %v348 = vadd.f32 %v325, %v335
      %v349 = vadd.f32 %v326, %v335
      %v350 = vadd.f32 %v327, %v335
      %v351 = vadd.f32 %v328, %v335
      %v352 = vadd.f32 %v329, %v335
      %v353 = vmax.f32 %v337, 0.0
      %v354 = vmax.f32 %v338, 0.0
      %v355 = vmax.f32 %v339, 0.0
      %v356 = vmax.f32 %v340, 0.0
      %v357 = vmax.f32 %v341, 0.0
      %v358 = vmax.f32 %v342, 0.0
      %v359 = vmax.f32 %v343, 0.0
      %v360 = vmax.f32 %v344, 0.0
      %v361 = vmax.f32 %v345, 0.0
      %v362 = vmax.f32 %v346, 0.0
      %v363 = vmax.f32 %v347, 0.0
      %v364 = vmax.f32 %v348, 0.0
      %v365 = vmax.f32 %v349, 0.0
      %v366 = vmax.f32 %v350, 0.0
      %v367 = vmax.f32 %v351, 0.0
      %v368 = vmax.f32 %v352, 0.0
      %v369 = vpack.c.bf16 %v354, %v353
      %v370 = vpack.c.bf16 %v356, %v355
      %v371 = vpack.c.bf16 %v358, %v357
      %v372 = vpack.c.bf16 %v360, %v359
      %v373 = vpack.c.bf16 %v362, %v361
      %v374 = vpack.c.bf16 %v364, %v363
      %v375 = vpack.c.bf16 %v366, %v365
      %v376 = vpack.c.bf16 %v368, %v367
      %v377 = vld [vmem:[%s3] sm:$0xf]
      %v378 = vld [vmem:[%s3 + $0x4] sm:$0xf]
      %v379 = vld [vmem:[%s3 + $0x8] sm:$0xf]
      %v380 = vld [vmem:[%s3 + $0xc] sm:$0xf]
      %v385 = vunpack.c.l.b16 %v377
      %v386 = vunpack.c.l.b16 %v378
      %v387 = vunpack.c.l.b16 %v379
      %v388 = vunpack.c.l.b16 %v380
      %v389 = vpack.c.b16 %v386, %v385
      %v390 = vpack.c.b16 %v388, %v387
      %vm393 = vcmask 261120
      %v395 = vsel %vm393, %v369, 0
      %v398 = vsel %vm393, %v370, 0
      %v401 = vsel %vm393, %v371, 0
      %v404 = vsel %vm393, %v372, 0
      %v407 = vsel %vm393, %v373, 0
      %v410 = vsel %vm393, %v374, 0
      %v413 = vsel %vm393, %v375, 0
      %v416 = vsel %vm393, %v376, 0
      %418 = vmatprep.subr.bf16.mxu0 0
      %419 = vmatpush1.bf16.msra.mxu0 0
      %420 = vmatprep.subr.bf16.mxu0 0
      %421 = vmatpush1.bf16.msra.mxu0 0
      %422 = vmatprep.subr.bf16.mxu0 0
      %423 = vmatpush1.bf16.msra.mxu0 0
      %424 = vmatprep.subr.bf16.mxu0 0
      %425 = vmatpush1.bf16.msra.mxu0 0
      %426 = vmatprep.subr.bf16.mxu0 0
      %427 = vmatpush1.bf16.msra.mxu0 0
      %428 = vmatprep.subr.bf16.mxu0 0
      %429 = vmatpush1.bf16.msra.mxu0 0
      %430 = vmatprep.subr.bf16.mxu0 0
      %431 = vmatpush1.bf16.msra.mxu0 %v390
      %432 = vmatprep.subr.bf16.mxu0 0
      %433 = vmatpush1.bf16.msra.mxu0 %v389
      %434 = vmatprep.subr.bf16.mxu0 0
      %435 = vmatpush2.bf16.msra.mxu0 0
      %436 = vmatprep.subr.bf16.mxu0 0
      %437 = vmatpush2.bf16.msra.mxu0 0
      %438 = vmatprep.subr.bf16.mxu0 0
      %439 = vmatpush2.bf16.msra.mxu0 0
      %440 = vmatprep.subr.bf16.mxu0 0
      %441 = vmatpush2.bf16.msra.mxu0 0
      %442 = vmatprep.subr.bf16.mxu0 0
      %443 = vmatpush2.bf16.msra.mxu0 0
      %444 = vmatprep.subr.bf16.mxu0 0
      %445 = vmatpush2.bf16.msra.mxu0 0
      %446 = vmatprep.subr.bf16.mxu0 0
      %447 = vmatpush2.bf16.msra.mxu0 0
      %448 = vmatprep.subr.bf16.mxu0 0
      %449 = vmatpush2.bf16.msra.mxu0 0
      %450 = vmatprep.mubr.bf16.mxu0 0
      %451 = vmatmul.mubr.bf16.gmra.mxu0 %v395
      %v452 = vpop.f32.mrf.mxu0
      %v453 = vadd.f32 0.0, %v452
      %v454 = vpop.f32.mrf.mxu0
      %v455 = vpop.f32.mrf.mxu0
      %v456 = vadd.f32 0.0, %v455
      %v457 = vpop.f32.mrf.mxu0
      %458 = vmatprep.mubr.bf16.mxu0 0
      %459 = vmatmul.mubr.bf16.gmra.mxu0 %v398
      %v460 = vpop.f32.mrf.mxu0
      %v461 = vadd.f32 0.0, %v460
      %v462 = vpop.f32.mrf.mxu0
      %v463 = vpop.f32.mrf.mxu0
      %v464 = vadd.f32 0.0, %v463
      %v465 = vpop.f32.mrf.mxu0
      %466 = vmatprep.mubr.bf16.mxu0 0
      %467 = vmatmul.mubr.bf16.gmra.mxu0 %v401
      %v468 = vpop.f32.mrf.mxu0
      %v469 = vadd.f32 0.0, %v468
      %v470 = vpop.f32.mrf.mxu0
      %v471 = vpop.f32.mrf.mxu0
      %v472 = vadd.f32 0.0, %v471
      %v473 = vpop.f32.mrf.mxu0
      %474 = vmatprep.mubr.bf16.mxu0 0
      %475 = vmatmul.mubr.bf16.gmra.mxu0 %v404
      %v476 = vpop.f32.mrf.mxu0
      %v477 = vadd.f32 0.0, %v476
      %v478 = vpop.f32.mrf.mxu0
      %v479 = vpop.f32.mrf.mxu0
      %v480 = vadd.f32 0.0, %v479
      %v481 = vpop.f32.mrf.mxu0
      %482 = vmatprep.mubr.bf16.mxu0 0
      %483 = vmatmul.mubr.bf16.gmra.mxu0 %v407
      %v484 = vpop.f32.mrf.mxu0
      %v485 = vadd.f32 0.0, %v484
      %v486 = vpop.f32.mrf.mxu0
      %v487 = vpop.f32.mrf.mxu0
      %v488 = vadd.f32 0.0, %v487
      %v489 = vpop.f32.mrf.mxu0
      %490 = vmatprep.mubr.bf16.mxu0 0
      %491 = vmatmul.mubr.bf16.gmra.mxu0 %v410
      %v492 = vpop.f32.mrf.mxu0
      %v493 = vadd.f32 0.0, %v492
      %v494 = vpop.f32.mrf.mxu0
      %v495 = vpop.f32.mrf.mxu0
      %v496 = vadd.f32 0.0, %v495
      %v497 = vpop.f32.mrf.mxu0
      %498 = vmatprep.mubr.bf16.mxu0 0
      %499 = vmatmul.mubr.bf16.gmra.mxu0 %v413
      %v500 = vpop.f32.mrf.mxu0
      %v501 = vadd.f32 0.0, %v500
      %v502 = vpop.f32.mrf.mxu0
      %v503 = vpop.f32.mrf.mxu0
      %v504 = vadd.f32 0.0, %v503
      %v505 = vpop.f32.mrf.mxu0
      %506 = vmatprep.mubr.bf16.mxu0 0
      %507 = vmatmul.mubr.bf16.gmra.mxu0 %v416
      %v508 = vpop.f32.mrf.mxu0
      %v509 = vadd.f32 0.0, %v508
      %v510 = vpop.f32.mrf.mxu0
      %v511 = vpop.f32.mrf.mxu0
      %v512 = vadd.f32 0.0, %v511
      %v513 = vpop.f32.mrf.mxu0
      %514 = vdwg.mxu0
      %515 = vst [vmem:[%s280] sm:$0xff] %v453
      %516 = vst [vmem:[%s280 + $0x8] sm:$0xff] %v456
      %517 = vst [vmem:[%s280 + $0x10] sm:$0xff] %v461
      %518 = vst [vmem:[%s280 + $0x18] sm:$0xff] %v464
      %519 = vst [vmem:[%s280 + $0x20] sm:$0xff] %v469
      %520 = vst [vmem:[%s280 + $0x28] sm:$0xff] %v472
      %521 = vst [vmem:[%s280 + $0x30] sm:$0xff] %v477
      %522 = vst [vmem:[%s280 + $0x38] sm:$0xff] %v480
      %523 = vst [vmem:[%s280 + $0x40] sm:$0xff] %v485
      %524 = vst [vmem:[%s280 + $0x48] sm:$0xff] %v488
      %525 = vst [vmem:[%s280 + $0x50] sm:$0xff] %v493
      %526 = vst [vmem:[%s280 + $0x58] sm:$0xff] %v496
      %527 = vst [vmem:[%s280 + $0x60] sm:$0xff] %v501
      %528 = vst [vmem:[%s280 + $0x68] sm:$0xff] %v504
      %529 = vst [vmem:[%s280 + $0x70] sm:$0xff] %v509
      %530 = vst [vmem:[%s280 + $0x78] sm:$0xff] %v512
      %v531 = vadd.f32 %v453, %v456
      %v532 = vadd.f32 %v531, %v461
      %v533 = vadd.f32 %v532, %v464
      %v534 = vadd.f32 %v533, %v469
      %v535 = vadd.f32 %v534, %v472
      %v536 = vadd.f32 %v535, %v477
      %v537 = vadd.f32 %v536, %v480
      %v538 = vadd.f32 %v537, %v485
      %v539 = vadd.f32 %v538, %v488
      %v540 = vadd.f32 %v539, %v493
      %v541 = vadd.f32 %v540, %v496
      %v542 = vadd.f32 %v541, %v501
      %v543 = vadd.f32 %v542, %v504
      %v544 = vadd.f32 %v543, %v509
      %v545 = vadd.f32 %v544, %v512
      %v546 = vrot.slane %v545, 4
      %v547 = vadd.f32 %v545, %v546
      %v548 = vrot.slane %v547, 2
      %v549 = vadd.f32 %v547, %v548
      %v550 = vrot.slane %v549, 1
      %v551 = vadd.f32 %v549, %v550
      %v552 = vmul.f32 %v453, %v453
      %v553 = vmul.f32 %v456, %v456
      %v554 = vmul.f32 %v461, %v461
      %v555 = vmul.f32 %v464, %v464
      %v556 = vmul.f32 %v469, %v469
      %v557 = vmul.f32 %v472, %v472
      %v558 = vmul.f32 %v477, %v477
      %v559 = vmul.f32 %v480, %v480
      %v560 = vmul.f32 %v485, %v485
      %v561 = vmul.f32 %v488, %v488
      %v562 = vmul.f32 %v493, %v493
      %v563 = vmul.f32 %v496, %v496
      %v564 = vmul.f32 %v501, %v501
      %v565 = vmul.f32 %v504, %v504
      %v566 = vmul.f32 %v509, %v509
      %v567 = vmul.f32 %v512, %v512
      %v568 = vadd.f32 %v552, %v553
      %v569 = vadd.f32 %v568, %v554
      %v570 = vadd.f32 %v569, %v555
      %v571 = vadd.f32 %v570, %v556
      %v572 = vadd.f32 %v571, %v557
      %v573 = vadd.f32 %v572, %v558
      %v574 = vadd.f32 %v573, %v559
      %v575 = vadd.f32 %v574, %v560
      %v576 = vadd.f32 %v575, %v561
      %v577 = vadd.f32 %v576, %v562
      %v578 = vadd.f32 %v577, %v563
      %v579 = vadd.f32 %v578, %v564
      %v580 = vadd.f32 %v579, %v565
      %v581 = vadd.f32 %v580, %v566
      %v582 = vadd.f32 %v581, %v567
      %v583 = vrot.slane %v582, 4
      %v584 = vadd.f32 %v582, %v583
      %v585 = vrot.slane %v584, 2
      %v586 = vadd.f32 %v584, %v585
      %v587 = vrot.slane %v586, 1
      %v588 = vadd.f32 %v586, %v587
      %vm589 = vcmask 1040384
      %v590 = vsel %vm589, %v551, %v588
      %591 = vst [vmem:[%s289] sm:$0x3] %v590
      %s592 = smul.u32 8, %s22
      %p593 = scmp.lt.s32.totalorder %s21, 1
      %s594 = scalar_select %p593, %s21, 1
      %p595 = scmp.lt.s32.totalorder %s592, 15
      %s596 = scalar_select %p595, %s592, 15
      %s597 = smul.addr %s596, 2
      %s598 = smul.addr %s594, 32
      %s599 = sadd.s32 %s597, %s598
      %s600 = smul.addr %s599, 8
      %s601 = scalar_lea.vmem %s4, %s600
      %p602 = scmp.lt.s32.totalorder %s21, 1
      %s603 = scalar_select %p602, %s21, 1
      %p604 = scmp.lt.s32.totalorder %s22, 1
      %s605 = scalar_select %p604, %s22, 1
      %s606 = smul.addr %s603, 2
      %s607 = sadd.s32 %s605, %s606
      %s608 = smul.addr %s607, 2
      %s609 = scalar_lea.vmem %s5, %s608
      // Predicated region
      $region37: #{bottleneck_forward.6} parent=35 // pred_check
        %p610 = pneg %p140
      $region38: #{bottleneck_forward.6} parent=35 // pred_check_branch
        %612 = sbr.rel (%p610) target = $region40
      $region39: #{bottleneck_forward.6} parent=35 // pred_region
        %s613 = smul.u32 8, %s22
      $region40: #{bottleneck_forward.6} parent=35 // pred_fallthru
        _
      // Predicated region
      $region41: #{bottleneck_forward.6} parent=35 // pred_check
        %p614 = pneg %p168
      $region42: #{bottleneck_forward.6} parent=35 // pred_check_branch
        %616 = sbr.rel (%p614) target = $region44
      $region43: #{bottleneck_forward.6} parent=35 // pred_region
        _
      $region44: #{bottleneck_forward.6} parent=35 // pred_fallthru
        _
    $region36: #{bottleneck_forward.6} parent=5 // pred_fallthru
      _
    %p617 = scmp.le.s32.totalorder 2, %s12
    // Predicated region
    $region45: #{bottleneck_forward.6} parent=5 // pred_check
      %p618 = pneg %p617
    $region46: #{bottleneck_forward.6} parent=5 // pred_check_branch
      %620 = sbr.rel (%p618) target = $region48
    $region47: #{bottleneck_forward.6} parent=5 // pred_region
      %s621 = ssub.s32 %s12, 2
      // Predicated region
      $region49: #{bottleneck_forward.6} parent=47 // pred_check
        %p622 = pneg %p146
      $region50: #{bottleneck_forward.6} parent=47 // pred_check_branch
        %624 = sbr.rel (%p622) target = $region52
      $region51: #{bottleneck_forward.6} parent=47 // pred_region
        %s625 = smul.u32 8, %s24
        %p626 = scmp.lt.s32.totalorder %s23, 1
        %s627 = scalar_select %p626, %s23, 1
        %p628 = scmp.lt.s32.totalorder %s625, 15
        %s629 = scalar_select %p628, %s625, 15
        %s630 = smul.addr %s629, 2
        %s631 = smul.addr %s627, 32
        %s632 = sadd.s32 %s630, %s631
        %s633 = smul.addr %s632, 8
        %s634 = scalar_lea.vmem %s4, %s633
      $region52: #{bottleneck_forward.6} parent=47 // pred_fallthru
        _
      // Predicated region
      $region53: #{bottleneck_forward.6} parent=47 // pred_check
        %p635 = pneg %p174
      $region54: #{bottleneck_forward.6} parent=47 // pred_check_branch
        %637 = sbr.rel (%p635) target = $region56
      $region55: #{bottleneck_forward.6} parent=47 // pred_region
        %p638 = scmp.lt.s32.totalorder %s23, 1
        %s639 = scalar_select %p638, %s23, 1
        %p640 = scmp.lt.s32.totalorder %s24, 1
        %s641 = scalar_select %p640, %s24, 1
        %s642 = smul.addr %s639, 2
        %s643 = sadd.s32 %s641, %s642
        %s644 = smul.addr %s643, 2
        %s645 = scalar_lea.vmem %s5, %s644
      $region56: #{bottleneck_forward.6} parent=47 // pred_fallthru
        _
    $region48: #{bottleneck_forward.6} parent=5 // pred_fallthru
      _
  $region6: #{bottleneck_forward.6} parent=0 // loop_footer
    %s16 = sadd.s32 1, %s12
  $region7: #{bottleneck_forward.6} parent=0 // loop_footer_branch
    %11 = sbr.rel target = $region3
  $region8: #{bottleneck_forward.6} parent=0 // loop_exit
    _

// kernel: bottleneck_forward.5
$region0: #{bottleneck_forward.5}
  #allocation0 [shape = 'u32[]', space=smem, size = 0x4, offset = 0x4, fixed_abs, tag = 'smem constant byte address 0x4 - core index']
  #allocation1 [shape = 'u32[144,128]{1,0:T(1,128)}', space=vmem, size = 0x12000, scoped, tag = 'internal scratch']
  %s0 = inlined_call_operand.vmem [shape: f32[1,32], index: 0, kind: input, shape index: {}]
  %s1 = inlined_call_operand.vmem [shape: f32[1,32], index: 1, kind: input, shape index: {}]
  %s2 = inlined_call_operand.vmem [shape: f32[2,16,16,32], index: 2, kind: input, shape index: {}]
  %s3 = inlined_call_operand.vmem [shape: bf16[288,32], index: 3, kind: input, shape index: {}]
  %s4 = inlined_call_operand.vmem [shape: f32[2,16,16,32], index: 4, kind: output, shape index: {0}]
  %s5 = inlined_call_operand.vmem [shape: f32[2,2,32], index: 5, kind: output, shape index: {1}]
  %6 = xla_tuple %s4, %s5
  %s7 = sld [smem:[#allocation0]]
  $region57: #{bottleneck_forward.5} parent=0
    _
  %s9 = ssub.s32 1, %s7
  %s10 = scalar_select 0, %s9, %s7
  loop: start=0, step=1, limit=4
  $region2: #{bottleneck_forward.5} parent=0 // loop_pre_header
    _
  $region3: #{bottleneck_forward.5} parent=0 // loop_header
    %s12 = sphi 0, %s16
    %p13 = scmp.ge.s32.totalorder %s12, 4
    %s20 = sphi 0, %s20
    %s22 = sphi 0, %s20
    %s23 = sphi 0, %s22
    %s37 = sphi 0, %s23
    %s41 = sphi 0, %s41
    %s43 = sphi 0, %s41
    %s44 = sphi 0, %s43
    %s58 = sphi 0, %s44
    %s64 = sphi 0, %s66
    %s67 = sphi 0, %s64
    %s68 = sphi 0, %s67
    %s84 = sphi 0, %s68
    %s88 = sphi 0, %s88
    %s90 = sphi 0, %s88
    %s91 = sphi 0, %s90
    %s105 = sphi 0, %s91
    %s111 = sphi 0, %s113
    %s114 = sphi 0, %s111
    %s115 = sphi 0, %s114
    %s131 = sphi 0, %s115
    %s137 = sphi 0, %s139
    %s140 = sphi 0, %s137
    %s141 = sphi 0, %s140
    %s157 = sphi 0, %s141
  $region4: #{bottleneck_forward.5} parent=0 // loop_header_branch
    %15 = sbr.rel (%p13) target = $region8
  $region5: #{bottleneck_forward.5} parent=0 // loop_body
    %s17 = ssub.s32 %s12, 1
    %s18 = ssub.s32 %s12, 2
    %s19 = sadd.s32 %s12, 1
    %s21 = sadd.s32 %s20, 1
    %p24 = scmp.eq.s32.totalorder %s12, 1
    %p25 = scmp.ne.s32.totalorder %s20, %s22
    %p26 = scmp.eq.s32.totalorder %s12, 0
    %p27 = por %p25, %p26
    %p28 = scmp.ne.s32.totalorder %s20, %s22
    %p29 = scmp.eq.s32.totalorder %s17, 1
    %p30 = por %p28, %p29
    %p31 = scmp.ne.s32.totalorder %s22, %s23
    %p32 = scmp.eq.s32.totalorder %s17, 0
    %p33 = por %p31, %p32
    %p34 = scmp.ne.s32.totalorder %s22, %s23
    %p35 = scmp.eq.s32.totalorder %s18, 1
    %p36 = por %p34, %p35
    %p38 = scmp.ne.s32.totalorder %s23, %s37
    %p39 = scmp.eq.s32.totalorder %s18, 0
    %p40 = por %p38, %p39
    %s42 = sadd.s32 %s41, 1
    %p45 = scmp.eq.s32.totalorder %s12, 1
    %p46 = scmp.ne.s32.totalorder %s41, %s43
    %p47 = scmp.eq.s32.totalorder %s12, 0
    %p48 = por %p46, %p47
    %p49 = scmp.ne.s32.totalorder %s41, %s43
    %p50 = scmp.eq.s32.totalorder %s17, 1
    %p51 = por %p49, %p50
    %p52 = scmp.ne.s32.totalorder %s43, %s44
    %p53 = scmp.eq.s32.totalorder %s17, 0
    %p54 = por %p52, %p53
    %p55 = scmp.ne.s32.totalorder %s43, %s44
    %p56 = scmp.eq.s32.totalorder %s18, 1
    %p57 = por %p55, %p56
    %p59 = scmp.ne.s32.totalorder %s44, %s58
    %p60 = scmp.eq.s32.totalorder %s18, 0
    %p61 = por %p59, %p60
    %s62 = ssub.s32 %s12, %s19
    %p63 = scmp.eq.s32.totalorder %s62, 0
    %s65 = sadd.s32 %s64, 1
    %s66 = scalar_select %p63, %s64, %s65
    %p69 = pneg %p63
    %p70 = scmp.eq.s32.totalorder %s12, 1
    %p71 = por %p69, %p70
    %p72 = scmp.ne.s32.totalorder %s64, %s67
    %p73 = scmp.eq.s32.totalorder %s12, 0
    %p74 = por %p72, %p73
    %p75 = scmp.ne.s32.totalorder %s64, %s67
    %p76 = scmp.eq.s32.totalorder %s17, 1
    %p77 = por %p75, %p76
    %p78 = scmp.ne.s32.totalorder %s67, %s68
    %p79 = scmp.eq.s32.totalorder %s17, 0
    %p80 = por %p78, %p79
    %p81 = scmp.ne.s32.totalorder %s67, %s68
    %p82 = scmp.eq.s32.totalorder %s18, 1
    %p83 = por %p81, %p82
    %p85 = scmp.ne.s32.totalorder %s68, %s84
    %p86 = scmp.eq.s32.totalorder %s18, 0
    %p87 = por %p85, %p86
    %s89 = sadd.s32 %s88, 1
    %p92 = scmp.eq.s32.totalorder %s12, 1
    %p93 = scmp.ne.s32.totalorder %s88, %s90
    %p94 = scmp.eq.s32.totalorder %s12, 0
    %p95 = por %p93, %p94
    %p96 = scmp.ne.s32.totalorder %s88, %s90
    %p97 = scmp.eq.s32.totalorder %s17, 1
    %p98 = por %p96, %p97
    %p99 = scmp.ne.s32.totalorder %s90, %s91
    %p100 = scmp.eq.s32.totalorder %s17, 0
    %p101 = por %p99, %p100
    %p102 = scmp.ne.s32.totalorder %s90, %s91
    %p103 = scmp.eq.s32.totalorder %s18, 1
    %p104 = por %p102, %p103
    %p106 = scmp.ne.s32.totalorder %s91, %s105
    %p107 = scmp.eq.s32.totalorder %s18, 0
    %p108 = por %p106, %p107
    %s109 = ssub.s32 %s12, %s19
    %p110 = scmp.eq.s32.totalorder %s109, 0
    %s112 = sadd.s32 %s111, 1
    %s113 = scalar_select %p110, %s111, %s112
    %p116 = pneg %p110
    %p117 = scmp.eq.s32.totalorder %s12, 1
    %p118 = por %p116, %p117
    %p119 = scmp.ne.s32.totalorder %s111, %s114
    %p120 = scmp.eq.s32.totalorder %s12, 0
    %p121 = por %p119, %p120
    %p122 = scmp.ne.s32.totalorder %s111, %s114
    %p123 = scmp.eq.s32.totalorder %s17, 1
    %p124 = por %p122, %p123
    %p125 = scmp.ne.s32.totalorder %s114, %s115
    %p126 = scmp.eq.s32.totalorder %s17, 0
    %p127 = por %p125, %p126
    %p128 = scmp.ne.s32.totalorder %s114, %s115
    %p129 = scmp.eq.s32.totalorder %s18, 1
    %p130 = por %p128, %p129
    %p132 = scmp.ne.s32.totalorder %s115, %s131
    %p133 = scmp.eq.s32.totalorder %s18, 0
    %p134 = por %p132, %p133
    %s135 = ssub.s32 %s12, %s19
    %p136 = scmp.eq.s32.totalorder %s135, 0
    %s138 = sadd.s32 %s137, 1
    %s139 = scalar_select %p136, %s137, %s138
    %p142 = pneg %p136
    %p143 = scmp.eq.s32.totalorder %s12, 1
    %p144 = por %p142, %p143
    %p145 = scmp.ne.s32.totalorder %s137, %s140
    %p146 = scmp.eq.s32.totalorder %s12, 0
    %p147 = por %p145, %p146
    %p148 = scmp.ne.s32.totalorder %s137, %s140
    %p149 = scmp.eq.s32.totalorder %s17, 1
    %p150 = por %p148, %p149
    %p151 = scmp.ne.s32.totalorder %s140, %s141
    %p152 = scmp.eq.s32.totalorder %s17, 0
    %p153 = por %p151, %p152
    %p154 = scmp.ne.s32.totalorder %s140, %s141
    %p155 = scmp.eq.s32.totalorder %s18, 1
    %p156 = por %p154, %p155
    %p158 = scmp.ne.s32.totalorder %s141, %s157
    %p159 = scmp.eq.s32.totalorder %s18, 0
    %p160 = por %p158, %p159
    %p161 = scmp.le.s32.totalorder 1, %s12
    %p162 = scmp.lt.s32.totalorder %s12, 3
    %p163 = pnand %p161, %p162
    %p164 = pneg %p163
    // Predicated region
    $region9: #{bottleneck_forward.5} parent=5 // pred_check
      _
    $region10: #{bottleneck_forward.5} parent=5 // pred_check_branch
      %166 = sbr.rel (%p163) target = $region12
    $region11: #{bottleneck_forward.5} parent=5 // pred_region
      %s167 = ssub.s32 %s12, 1
      // Predicated region
      $region13: #{bottleneck_forward.5} parent=11 // pred_check
        %p168 = pneg %p33
      $region14: #{bottleneck_forward.5} parent=11 // pred_check_branch
        %170 = sbr.rel (%p168) target = $region16
      $region15: #{bottleneck_forward.5} parent=11 // pred_region
        _
      $region16: #{bottleneck_forward.5} parent=11 // pred_fallthru
        _
      // Predicated region
      $region17: #{bottleneck_forward.5} parent=11 // pred_check
        %p171 = pneg %p54
      $region18: #{bottleneck_forward.5} parent=11 // pred_check_branch
        %173 = sbr.rel (%p171) target = $region20
      $region19: #{bottleneck_forward.5} parent=11 // pred_region
        _
      $region20: #{bottleneck_forward.5} parent=11 // pred_fallthru
        _
      // Predicated region
      $region21: #{bottleneck_forward.5} parent=11 // pred_check
        %p174 = pneg %p101
      $region22: #{bottleneck_forward.5} parent=11 // pred_check_branch
        %176 = sbr.rel (%p174) target = $region24
      $region23: #{bottleneck_forward.5} parent=11 // pred_region
        _
      $region24: #{bottleneck_forward.5} parent=11 // pred_fallthru
        _
    $region12: #{bottleneck_forward.5} parent=5 // pred_fallthru
      _
    %p177 = scmp.lt.s32.totalorder %s12, 2
    // Predicated region
    $region25: #{bottleneck_forward.5} parent=5 // pred_check
      %p178 = pneg %p177
    $region26: #{bottleneck_forward.5} parent=5 // pred_check_branch
      %180 = sbr.rel (%p178) target = $region28
    $region27: #{bottleneck_forward.5} parent=5 // pred_region
      // Predicated region
      $region29: #{bottleneck_forward.5} parent=27 // pred_check
        %p181 = pneg %p74
      $region30: #{bottleneck_forward.5} parent=27 // pred_check_branch
        %183 = sbr.rel (%p181) target = $region32
      $region31: #{bottleneck_forward.5} parent=27 // pred_region
        %p184 = scmp.lt.s32.totalorder %s12, 1
        %s185 = scalar_select %p184, %s12, 1
        %s186 = smul.addr %s185, 32
        %s187 = smul.addr %s186, 8
        %s188 = scalar_lea.vmem %s2, %s187
      $region32: #{bottleneck_forward.5} parent=27 // pred_fallthru
        _
    $region28: #{bottleneck_forward.5} parent=5 // pred_fallthru
      _
    %p189 = scmp.le.s32.totalorder 1, %s12
    %p190 = scmp.lt.s32.totalorder %s12, 3
    %p191 = pnand %p189, %p190
    %p192 = pneg %p191
    // Predicated region
    $region33: #{bottleneck_forward.5} parent=5 // pred_check
      _
    $region34: #{bottleneck_forward.5} parent=5 // pred_check_branch
      %194 = sbr.rel (%p191) target = $region36
    $region35: #{bottleneck_forward.5} parent=5 // pred_region
      %s195 = ssub.s32 %s12, 1
      %p196 = pneg %p33
      %p197 = pneg %p30
      %p198 = pneg %p54
      %p199 = pneg %p51
      %p200 = scmp.lt.s32.totalorder %s17, 1
      %s201 = scalar_select %p200, %s17, 1
      %s202 = smul.addr %s201, 32
      %s203 = smul.addr %s202, 8
      %s204 = scalar_lea.vmem %s2, %s203
      %p205 = pneg %p80
      %p206 = pneg %p77
      %p207 = pneg %p101
      %p208 = pneg %p98
      %p209 = pneg %p127
      %p210 = pneg %p124
      %p211 = scmp.lt.s32.totalorder %s17, 1
      %s212 = scalar_select %p211, %s17, 1
      %s213 = smul.addr %s212, 32
      %s214 = smul.addr %s213, 8
      %s215 = scalar_lea.vmem %s4, %s214
      %p216 = pneg %p153
      %p217 = pneg %p150
      %p218 = scmp.lt.s32.totalorder %s17, 1
      %s219 = scalar_select %p218, %s17, 1
      %s220 = smul.addr %s219, 2
      %s221 = scalar_lea.vmem %s5, %s220
      %p222 = scmp.lt.s32.totalorder %s17, 1
      %s223 = scalar_select %p222, %s17, 1
      %s224 = smul.addr %s223, 32
      %s225 = smul.addr %s224, 8
      %s226 = scalar_lea.vmem %s2, %s225
      %p227 = scmp.lt.s32.totalorder %s17, 1
      %s228 = scalar_select %p227, %s17, 1
      %s229 = smul.addr %s228, 32
      %s230 = smul.addr %s229, 8
      %s231 = scalar_lea.vmem %s4, %s230
      %p232 = scmp.lt.s32.totalorder %s17, 1
      %s233 = scalar_select %p232, %s17, 1
      %s234 = smul.addr %s233, 2
      %s235 = scalar_lea.vmem %s5, %s234
      %v237 = vld [vmem:[%s226] sm:$0xff]
      %v238 = vld [vmem:[%s226 + $0x8] sm:$0xff]
      %v239 = vld [vmem:[%s226 + $0x10] sm:$0xff]
      %v240 = vld [vmem:[%s226 + $0x18] sm:$0xff]
      %v241 = vld [vmem:[%s226 + $0x20] sm:$0xff]
      %v242 = vld [vmem:[%s226 + $0x28] sm:$0xff]
      %v243 = vld [vmem:[%s226 + $0x30] sm:$0xff]
      %v244 = vld [vmem:[%s226 + $0x38] sm:$0xff]
      %v245 = vld [vmem:[%s226 + $0x40] sm:$0xff]
      %v246 = vld [vmem:[%s226 + $0x48] sm:$0xff]
      %v247 = vld [vmem:[%s226 + $0x50] sm:$0xff]
      %v248 = vld [vmem:[%s226 + $0x58] sm:$0xff]
      %v249 = vld [vmem:[%s226 + $0x60] sm:$0xff]
      %v250 = vld [vmem:[%s226 + $0x68] sm:$0xff]
      %v251 = vld [vmem:[%s226 + $0x70] sm:$0xff]
      %v252 = vld [vmem:[%s226 + $0x78] sm:$0xff]
      %v253 = vld [vmem:[%s226 + $0x80] sm:$0xff]
      %v254 = vld [vmem:[%s226 + $0x88] sm:$0xff]
      %v255 = vld [vmem:[%s226 + $0x90] sm:$0xff]
      %v256 = vld [vmem:[%s226 + $0x98] sm:$0xff]
      %v257 = vld [vmem:[%s226 + $0xa0] sm:$0xff]
      %v258 = vld [vmem:[%s226 + $0xa8] sm:$0xff]
      %v259 = vld [vmem:[%s226 + $0xb0] sm:$0xff]
      %v260 = vld [vmem:[%s226 + $0xb8] sm:$0xff]
      %v261 = vld [vmem:[%s226 + $0xc0] sm:$0xff]
      %v262 = vld [vmem:[%s226 + $0xc8] sm:$0xff]
      %v263 = vld [vmem:[%s226 + $0xd0] sm:$0xff]
      %v264 = vld [vmem:[%s226 + $0xd8] sm:$0xff]
      %v265 = vld [vmem:[%s226 + $0xe0] sm:$0xff]
      %v266 = vld [vmem:[%s226 + $0xe8] sm:$0xff]
      %v267 = vld [vmem:[%s226 + $0xf0] sm:$0xff]
      %v268 = vld [vmem:[%s226 + $0xf8] sm:$0xff]
      %v269 = vld [vmem:[%s0] sm:$0x1]
      %v271 = vlaneseq
      %v272 = vshrl.u32 %v271, 7
      %v273 = vsub.s32 0, %v272
      %v274 = vrot.slane %v269, %v273
      %v276 = vmul.f32 %v237, %v274
      %v277 = vmul.f32 %v238, %v274
      %v278 = vmul.f32 %v239, %v274
      %v279 = vmul.f32 %v240, %v274
      %v280 = vmul.f32 %v241, %v274
      %v281 = vmul.f32 %v242, %v274
      %v282 = vmul.f32 %v243, %v274
      %v283 = vmul.f32 %v244, %v274
      %v284 = vmul.f32 %v245, %v274
      %v285 = vmul.f32 %v246, %v274
      %v286 = vmul.f32 %v247, %v274
      %v287 = vmul.f32 %v248, %v274
      %v288 = vmul.f32 %v249, %v274
      %v289 = vmul.f32 %v250, %v274
      %v290 = vmul.f32 %v251, %v274
      %v291 = vmul.f32 %v252, %v274
      %v292 = vmul.f32 %v253, %v274
      %v293 = vmul.f32 %v254, %v274
      %v294 = vmul.f32 %v255, %v274
      %v295 = vmul.f32 %v256, %v274
      %v296 = vmul.f32 %v257, %v274
      %v297 = vmul.f32 %v258, %v274
      %v298 = vmul.f32 %v259, %v274
      %v299 = vmul.f32 %v260, %v274
      %v300 = vmul.f32 %v261, %v274
      %v301 = vmul.f32 %v262, %v274
      %v302 = vmul.f32 %v263, %v274
      %v303 = vmul.f32 %v264, %v274
      %v304 = vmul.f32 %v265, %v274
      %v305 = vmul.f32 %v266, %v274
      %v306 = vmul.f32 %v267, %v274
      %v307 = vmul.f32 %v268, %v274
      %v308 = vld [vmem:[%s1] sm:$0x1]
      %v310 = vlaneseq
      %v311 = vshrl.u32 %v310, 7
      %v312 = vsub.s32 0, %v311
      %v313 = vrot.slane %v308, %v312
      %v315 = vadd.f32 %v276, %v313
      %v316 = vadd.f32 %v277, %v313
      %v317 = vadd.f32 %v278, %v313
      %v318 = vadd.f32 %v279, %v313
      %v319 = vadd.f32 %v280, %v313
      %v320 = vadd.f32 %v281, %v313
      %v321 = vadd.f32 %v282, %v313
      %v322 = vadd.f32 %v283, %v313
      %v323 = vadd.f32 %v284, %v313
      %v324 = vadd.f32 %v285, %v313
      %v325 = vadd.f32 %v286, %v313
      %v326 = vadd.f32 %v287, %v313
      %v327 = vadd.f32 %v288, %v313
      %v328 = vadd.f32 %v289, %v313
      %v329 = vadd.f32 %v290, %v313
      %v330 = vadd.f32 %v291, %v313
      %v331 = vadd.f32 %v292, %v313
      %v332 = vadd.f32 %v293, %v313
      %v333 = vadd.f32 %v294, %v313
      %v334 = vadd.f32 %v295, %v313
      %v335 = vadd.f32 %v296, %v313
      %v336 = vadd.f32 %v297, %v313
      %v337 = vadd.f32 %v298, %v313
      %v338 = vadd.f32 %v299, %v313
      %v339 = vadd.f32 %v300, %v313
      %v340 = vadd.f32 %v301, %v313
      %v341 = vadd.f32 %v302, %v313
      %v342 = vadd.f32 %v303, %v313
      %v343 = vadd.f32 %v304, %v313
      %v344 = vadd.f32 %v305, %v313
      %v345 = vadd.f32 %v306, %v313
      %v346 = vadd.f32 %v307, %v313
      %v347 = vmax.f32 %v315, 0.0
      %v348 = vmax.f32 %v316, 0.0
      %v349 = vmax.f32 %v317, 0.0
      %v350 = vmax.f32 %v318, 0.0
      %v351 = vmax.f32 %v319, 0.0
      %v352 = vmax.f32 %v320, 0.0
      %v353 = vmax.f32 %v321, 0.0
      %v354 = vmax.f32 %v322, 0.0
      %v355 = vmax.f32 %v323, 0.0
      %v356 = vmax.f32 %v324, 0.0
      %v357 = vmax.f32 %v325, 0.0
      %v358 = vmax.f32 %v326, 0.0
      %v359 = vmax.f32 %v327, 0.0
      %v360 = vmax.f32 %v328, 0.0
      %v361 = vmax.f32 %v329, 0.0
      %v362 = vmax.f32 %v330, 0.0
      %v363 = vmax.f32 %v331, 0.0
      %v364 = vmax.f32 %v332, 0.0
      %v365 = vmax.f32 %v333, 0.0
      %v366 = vmax.f32 %v334, 0.0
      %v367 = vmax.f32 %v335, 0.0
      %v368 = vmax.f32 %v336, 0.0
      %v369 = vmax.f32 %v337, 0.0
      %v370 = vmax.f32 %v338, 0.0
      %v371 = vmax.f32 %v339, 0.0
      %v372 = vmax.f32 %v340, 0.0
      %v373 = vmax.f32 %v341, 0.0
      %v374 = vmax.f32 %v342, 0.0
      %v375 = vmax.f32 %v343, 0.0
      %v376 = vmax.f32 %v344, 0.0
      %v377 = vmax.f32 %v345, 0.0
      %v378 = vmax.f32 %v346, 0.0
      %v379 = vlaneseq
      %v380 = vshrl.u32 %v379, 7
      %v381 = vadd.s32 %v380, 8
      %v382 = vrot.slane %v347, 7
      %v383 = vrot.slane %v349, 7
      %v384 = vrot.slane %v351, 7
      %v385 = vrot.slane %v353, 7
      %v386 = vrot.slane %v355, 7
      %v387 = vrot.slane %v357, 7
      %v388 = vrot.slane %v359, 7
      %v389 = vrot.slane %v361, 7
      %v390 = vrot.slane %v363, 7
      %v391 = vrot.slane %v365, 7
      %v392 = vrot.slane %v367, 7
      %v393 = vrot.slane %v369, 7
      %v394 = vrot.slane %v371, 7
      %v395 = vrot.slane %v373, 7
      %v396 = vrot.slane %v375, 7
      %v397 = vrot.slane %v348, 7
      %v398 = vrot.slane %v350, 7
      %v399 = vrot.slane %v352, 7
      %v400 = vrot.slane %v354, 7
      %v401 = vrot.slane %v356, 7
      %v402 = vrot.slane %v358, 7
      %v403 = vrot.slane %v360, 7
      %v404 = vrot.slane %v362, 7
      %v405 = vrot.slane %v364, 7
      %v406 = vrot.slane %v366, 7
      %v407 = vrot.slane %v368, 7
      %v408 = vrot.slane %v370, 7
      %v409 = vrot.slane %v372, 7
      %v410 = vrot.slane %v374, 7
      %v411 = vrot.slane %v376, 7
      %vm412 = vcmp.lt.s32.totalorder %v380, 1
      %v413 = vsel %vm412, %v382, %v397
      %v414 = vsel %vm412, %v383, %v398
      %v415 = vsel %vm412, %v384, %v399
      %v416 = vsel %vm412, %v385, %v400
      %v417 = vsel %vm412, %v386, %v401
      %v418 = vsel %vm412, %v387, %v402
      %v419 = vsel %vm412, %v388, %v403
      %v420 = vsel %vm412, %v389, %v404
      %v421 = vsel %vm412, %v390, %v405
      %v422 = vsel %vm412, %v391, %v406
      %v423 = vsel %vm412, %v392, %v407
      %v424 = vsel %vm412, %v393, %v408
      %v425 = vsel %vm412, %v394, %v409
      %v426 = vsel %vm412, %v395, %v410
      %v427 = vsel %vm412, %v396, %v411
      %v428 = vsel %vm412, %v397, %v382
      %v429 = vsel %vm412, %v398, %v383
      %v430 = vsel %vm412, %v399, %v384
      %v431 = vsel %vm412, %v400, %v385
      %v432 = vsel %vm412, %v401, %v386
      %v433 = vsel %vm412, %v402, %v387
      %v434 = vsel %vm412, %v403, %v388
      %v435 = vsel %vm412, %v404, %v389
      %v436 = vsel %vm412, %v405, %v390
      %v437 = vsel %vm412, %v406, %v391
      %v438 = vsel %vm412, %v407, %v392
      %v439 = vsel %vm412, %v408, %v393
      %v440 = vsel %vm412, %v409, %v394
      %v441 = vsel %vm412, %v410, %v395
      %v442 = vsel %vm412, %v411, %v396
      %vm443 = vcmp.eq.s32.totalorder %v380, 0
      %vm444 = vcmp.eq.s32.totalorder %v381, 0
      %v445 = vsel %vm443, 0.0, 0.0
      %v446 = vsel %vm444, 0.0, 0.0
      %v447 = vsel %vm443, 0.0, %v428
      %v448 = vsel %vm444, 0.0, %v413
      %v449 = vsel %vm443, 0.0, %v429
      %v450 = vsel %vm444, 0.0, %v414
      %v451 = vsel %vm443, 0.0, %v430
      %v452 = vsel %vm444, 0.0, %v415
      %v453 = vsel %vm443, 0.0, %v431
      %v454 = vsel %vm444, 0.0, %v416
      %v455 = vsel %vm443, 0.0, %v432
      %v456 = vsel %vm444, 0.0, %v417
      %v457 = vsel %vm443, 0.0, %v433
      %v458 = vsel %vm444, 0.0, %v418
      %v459 = vsel %vm443, 0.0, %v434
      %v460 = vsel %vm444, 0.0, %v419
      %v461 = vsel %vm443, 0.0, %v435
      %v462 = vsel %vm444, 0.0, %v420
      %v463 = vsel %vm443, 0.0, %v436
      %v464 = vsel %vm444, 0.0, %v421
      %v465 = vsel %vm443, 0.0, %v437
      %v466 = vsel %vm444, 0.0, %v422
      %v467 = vsel %vm443, 0.0, %v438
      %v468 = vsel %vm444, 0.0, %v423
      %v469 = vsel %vm443, 0.0, %v439
      %v470 = vsel %vm444, 0.0, %v424
      %v471 = vsel %vm443, 0.0, %v440
      %v472 = vsel %vm444, 0.0, %v425
      %v473 = vsel %vm443, 0.0, %v441
      %v474 = vsel %vm444, 0.0, %v426
      %v475 = vsel %vm443, 0.0, %v442
      %v476 = vsel %vm444, 0.0, %v427
      %v477 = vrot.slane %v347, 1
      %v478 = vrot.slane %v349, 1
      %v479 = vrot.slane %v351, 1
      %v480 = vrot.slane %v353, 1
      %v481 = vrot.slane %v355, 1
      %v482 = vrot.slane %v357, 1
      %v483 = vrot.slane %v359, 1
      %v484 = vrot.slane %v361, 1
      %v485 = vrot.slane %v363, 1
      %v486 = vrot.slane %v365, 1
      %v487 = vrot.slane %v367, 1
      %v488 = vrot.slane %v369, 1
      %v489 = vrot.slane %v371, 1
      %v490 = vrot.slane %v373, 1
      %v491 = vrot.slane %v375, 1
      %v492 = vrot.slane %v348, 1
      %v493 = vrot.slane %v350, 1
      %v494 = vrot.slane %v352, 1
      %v495 = vrot.slane %v354, 1
      %v496 = vrot.slane %v356, 1
      %v497 = vrot.slane %v358, 1
      %v498 = vrot.slane %v360, 1
      %v499 = vrot.slane %v362, 1
      %v500 = vrot.slane %v364, 1
      %v501 = vrot.slane %v366, 1
      %v502 = vrot.slane %v368, 1
      %v503 = vrot.slane %v370, 1
      %v504 = vrot.slane %v372, 1
      %v505 = vrot.slane %v374, 1
      %v506 = vrot.slane %v376, 1
      %vm507 = vcmp.lt.s32.totalorder %v380, 7
      %v508 = vsel %vm507, %v477, %v492
      %v509 = vsel %vm507, %v478, %v493
      %v510 = vsel %vm507, %v479, %v494
      %v511 = vsel %vm507, %v480, %v495
      %v512 = vsel %vm507, %v481, %v496
      %v513 = vsel %vm507, %v482, %v497
      %v514 = vsel %vm507, %v483, %v498
      %v515 = vsel %vm507, %v484, %v499
      %v516 = vsel %vm507, %v485, %v500
      %v517 = vsel %vm507, %v486, %v501
      %v518 = vsel %vm507, %v487, %v502
      %v519 = vsel %vm507, %v488, %v503
      %v520 = vsel %vm507, %v489, %v504
      %v521 = vsel %vm507, %v490, %v505
      %v522 = vsel %vm507, %v491, %v506
      %v523 = vsel %vm507, %v492, %v477
      %v524 = vsel %vm507, %v493, %v478
      %v525 = vsel %vm507, %v494, %v479
      %v526 = vsel %vm507, %v495, %v480
      %v527 = vsel %vm507, %v496, %v481
      %v528 = vsel %vm507, %v497, %v482
      %v529 = vsel %vm507, %v498, %v483
      %v530 = vsel %vm507, %v499, %v484
      %v531 = vsel %vm507, %v500, %v485
      %v532 = vsel %vm507, %v501, %v486
      %v533 = vsel %vm507, %v502, %v487
      %v534 = vsel %vm507, %v503, %v488
      %v535 = vsel %vm507, %v504, %v489
      %v536 = vsel %vm507, %v505, %v490
      %v537 = vsel %vm507, %v506, %v491
      %vm538 = vcmp.eq.s32.totalorder %v380, 15
      %vm539 = vcmp.eq.s32.totalorder %v381, 15
      %v540 = vsel %vm538, 0.0, 0.0
      %v541 = vsel %vm539, 0.0, 0.0
      %v542 = vsel %vm538, 0.0, %v508
      %v543 = vsel %vm539, 0.0, %v523
      %v544 = vsel %vm538, 0.0, %v509
      %v545 = vsel %vm539, 0.0, %v524
      %v546 = vsel %vm538, 0.0, %v510
      %v547 = vsel %vm539, 0.0, %v525
      %v548 = vsel %vm538, 0.0, %v511
      %v549 = vsel %vm539, 0.0, %v526
      %v550 = vsel %vm538, 0.0, %v512
      %v551 = vsel %vm539, 0.0, %v527
      %v552 = vsel %vm538, 0.0, %v513
      %v553 = vsel %vm539, 0.0, %v528
      %v554 = vsel %vm538, 0.0, %v514
      %v555 = vsel %vm539, 0.0, %v529
      %v556 = vsel %vm538, 0.0, %v515
      %v557 = vsel %vm539, 0.0, %v530
      %v558 = vsel %vm538, 0.0, %v516
      %v559 = vsel %vm539, 0.0, %v531
      %v560 = vsel %vm538, 0.0, %v517
      %v561 = vsel %vm539, 0.0, %v532
      %v562 = vsel %vm538, 0.0, %v518
      %v563 = vsel %vm539, 0.0, %v533
      %v564 = vsel %vm538, 0.0, %v519
      %v565 = vsel %vm539, 0.0, %v534
      %v566 = vsel %vm538, 0.0, %v520
      %v567 = vsel %vm539, 0.0, %v535
      %v568 = vsel %vm538, 0.0, %v521
      %v569 = vsel %vm539, 0.0, %v536
      %v570 = vsel %vm538, 0.0, %v522
      %v571 = vsel %vm539, 0.0, %v537
      %v572 = vrot.slane %v377, 7
      %v573 = vrot.slane %v378, 7
      %v574 = vsel %vm412, %v572, %v573
      %v575 = vsel %vm412, %v573, %v572
      %v576 = vsel %vm443, 0.0, %v575
      %v577 = vsel %vm444, 0.0, %v574
      %v578 = vrot.slane %v377, 1
      %v579 = vrot.slane %v378, 1
      %v580 = vsel %vm507, %v578, %v579
      %v581 = vsel %vm507, %v579, %v578
      %v582 = vsel %vm538, 0.0, %v580
      %v583 = vsel %vm539, 0.0, %v581
      %615 = vrot.lane.b32.xlu0 0.0, 32
      %v616 = vpop.permute.xlu0 %615
      %617 = vrot.lane.b32.xlu0 %v347, 32
      %v618 = vpop.permute.xlu0 %617
      %619 = vrot.lane.b32.xlu0 %v348, 32
      %v620 = vpop.permute.xlu0 %619
      %621 = vrot.lane.b32.xlu0 %v349, 32
      %v622 = vpop.permute.xlu0 %621
      %623 = vrot.lane.b32.xlu0 %v350, 32
      %v624 = vpop.permute.xlu0 %623
      %625 = vrot.lane.b32.xlu0 %v351, 32
      %v626 = vpop.permute.xlu0 %625
      %627 = vrot.lane.b32.xlu0 %v352, 32
      %v628 = vpop.permute.xlu0 %627
      %629 = vrot.lane.b32.xlu0 %v353, 32
      %v630 = vpop.permute.xlu0 %629
      %631 = vrot.lane.b32.xlu0 %v354, 32
      %v632 = vpop.permute.xlu0 %631
      %633 = vrot.lane.b32.xlu0 %v355, 32
      %v634 = vpop.permute.xlu0 %633
      %635 = vrot.lane.b32.xlu0 %v356, 32
      %v636 = vpop.permute.xlu0 %635
      %637 = vrot.lane.b32.xlu0 %v357, 32
      %v638 = vpop.permute.xlu0 %637
      %639 = vrot.lane.b32.xlu0 %v358, 32
      %v640 = vpop.permute.xlu0 %639
      %641 = vrot.lane.b32.xlu0 %v359, 32
      %v642 = vpop.permute.xlu0 %641
      %643 = vrot.lane.b32.xlu0 %v360, 32
      %v644 = vpop.permute.xlu0 %643
      %645 = vrot.lane.b32.xlu0 %v361, 32
      %v646 = vpop.permute.xlu0 %645
      %647 = vrot.lane.b32.xlu0 %v362, 32
      %v648 = vpop.permute.xlu0 %647
      %649 = vrot.lane.b32.xlu0 %v363, 32
      %v650 = vpop.permute.xlu0 %649
      %651 = vrot.lane.b32.xlu0 %v364, 32
      %v652 = vpop.permute.xlu0 %651
      %653 = vrot.lane.b32.xlu0 %v365, 32
      %v654 = vpop.permute.xlu0 %653
      %655 = vrot.lane.b32.xlu0 %v366, 32
      %v656 = vpop.permute.xlu0 %655
      %657 = vrot.lane.b32.xlu0 %v367, 32
      %v658 = vpop.permute.xlu0 %657
      %659 = vrot.lane.b32.xlu0 %v368, 32
      %v660 = vpop.permute.xlu0 %659
      %661 = vrot.lane.b32.xlu0 %v369, 32
      %v662 = vpop.permute.xlu0 %661
      %663 = vrot.lane.b32.xlu0 %v370, 32
      %v664 = vpop.permute.xlu0 %663
      %665 = vrot.lane.b32.xlu0 %v371, 32
      %v666 = vpop.permute.xlu0 %665
      %667 = vrot.lane.b32.xlu0 %v372, 32
      %v668 = vpop.permute.xlu0 %667
      %669 = vrot.lane.b32.xlu0 %v373, 32
      %v670 = vpop.permute.xlu0 %669
      %671 = vrot.lane.b32.xlu0 %v374, 32
      %v672 = vpop.permute.xlu0 %671
      %673 = vrot.lane.b32.xlu0 %v375, 32
      %v674 = vpop.permute.xlu0 %673
      %675 = vrot.lane.b32.xlu0 %v376, 32
      %v676 = vpop.permute.xlu0 %675
      %740 = vrot.lane.b32.xlu0 %v540, 64
      %v741 = vpop.permute.xlu0 %740
      %742 = vrot.lane.b32.xlu0 %v541, 64
      %v743 = vpop.permute.xlu0 %742
      %744 = vrot.lane.b32.xlu0 %v542, 64
      %v745 = vpop.permute.xlu0 %744
      %746 = vrot.lane.b32.xlu0 %v543, 64
      %v747 = vpop.permute.xlu0 %746
      %748 = vrot.lane.b32.xlu0 %v544, 64
      %v749 = vpop.permute.xlu0 %748
      %750 = vrot.lane.b32.xlu0 %v545, 64
      %v751 = vpop.permute.xlu0 %750
      %752 = vrot.lane.b32.xlu0 %v546, 64
      %v753 = vpop.permute.xlu0 %752
      %754 = vrot.lane.b32.xlu0 %v547, 64
      %v755 = vpop.permute.xlu0 %754
      %756 = vrot.lane.b32.xlu0 %v548, 64
      %v757 = vpop.permute.xlu0 %756
      %758 = vrot.lane.b32.xlu0 %v549, 64
      %v759 = vpop.permute.xlu0 %758
      %760 = vrot.lane.b32.xlu0 %v550, 64
      %v761 = vpop.permute.xlu0 %760
      %762 = vrot.lane.b32.xlu0 %v551, 64
      %v763 = vpop.permute.xlu0 %762
      %764 = vrot.lane.b32.xlu0 %v552, 64
      %v765 = vpop.permute.xlu0 %764
      %766 = vrot.lane.b32.xlu0 %v553, 64
      %v767 = vpop.permute.xlu0 %766
      %768 = vrot.lane.b32.xlu0 %v554, 64
      %v769 = vpop.permute.xlu0 %768
      %770 = vrot.lane.b32.xlu0 %v555, 64
      %v771 = vpop.permute.xlu0 %770
      %772 = vrot.lane.b32.xlu0 %v556, 64
      %v773 = vpop.permute.xlu0 %772
      %774 = vrot.lane.b32.xlu0 %v557, 64
      %v775 = vpop.permute.xlu0 %774
      %776 = vrot.lane.b32.xlu0 %v558, 64
      %v777 = vpop.permute.xlu0 %776
      %778 = vrot.lane.b32.xlu0 %v559, 64
      %v779 = vpop.permute.xlu0 %778
      %780 = vrot.lane.b32.xlu0 %v560, 64
      %v781 = vpop.permute.xlu0 %780
      %782 = vrot.lane.b32.xlu0 %v561, 64
      %v783 = vpop.permute.xlu0 %782
      %784 = vrot.lane.b32.xlu0 %v562, 64
      %v785 = vpop.permute.xlu0 %784
      %786 = vrot.lane.b32.xlu0 %v563, 64
      %v787 = vpop.permute.xlu0 %786
      %788 = vrot.lane.b32.xlu0 %v564, 64
      %v789 = vpop.permute.xlu0 %788
      %790 = vrot.lane.b32.xlu0 %v565, 64
      %v791 = vpop.permute.xlu0 %790
      %792 = vrot.lane.b32.xlu0 %v566, 64
      %v793 = vpop.permute.xlu0 %792
      %794 = vrot.lane.b32.xlu0 %v567, 64
      %v795 = vpop.permute.xlu0 %794
      %796 = vrot.lane.b32.xlu0 %v568, 64
      %v797 = vpop.permute.xlu0 %796
      %798 = vrot.lane.b32.xlu0 %v569, 64
      %v799 = vpop.permute.xlu0 %798
      %800 = vrot.lane.b32.xlu0 %v570, 64
      %v801 = vpop.permute.xlu0 %800
      %802 = vrot.lane.b32.xlu0 %v571, 64
      %v803 = vpop.permute.xlu0 %802
      %868 = vrot.lane.b32.xlu0 %v447, 96
      %v869 = vpop.permute.xlu0 %868
      %870 = vrot.lane.b32.xlu0 %v448, 96
      %v871 = vpop.permute.xlu0 %870
      %872 = vrot.lane.b32.xlu0 %v449, 96
      %v873 = vpop.permute.xlu0 %872
      %874 = vrot.lane.b32.xlu0 %v450, 96
      %v875 = vpop.permute.xlu0 %874
      %876 = vrot.lane.b32.xlu0 %v451, 96
      %v877 = vpop.permute.xlu0 %876
      %878 = vrot.lane.b32.xlu0 %v452, 96
      %v879 = vpop.permute.xlu0 %878
      %880 = vrot.lane.b32.xlu0 %v453, 96
      %v881 = vpop.permute.xlu0 %880
      %882 = vrot.lane.b32.xlu0 %v454, 96
      %v883 = vpop.permute.xlu0 %882
      %884 = vrot.lane.b32.xlu0 %v455, 96
      %v885 = vpop.permute.xlu0 %884
      %886 = vrot.lane.b32.xlu0 %v456, 96
      %v887 = vpop.permute.xlu0 %886
      %888 = vrot.lane.b32.xlu0 %v457, 96
      %v889 = vpop.permute.xlu0 %888
      %890 = vrot.lane.b32.xlu0 %v458, 96
      %v891 = vpop.permute.xlu0 %890
      %892 = vrot.lane.b32.xlu0 %v459, 96
      %v893 = vpop.permute.xlu0 %892
      %894 = vrot.lane.b32.xlu0 %v460, 96
      %v895 = vpop.permute.xlu0 %894
      %896 = vrot.lane.b32.xlu0 %v461, 96
      %v897 = vpop.permute.xlu0 %896
      %898 = vrot.lane.b32.xlu0 %v462, 96
      %v899 = vpop.permute.xlu0 %898
      %900 = vrot.lane.b32.xlu0 %v463, 96
      %v901 = vpop.permute.xlu0 %900
      %902 = vrot.lane.b32.xlu0 %v464, 96
      %v903 = vpop.permute.xlu0 %902
      %904 = vrot.lane.b32.xlu0 %v465, 96
      %v905 = vpop.permute.xlu0 %904
      %906 = vrot.lane.b32.xlu0 %v466, 96
      %v907 = vpop.permute.xlu0 %906
      %908 = vrot.lane.b32.xlu0 %v467, 96
      %v909 = vpop.permute.xlu0 %908
      %910 = vrot.lane.b32.xlu0 %v468, 96
      %v911 = vpop.permute.xlu0 %910
      %912 = vrot.lane.b32.xlu0 %v469, 96
      %v913 = vpop.permute.xlu0 %912
      %914 = vrot.lane.b32.xlu0 %v470, 96
      %v915 = vpop.permute.xlu0 %914
      %916 = vrot.lane.b32.xlu0 %v471, 96
      %v917 = vpop.permute.xlu0 %916
      %918 = vrot.lane.b32.xlu0 %v472, 96
      %v919 = vpop.permute.xlu0 %918
      %920 = vrot.lane.b32.xlu0 %v473, 96
      %v921 = vpop.permute.xlu0 %920
      %922 = vrot.lane.b32.xlu0 %v474, 96
      %v923 = vpop.permute.xlu0 %922
      %924 = vrot.lane.b32.xlu0 %v475, 96
      %v925 = vpop.permute.xlu0 %924
      %926 = vrot.lane.b32.xlu0 %v476, 96
      %v927 = vpop.permute.xlu0 %926
      %928 = vrot.lane.b32.xlu0 %v576, 96
      %v929 = vpop.permute.xlu0 %928
      %930 = vrot.lane.b32.xlu0 %v577, 96
      %v931 = vpop.permute.xlu0 %930
      %966 = vrot.lane.b32.xlu0 %v542, 32
      %v967 = vpop.permute.xlu0 %966
      %968 = vrot.lane.b32.xlu0 %v543, 32
      %v969 = vpop.permute.xlu0 %968
      %970 = vrot.lane.b32.xlu0 %v544, 32
      %v971 = vpop.permute.xlu0 %970
      %972 = vrot.lane.b32.xlu0 %v545, 32
      %v973 = vpop.permute.xlu0 %972
      %974 = vrot.lane.b32.xlu0 %v546, 32
      %v975 = vpop.permute.xlu0 %974
      %976 = vrot.lane.b32.xlu0 %v547, 32
      %v977 = vpop.permute.xlu0 %976
      %978 = vrot.lane.b32.xlu0 %v548, 32
      %v979 = vpop.permute.xlu0 %978
      %980 = vrot.lane.b32.xlu0 %v549, 32
      %v981 = vpop.permute.xlu0 %980
      %982 = vrot.lane.b32.xlu0 %v550, 32
      %v983 = vpop.permute.xlu0 %982
      %984 = vrot.lane.b32.xlu0 %v551, 32
      %v985 = vpop.permute.xlu0 %984
      %986 = vrot.lane.b32.xlu0 %v552, 32
      %v987 = vpop.permute.xlu0 %986
      %988 = vrot.lane.b32.xlu0 %v553, 32
      %v989 = vpop.permute.xlu0 %988
      %990 = vrot.lane.b32.xlu0 %v554, 32
      %v991 = vpop.permute.xlu0 %990
      %992 = vrot.lane.b32.xlu0 %v555, 32
      %v993 = vpop.permute.xlu0 %992
      %994 = vrot.lane.b32.xlu0 %v556, 32
      %v995 = vpop.permute.xlu0 %994
      %996 = vrot.lane.b32.xlu0 %v557, 32
      %v997 = vpop.permute.xlu0 %996
      %998 = vrot.lane.b32.xlu0 %v558, 32
      %v999 = vpop.permute.xlu0 %998
      %1000 = vrot.lane.b32.xlu0 %v559, 32
      %v1001 = vpop.permute.xlu0 %1000
      %1002 = vrot.lane.b32.xlu0 %v560, 32
      %v1003 = vpop.permute.xlu0 %1002
      %1004 = vrot.lane.b32.xlu0 %v561, 32
      %v1005 = vpop.permute.xlu0 %1004
      %1006 = vrot.lane.b32.xlu0 %v562, 32
      %v1007 = vpop.permute.xlu0 %1006
      %1008 = vrot.lane.b32.xlu0 %v563, 32
      %v1009 = vpop.permute.xlu0 %1008
      %1010 = vrot.lane.b32.xlu0 %v564, 32
      %v1011 = vpop.permute.xlu0 %1010
      %1012 = vrot.lane.b32.xlu0 %v565, 32
      %v1013 = vpop.permute.xlu0 %1012
      %1014 = vrot.lane.b32.xlu0 %v566, 32
      %v1015 = vpop.permute.xlu0 %1014
      %1016 = vrot.lane.b32.xlu0 %v567, 32
      %v1017 = vpop.permute.xlu0 %1016
      %1018 = vrot.lane.b32.xlu0 %v568, 32
      %v1019 = vpop.permute.xlu0 %1018
      %1020 = vrot.lane.b32.xlu0 %v569, 32
      %v1021 = vpop.permute.xlu0 %1020
      %1022 = vrot.lane.b32.xlu0 %v570, 32
      %v1023 = vpop.permute.xlu0 %1022
      %1024 = vrot.lane.b32.xlu0 %v571, 32
      %v1025 = vpop.permute.xlu0 %1024
      %1026 = vrot.lane.b32.xlu0 %v582, 32
      %v1027 = vpop.permute.xlu0 %1026
      %1028 = vrot.lane.b32.xlu0 %v583, 32
      %v1029 = vpop.permute.xlu0 %1028
      %1064 = vrot.lane.b32.xlu0 %v449, 64
      %v1065 = vpop.permute.xlu0 %1064
      %1066 = vrot.lane.b32.xlu0 %v450, 64
      %v1067 = vpop.permute.xlu0 %1066
      %1068 = vrot.lane.b32.xlu0 %v451, 64
      %v1069 = vpop.permute.xlu0 %1068
      %1070 = vrot.lane.b32.xlu0 %v452, 64
      %v1071 = vpop.permute.xlu0 %1070
      %1072 = vrot.lane.b32.xlu0 %v453, 64
      %v1073 = vpop.permute.xlu0 %1072
      %1074 = vrot.lane.b32.xlu0 %v454, 64
      %v1075 = vpop.permute.xlu0 %1074
      %1076 = vrot.lane.b32.xlu0 %v455, 64
      %v1077 = vpop.permute.xlu0 %1076
      %1078 = vrot.lane.b32.xlu0 %v456, 64
      %v1079 = vpop.permute.xlu0 %1078
      %1080 = vrot.lane.b32.xlu0 %v457, 64
      %v1081 = vpop.permute.xlu0 %1080
      %1082 = vrot.lane.b32.xlu0 %v458, 64
      %v1083 = vpop.permute.xlu0 %1082
      %1084 = vrot.lane.b32.xlu0 %v459, 64
      %v1085 = vpop.permute.xlu0 %1084
      %1086 = vrot.lane.b32.xlu0 %v460, 64
      %v1087 = vpop.permute.xlu0 %1086
      %1088 = vrot.lane.b32.xlu0 %v461, 64
      %v1089 = vpop.permute.xlu0 %1088
      %1090 = vrot.lane.b32.xlu0 %v462, 64
      %v1091 = vpop.permute.xlu0 %1090
      %1092 = vrot.lane.b32.xlu0 %v463, 64
      %v1093 = vpop.permute.xlu0 %1092
      %1094 = vrot.lane.b32.xlu0 %v464, 64
      %v1095 = vpop.permute.xlu0 %1094
      %1096 = vrot.lane.b32.xlu0 %v465, 64
      %v1097 = vpop.permute.xlu0 %1096
      %1098 = vrot.lane.b32.xlu0 %v466, 64
      %v1099 = vpop.permute.xlu0 %1098
      %1100 = vrot.lane.b32.xlu0 %v467, 64
      %v1101 = vpop.permute.xlu0 %1100
      %1102 = vrot.lane.b32.xlu0 %v468, 64
      %v1103 = vpop.permute.xlu0 %1102
      %1104 = vrot.lane.b32.xlu0 %v469, 64
      %v1105 = vpop.permute.xlu0 %1104
      %1106 = vrot.lane.b32.xlu0 %v470, 64
      %v1107 = vpop.permute.xlu0 %1106
      %1108 = vrot.lane.b32.xlu0 %v471, 64
      %v1109 = vpop.permute.xlu0 %1108
      %1110 = vrot.lane.b32.xlu0 %v472, 64
      %v1111 = vpop.permute.xlu0 %1110
      %1112 = vrot.lane.b32.xlu0 %v473, 64
      %v1113 = vpop.permute.xlu0 %1112
      %1114 = vrot.lane.b32.xlu0 %v474, 64
      %v1115 = vpop.permute.xlu0 %1114
      %1116 = vrot.lane.b32.xlu0 %v475, 64
      %v1117 = vpop.permute.xlu0 %1116
      %1118 = vrot.lane.b32.xlu0 %v476, 64
      %v1119 = vpop.permute.xlu0 %1118
      %1120 = vrot.lane.b32.xlu0 %v576, 64
      %v1121 = vpop.permute.xlu0 %1120
      %1122 = vrot.lane.b32.xlu0 %v577, 64
      %v1123 = vpop.permute.xlu0 %1122
      %1124 = vrot.lane.b32.xlu0 %v445, 64
      %v1125 = vpop.permute.xlu0 %1124
      %1126 = vrot.lane.b32.xlu0 %v446, 64
      %v1127 = vpop.permute.xlu0 %1126
      %1162 = vrot.lane.b32.xlu0 %v349, 96
      %v1163 = vpop.permute.xlu0 %1162
      %1164 = vrot.lane.b32.xlu0 %v350, 96
      %v1165 = vpop.permute.xlu0 %1164
      %1166 = vrot.lane.b32.xlu0 %v351, 96
      %v1167 = vpop.permute.xlu0 %1166
      %1168 = vrot.lane.b32.xlu0 %v352, 96
      %v1169 = vpop.permute.xlu0 %1168
      %1170 = vrot.lane.b32.xlu0 %v353, 96
      %v1171 = vpop.permute.xlu0 %1170
      %1172 = vrot.lane.b32.xlu0 %v354, 96
      %v1173 = vpop.permute.xlu0 %1172
      %1174 = vrot.lane.b32.xlu0 %v355, 96
      %v1175 = vpop.permute.xlu0 %1174
      %1176 = vrot.lane.b32.xlu0 %v356, 96
      %v1177 = vpop.permute.xlu0 %1176
      %1178 = vrot.lane.b32.xlu0 %v357, 96
      %v1179 = vpop.permute.xlu0 %1178
      %1180 = vrot.lane.b32.xlu0 %v358, 96
      %v1181 = vpop.permute.xlu0 %1180
      %1182 = vrot.lane.b32.xlu0 %v359, 96
      %v1183 = vpop.permute.xlu0 %1182
      %1184 = vrot.lane.b32.xlu0 %v360, 96
      %v1185 = vpop.permute.xlu0 %1184
      %1186 = vrot.lane.b32.xlu0 %v361, 96
      %v1187 = vpop.permute.xlu0 %1186
      %1188 = vrot.lane.b32.xlu0 %v362, 96
      %v1189 = vpop.permute.xlu0 %1188
      %1190 = vrot.lane.b32.xlu0 %v363, 96
      %v1191 = vpop.permute.xlu0 %1190
      %1192 = vrot.lane.b32.xlu0 %v364, 96
      %v1193 = vpop.permute.xlu0 %1192
      %1194 = vrot.lane.b32.xlu0 %v365, 96
      %v1195 = vpop.permute.xlu0 %1194
      %1196 = vrot.lane.b32.xlu0 %v366, 96
      %v1197 = vpop.permute.xlu0 %1196
      %1198 = vrot.lane.b32.xlu0 %v367, 96
      %v1199 = vpop.permute.xlu0 %1198
      %1200 = vrot.lane.b32.xlu0 %v368, 96
      %v1201 = vpop.permute.xlu0 %1200
      %1202 = vrot.lane.b32.xlu0 %v369, 96
      %v1203 = vpop.permute.xlu0 %1202
      %1204 = vrot.lane.b32.xlu0 %v370, 96
      %v1205 = vpop.permute.xlu0 %1204
      %1206 = vrot.lane.b32.xlu0 %v371, 96
      %v1207 = vpop.permute.xlu0 %1206
      %1208 = vrot.lane.b32.xlu0 %v372, 96
      %v1209 = vpop.permute.xlu0 %1208
      %1210 = vrot.lane.b32.xlu0 %v373, 96
      %v1211 = vpop.permute.xlu0 %1210
      %1212 = vrot.lane.b32.xlu0 %v374, 96
      %v1213 = vpop.permute.xlu0 %1212
      %1214 = vrot.lane.b32.xlu0 %v375, 96
      %v1215 = vpop.permute.xlu0 %1214
      %1216 = vrot.lane.b32.xlu0 %v376, 96
      %v1217 = vpop.permute.xlu0 %1216
      %1218 = vrot.lane.b32.xlu0 %v377, 96
      %v1219 = vpop.permute.xlu0 %1218
      %1220 = vrot.lane.b32.xlu0 %v378, 96
      %v1221 = vpop.permute.xlu0 %1220
      %1222 = vrot.lane.b32.xlu0 0.0, 96
      %v1223 = vpop.permute.xlu0 %1222
      %vm1255 = vcmask 261120
      %v1256 = vsel %vm1255, %v445, %v616
      %v1257 = vsel %vm1255, %v446, %v616
      %v1258 = vsel %vm1255, %v447, %v618
      %v1259 = vsel %vm1255, %v448, %v620
      %v1260 = vsel %vm1255, %v449, %v622
      %v1261 = vsel %vm1255, %v450, %v624
      %v1262 = vsel %vm1255, %v451, %v626
      %v1263 = vsel %vm1255, %v452, %v628
      %v1264 = vsel %vm1255, %v453, %v630
      %v1265 = vsel %vm1255, %v454, %v632
      %v1266 = vsel %vm1255, %v455, %v634
      %v1267 = vsel %vm1255, %v456, %v636
      %v1268 = vsel %vm1255, %v457, %v638
      %v1269 = vsel %vm1255, %v458, %v640
      %v1270 = vsel %vm1255, %v459, %v642
      %v1271 = vsel %vm1255, %v460, %v644
      %v1272 = vsel %vm1255, %v461, %v646
      %v1273 = vsel %vm1255, %v462, %v648
      %v1274 = vsel %vm1255, %v463, %v650
      %v1275 = vsel %vm1255, %v464, %v652
      %v1276 = vsel %vm1255, %v465, %v654
      %v1277 = vsel %vm1255, %v466, %v656
      %v1278 = vsel %vm1255, %v467, %v658
      %v1279 = vsel %vm1255, %v468, %v660
      %v1280 = vsel %vm1255, %v469, %v662
      %v1281 = vsel %vm1255, %v470, %v664
      %v1282 = vsel %vm1255, %v471, %v666
      %v1283 = vsel %vm1255, %v472, %v668
      %v1284 = vsel %vm1255, %v473, %v670
      %v1285 = vsel %vm1255, %v474, %v672
      %v1286 = vsel %vm1255, %v475, %v674
      %v1287 = vsel %vm1255, %v476, %v676
      %vm1288 = vcmask 523264
      %v1289 = vsel %vm1288, %v1256, %v741
      %v1290 = vsel %vm1288, %v1257, %v743
      %v1291 = vsel %vm1288, %v1258, %v745
      %v1292 = vsel %vm1288, %v1259, %v747
      %v1293 = vsel %vm1288, %v1260, %v749
      %v1294 = vsel %vm1288, %v1261, %v751
      %v1295 = vsel %vm1288, %v1262, %v753
      %v1296 = vsel %vm1288, %v1263, %v755
      %v1297 = vsel %vm1288, %v1264, %v757
      %v1298 = vsel %vm1288, %v1265, %v759
      %v1299 = vsel %vm1288, %v1266, %v761
      %v1300 = vsel %vm1288, %v1267, %v763
      %v1301 = vsel %vm1288, %v1268, %v765
      %v1302 = vsel %vm1288, %v1269, %v767
      %v1303 = vsel %vm1288, %v1270, %v769
      %v1304 = vsel %vm1288, %v1271, %v771
      %v1305 = vsel %vm1288, %v1272, %v773
      %v1306 = vsel %vm1288, %v1273, %v775
      %v1307 = vsel %vm1288, %v1274, %v777
      %v1308 = vsel %vm1288, %v1275, %v779
      %v1309 = vsel %vm1288, %v1276, %v781
      %v1310 = vsel %vm1288, %v1277, %v783
      %v1311 = vsel %vm1288, %v1278, %v785
      %v1312 = vsel %vm1288, %v1279, %v787
      %v1313 = vsel %vm1288, %v1280, %v789
      %v1314 = vsel %vm1288, %v1281, %v791
      %v1315 = vsel %vm1288, %v1282, %v793
      %v1316 = vsel %vm1288, %v1283, %v795
      %v1317 = vsel %vm1288, %v1284, %v797
      %v1318 = vsel %vm1288, %v1285, %v799
      %v1319 = vsel %vm1288, %v1286, %v801
      %v1320 = vsel %vm1288, %v1287, %v803
      %vm1321 = vcmask 785408
      %v1322 = vsel %vm1321, %v1289, %v869
      %v1323 = vsel %vm1321, %v1290, %v871
      %v1324 = vsel %vm1321, %v1291, %v873
      %v1325 = vsel %vm1321, %v1292, %v875
      %v1326 = vsel %vm1321, %v1293, %v877
      %v1327 = vsel %vm1321, %v1294, %v879
      %v1328 = vsel %vm1321, %v1295, %v881
      %v1329 = vsel %vm1321, %v1296, %v883
      %v1330 = vsel %vm1321, %v1297, %v885
      %v1331 = vsel %vm1321, %v1298, %v887
      %v1332 = vsel %vm1321, %v1299, %v889
      %v1333 = vsel %vm1321, %v1300, %v891
      %v1334 = vsel %vm1321, %v1301, %v893
      %v1335 = vsel %vm1321, %v1302, %v895
      %v1336 = vsel %vm1321, %v1303, %v897
      %v1337 = vsel %vm1321, %v1304, %v899
      %v1338 = vsel %vm1321, %v1305, %v901
      %v1339 = vsel %vm1321, %v1306, %v903
      %v1340 = vsel %vm1321, %v1307, %v905
      %v1341 = vsel %vm1321, %v1308, %v907
      %v1342 = vsel %vm1321, %v1309, %v909
      %v1343 = vsel %vm1321, %v1310, %v911
      %v1344 = vsel %vm1321, %v1311, %v913
      %v1345 = vsel %vm1321, %v1312, %v915
      %v1346 = vsel %vm1321, %v1313, %v917
      %v1347 = vsel %vm1321, %v1314, %v919
      %v1348 = vsel %vm1321, %v1315, %v921
      %v1349 = vsel %vm1321, %v1316, %v923
      %v1350 = vsel %vm1321, %v1317, %v925
      %v1351 = vsel %vm1321, %v1318, %v927
      %v1352 = vsel %vm1321, %v1319, %v929
      %v1353 = vsel %vm1321, %v1320, %v931
      %v1354 = vsel %vm1255, %v347, %v967
      %v1355 = vsel %vm1255, %v348, %v969
      %v1356 = vsel %vm1255, %v349, %v971
      %v1357 = vsel %vm1255, %v350, %v973
      %v1358 = vsel %vm1255, %v351, %v975
      %v1359 = vsel %vm1255, %v352, %v977
      %v1360 = vsel %vm1255, %v353, %v979
      %v1361 = vsel %vm1255, %v354, %v981
      %v1362 = vsel %vm1255, %v355, %v983
      %v1363 = vsel %vm1255, %v356, %v985
      %v1364 = vsel %vm1255, %v357, %v987
      %v1365 = vsel %vm1255, %v358, %v989
      %v1366 = vsel %vm1255, %v359, %v991
      %v1367 = vsel %vm1255, %v360, %v993
      %v1368 = vsel %vm1255, %v361, %v995
      %v1369 = vsel %vm1255, %v362, %v997
      %v1370 = vsel %vm1255, %v363, %v999
      %v1371 = vsel %vm1255, %v364, %v1001
      %v1372 = vsel %vm1255, %v365, %v1003
      %v1373 = vsel %vm1255, %v366, %v1005
      %v1374 = vsel %vm1255, %v367, %v1007
      %v1375 = vsel %vm1255, %v368, %v1009
      %v1376 = vsel %vm1255, %v369, %v1011
      %v1377 = vsel %vm1255, %v370, %v1013
      %v1378 = vsel %vm1255, %v371, %v1015
      %v1379 = vsel %vm1255, %v372, %v1017
      %v1380 = vsel %vm1255, %v373, %v1019
      %v1381 = vsel %vm1255, %v374, %v1021
      %v1382 = vsel %vm1255, %v375, %v1023
      %v1383 = vsel %vm1255, %v376, %v1025
      %v1384 = vsel %vm1255, %v377, %v1027
      %v1385 = vsel %vm1255, %v378, %v1029
      %v1386 = vsel %vm1288, %v1354, %v1065
      %v1387 = vsel %vm1288, %v1355, %v1067
      %v1388 = vsel %vm1288, %v1356, %v1069
      %v1389 = vsel %vm1288, %v1357, %v1071
      %v1390 = vsel %vm1288, %v1358, %v1073
      %v1391 = vsel %vm1288, %v1359, %v1075
      %v1392 = vsel %vm1288, %v1360, %v1077
      %v1393 = vsel %vm1288, %v1361, %v1079
      %v1394 = vsel %vm1288, %v1362, %v1081
      %v1395 = vsel %vm1288, %v1363, %v1083
      %v1396 = vsel %vm1288, %v1364, %v1085
      %v1397 = vsel %vm1288, %v1365, %v1087
      %v1398 = vsel %vm1288, %v1366, %v1089
      %v1399 = vsel %vm1288, %v1367, %v1091
      %v1400 = vsel %vm1288, %v1368, %v1093
      %v1401 = vsel %vm1288, %v1369, %v1095
      %v1402 = vsel %vm1288, %v1370, %v1097
      %v1403 = vsel %vm1288, %v1371, %v1099
      %v1404 = vsel %vm1288, %v1372, %v1101
      %v1405 = vsel %vm1288, %v1373, %v1103
      %v1406 = vsel %vm1288, %v1374, %v1105
      %v1407 = vsel %vm1288, %v1375, %v1107
      %v1408 = vsel %vm1288, %v1376, %v1109
      %v1409 = vsel %vm1288, %v1377, %v1111
      %v1410 = vsel %vm1288, %v1378, %v1113
      %v1411 = vsel %vm1288, %v1379, %v1115
      %v1412 = vsel %vm1288, %v1380, %v1117
      %v1413 = vsel %vm1288, %v1381, %v1119
      %v1414 = vsel %vm1288, %v1382, %v1121
      %v1415 = vsel %vm1288, %v1383, %v1123
      %v1416 = vsel %vm1288, %v1384, %v1125
      %v1417 = vsel %vm1288, %v1385, %v1127
      %v1418 = vsel %vm1321, %v1386, %v1163
      %v1419 = vsel %vm1321, %v1387, %v1165
      %v1420 = vsel %vm1321, %v1388, %v1167
      %v1421 = vsel %vm1321, %v1389, %v1169
      %v1422 = vsel %vm1321, %v1390, %v1171
      %v1423 = vsel %vm1321, %v1391, %v1173
      %v1424 = vsel %vm1321, %v1392, %v1175
      %v1425 = vsel %vm1321, %v1393, %v1177
      %v1426 = vsel %vm1321, %v1394, %v1179
      %v1427 = vsel %vm1321, %v1395, %v1181
      %v1428 = vsel %vm1321, %v1396, %v1183
      %v1429 = vsel %vm1321, %v1397, %v1185
      %v1430 = vsel %vm1321, %v1398, %v1187
      %v1431 = vsel %vm1321, %v1399, %v1189
      %v1432 = vsel %vm1321, %v1400, %v1191
      %v1433 = vsel %vm1321, %v1401, %v1193
      %v1434 = vsel %vm1321, %v1402, %v1195
      %v1435 = vsel %vm1321, %v1403, %v1197
      %v1436 = vsel %vm1321, %v1404, %v1199
      %v1437 = vsel %vm1321, %v1405, %v1201
      %v1438 = vsel %vm1321, %v1406, %v1203
      %v1439 = vsel %vm1321, %v1407, %v1205
      %v1440 = vsel %vm1321, %v1408, %v1207
      %v1441 = vsel %vm1321, %v1409, %v1209
      %v1442 = vsel %vm1321, %v1410, %v1211
      %v1443 = vsel %vm1321, %v1411, %v1213
      %v1444 = vsel %vm1321, %v1412, %v1215
      %v1445 = vsel %vm1321, %v1413, %v1217
      %v1446 = vsel %vm1321, %v1414, %v1219
      %v1447 = vsel %vm1321, %v1415, %v1221
      %v1448 = vsel %vm1321, %v1416, %v1223
      %v1449 = vsel %vm1321, %v1417, %v1223
      %v1450 = vpack.c.bf16 %v1323, %v1322
      %v1451 = vpack.c.bf16 %v1419, %v1418
      %v1452 = vpack.c.bf16 %v545, %v544
      %v1453 = vpack.c.bf16 %v1325, %v1324
      %v1454 = vpack.c.bf16 %v1421, %v1420
      %v1455 = vpack.c.bf16 %v547, %v546
      %v1456 = vpack.c.bf16 %v1327, %v1326
      %v1457 = vpack.c.bf16 %v1423, %v1422
      %v1458 = vpack.c.bf16 %v549, %v548
      %v1459 = vpack.c.bf16 %v1329, %v1328
      %v1460 = vpack.c.bf16 %v1425, %v1424
      %v1461 = vpack.c.bf16 %v551, %v550
      %v1462 = vpack.c.bf16 %v1331, %v1330
      %v1463 = vpack.c.bf16 %v1427, %v1426
      %v1464 = vpack.c.bf16 %v553, %v552
      %v1465 = vpack.c.bf16 %v1333, %v1332
      %v1466 = vpack.c.bf16 %v1429, %v1428
      %v1467 = vpack.c.bf16 %v555, %v554
      %v1468 = vpack.c.bf16 %v1335, %v1334
      %v1469 = vpack.c.bf16 %v1431, %v1430
      %v1470 = vpack.c.bf16 %v557, %v556
      %v1471 = vpack.c.bf16 %v1337, %v1336
      %v1472 = vpack.c.bf16 %v1433, %v1432
      %v1473 = vpack.c.bf16 %v559, %v558
      %v1474 = vpack.c.bf16 %v1339, %v1338
      %v1475 = vpack.c.bf16 %v1435, %v1434
      %v1476 = vpack.c.bf16 %v561, %v560
      %v1477 = vpack.c.bf16 %v1341, %v1340
      %v1478 = vpack.c.bf16 %v1437, %v1436
      %v1479 = vpack.c.bf16 %v563, %v562
      %v1480 = vpack.c.bf16 %v1343, %v1342
      %v1481 = vpack.c.bf16 %v1439, %v1438
      %v1482 = vpack.c.bf16 %v565, %v564
      %v1483 = vpack.c.bf16 %v1345, %v1344
      %v1484 = vpack.c.bf16 %v1441, %v1440
      %v1485 = vpack.c.bf16 %v567, %v566
      %v1486 = vpack.c.bf16 %v1347, %v1346
      %v1487 = vpack.c.bf16 %v1443, %v1442
      %v1488 = vpack.c.bf16 %v569, %v568
      %v1489 = vpack.c.bf16 %v1349, %v1348
      %v1490 = vpack.c.bf16 %v1445, %v1444
      %v1491 = vpack.c.bf16 %v571, %v570
      %v1492 = vpack.c.bf16 %v1351, %v1350
      %v1493 = vpack.c.bf16 %v1447, %v1446
      %v1494 = vpack.c.bf16 %v583, %v582
      %v1495 = vpack.c.bf16 %v1353, %v1352
      %v1496 = vpack.c.bf16 %v1449, %v1448
      %v1497 = vpack.c.bf16 %v541, %v540
      %v1498 = vld [vmem:[%s3] sm:$0xf]
      %v1499 = vld [vmem:[%s3 + $0x4] sm:$0xf]
      %v1500 = vld [vmem:[%s3 + $0x8] sm:$0xf]
      %v1501 = vld [vmem:[%s3 + $0xc] sm:$0xf]
      %v1502 = vld [vmem:[%s3 + $0x10] sm:$0xf]
      %v1503 = vld [vmem:[%s3 + $0x14] sm:$0xf]
      %v1504 = vld [vmem:[%s3 + $0x18] sm:$0xf]
      %v1505 = vld [vmem:[%s3 + $0x1c] sm:$0xf]
      %v1506 = vld [vmem:[%s3 + $0x20] sm:$0xf]
      %v1507 = vld [vmem:[%s3 + $0x24] sm:$0xf]
      %v1508 = vld [vmem:[%s3 + $0x28] sm:$0xf]
      %v1509 = vld [vmem:[%s3 + $0x2c] sm:$0xf]
      %v1510 = vld [vmem:[%s3 + $0x30] sm:$0xf]
      %v1511 = vld [vmem:[%s3 + $0x34] sm:$0xf]
      %v1512 = vld [vmem:[%s3 + $0x38] sm:$0xf]
      %v1513 = vld [vmem:[%s3 + $0x3c] sm:$0xf]
      %v1514 = vld [vmem:[%s3 + $0x40] sm:$0xf]
      %v1515 = vld [vmem:[%s3 + $0x44] sm:$0xf]
      %v1516 = vld [vmem:[%s3 + $0x48] sm:$0xf]
      %v1517 = vld [vmem:[%s3 + $0x4c] sm:$0xf]
      %v1518 = vld [vmem:[%s3 + $0x50] sm:$0xf]
      %v1519 = vld [vmem:[%s3 + $0x54] sm:$0xf]
      %v1520 = vld [vmem:[%s3 + $0x58] sm:$0xf]
      %v1521 = vld [vmem:[%s3 + $0x5c] sm:$0xf]
      %v1522 = vld [vmem:[%s3 + $0x60] sm:$0xf]
      %v1523 = vld [vmem:[%s3 + $0x64] sm:$0xf]
      %v1524 = vld [vmem:[%s3 + $0x68] sm:$0xf]
      %v1525 = vld [vmem:[%s3 + $0x6c] sm:$0xf]
      %v1526 = vld [vmem:[%s3 + $0x70] sm:$0xf]
      %v1527 = vld [vmem:[%s3 + $0x74] sm:$0xf]
      %v1528 = vld [vmem:[%s3 + $0x78] sm:$0xf]
      %v1529 = vld [vmem:[%s3 + $0x7c] sm:$0xf]
      %v1530 = vld [vmem:[%s3 + $0x80] sm:$0xf]
      %v1531 = vld [vmem:[%s3 + $0x84] sm:$0xf]
      %v1532 = vld [vmem:[%s3 + $0x88] sm:$0xf]
      %v1533 = vld [vmem:[%s3 + $0x8c] sm:$0xf]
      %v1570 = vunpack.c.l.b16 %v1498
      %v1571 = vunpack.c.l.b16 %v1499
      %v1572 = vunpack.c.l.b16 %v1500
      %v1573 = vunpack.c.l.b16 %v1501
      %v1574 = vunpack.c.l.b16 %v1502
      %v1575 = vunpack.c.l.b16 %v1503
      %v1576 = vunpack.c.l.b16 %v1504
      %v1577 = vunpack.c.l.b16 %v1505
      %v1578 = vunpack.c.l.b16 %v1506
      %v1579 = vunpack.c.l.b16 %v1507
      %v1580 = vunpack.c.l.b16 %v1508
      %v1581 = vunpack.c.l.b16 %v1509
      %v1582 = vunpack.c.l.b16 %v1510
      %v1583 = vunpack.c.l.b16 %v1511
      %v1584 = vunpack.c.l.b16 %v1512
      %v1585 = vunpack.c.l.b16 %v1513
      %v1586 = vunpack.c.l.b16 %v1514
      %v1587 = vunpack.c.l.b16 %v1515
      %v1588 = vunpack.c.l.b16 %v1516
      %v1589 = vunpack.c.l.b16 %v1517
      %v1590 = vunpack.c.l.b16 %v1518
      %v1591 = vunpack.c.l.b16 %v1519
      %v1592 = vunpack.c.l.b16 %v1520
      %v1593 = vunpack.c.l.b16 %v1521
      %v1594 = vunpack.c.l.b16 %v1522
      %v1595 = vunpack.c.l.b16 %v1523
      %v1596 = vunpack.c.l.b16 %v1524
      %v1597 = vunpack.c.l.b16 %v1525
      %v1598 = vunpack.c.l.b16 %v1526
      %v1599 = vunpack.c.l.b16 %v1527
      %v1600 = vunpack.c.l.b16 %v1528
      %v1601 = vunpack.c.l.b16 %v1529
      %v1602 = vunpack.c.l.b16 %v1530
      %v1603 = vunpack.c.l.b16 %v1531
      %v1604 = vunpack.c.l.b16 %v1532
      %v1605 = vunpack.c.l.b16 %v1533
      %v1606 = vpack.c.b16 %v1571, %v1570
      %v1607 = vpack.c.b16 %v1573, %v1572
      %v1608 = vpack.c.b16 %v1575, %v1574
      %v1609 = vpack.c.b16 %v1577, %v1576
      %v1610 = vpack.c.b16 %v1579, %v1578
      %v1611 = vpack.c.b16 %v1581, %v1580
      %v1612 = vpack.c.b16 %v1583, %v1582
      %v1613 = vpack.c.b16 %v1585, %v1584
      %v1614 = vpack.c.b16 %v1587, %v1586
      %v1615 = vpack.c.b16 %v1589, %v1588
      %v1616 = vpack.c.b16 %v1591, %v1590
      %v1617 = vpack.c.b16 %v1593, %v1592
      %v1618 = vpack.c.b16 %v1595, %v1594
      %v1619 = vpack.c.b16 %v1597, %v1596
      %v1620 = vpack.c.b16 %v1599, %v1598
      %v1621 = vpack.c.b16 %v1601, %v1600
      %v1622 = vpack.c.b16 %v1603, %v1602
      %v1623 = vpack.c.b16 %v1605, %v1604
      %v1643 = vsel %vm1255, %v1452, 0
      %v1646 = vsel %vm1255, %v1455, 0
      %v1649 = vsel %vm1255, %v1458, 0
      %v1652 = vsel %vm1255, %v1461, 0
      %v1655 = vsel %vm1255, %v1464, 0
      %v1658 = vsel %vm1255, %v1467, 0
      %v1661 = vsel %vm1255, %v1470, 0
      %v1664 = vsel %vm1255, %v1473, 0
      %v1667 = vsel %vm1255, %v1476, 0
      %v1670 = vsel %vm1255, %v1479, 0
      %v1673 = vsel %vm1255, %v1482, 0
      %v1676 = vsel %vm1255, %v1485, 0
      %v1679 = vsel %vm1255, %v1488, 0
      %v1682 = vsel %vm1255, %v1491, 0
      %v1685 = vsel %vm1255, %v1494, 0
      %v1688 = vsel %vm1255, %v1497, 0
      %1690 = vmatprep.subr.bf16.mxu0 0
      %1691 = vmatpush1.bf16.msra.mxu0 %v1613
      %1692 = vmatprep.subr.bf16.mxu0 0
      %1693 = vmatpush1.bf16.msra.mxu0 %v1612
      %1694 = vmatprep.subr.bf16.mxu0 0
      %1695 = vmatpush1.bf16.msra.mxu0 %v1611
      %1696 = vmatprep.subr.bf16.mxu0 0
      %1697 = vmatpush1.bf16.msra.mxu0 %v1610
      %1698 = vmatprep.subr.bf16.mxu0 0
      %1699 = vmatpush1.bf16.msra.mxu0 %v1609
      %1700 = vmatprep.subr.bf16.mxu0 0
      %1701 = vmatpush1.bf16.msra.mxu0 %v1608
      %1702 = vmatprep.subr.bf16.mxu0 0
      %1703 = vmatpush1.bf16.msra.mxu0 %v1607
      %1704 = vmatprep.subr.bf16.mxu0 0
      %1705 = vmatpush1.bf16.msra.mxu0 %v1606
      %1706 = vmatprep.subr.bf16.mxu0 0
      %1707 = vmatpush2.bf16.msra.mxu0 %v1621
      %1708 = vmatprep.subr.bf16.mxu0 0
      %1709 = vmatpush2.bf16.msra.mxu0 %v1620
      %1710 = vmatprep.subr.bf16.mxu0 0
      %1711 = vmatpush2.bf16.msra.mxu0 %v1619
      %1712 = vmatprep.subr.bf16.mxu0 0
      %1713 = vmatpush2.bf16.msra.mxu0 %v1618
      %1714 = vmatprep.subr.bf16.mxu0 0
      %1715 = vmatpush2.bf16.msra.mxu0 %v1617
      %1716 = vmatprep.subr.bf16.mxu0 0
      %1717 = vmatpush2.bf16.msra.mxu0 %v1616
      %1718 = vmatprep.subr.bf16.mxu0 0
      %1719 = vmatpush2.bf16.msra.mxu0 %v1615
      %1720 = vmatprep.subr.bf16.mxu0 0
      %1721 = vmatpush2.bf16.msra.mxu0 %v1614
      %1722 = vmatprep.mubr.bf16.mxu0 %v1451
      %1723 = vmatmul.mubr.bf16.gmra.mxu0 %v1450
      %v1724 = vpop.f32.mrf.mxu0
      %v1725 = vadd.f32 0.0, %v1724
      %v1726 = vpop.f32.mrf.mxu0
      %v1727 = vpop.f32.mrf.mxu0
      %v1728 = vadd.f32 0.0, %v1727
      %v1729 = vpop.f32.mrf.mxu0
      %1730 = vmatprep.mubr.bf16.mxu0 %v1454
      %1731 = vmatmul.mubr.bf16.gmra.mxu0 %v1453
      %v1732 = vpop.f32.mrf.mxu0
      %v1733 = vadd.f32 0.0, %v1732
      %v1734 = vpop.f32.mrf.mxu0
      %v1735 = vpop.f32.mrf.mxu0
      %v1736 = vadd.f32 0.0, %v1735
      %v1737 = vpop.f32.mrf.mxu0
      %1738 = vmatprep.mubr.bf16.mxu0 %v1457
      %1739 = vmatmul.mubr.bf16.gmra.mxu0 %v1456
      %v1740 = vpop.f32.mrf.mxu0
      %v1741 = vadd.f32 0.0, %v1740
      %v1742 = vpop.f32.mrf.mxu0
      %v1743 = vpop.f32.mrf.mxu0
      %v1744 = vadd.f32 0.0, %v1743
      %v1745 = vpop.f32.mrf.mxu0
      %1746 = vmatprep.mubr.bf16.mxu0 %v1460
      %1747 = vmatmul.mubr.bf16.gmra.mxu0 %v1459
      %v1748 = vpop.f32.mrf.mxu0
      %v1749 = vadd.f32 0.0, %v1748
      %v1750 = vpop.f32.mrf.mxu0
      %v1751 = vpop.f32.mrf.mxu0
      %v1752 = vadd.f32 0.0, %v1751
      %v1753 = vpop.f32.mrf.mxu0
      %1754 = vmatprep.mubr.bf16.mxu0 %v1463
      %1755 = vmatmul.mubr.bf16.gmra.mxu0 %v1462
      %v1756 = vpop.f32.mrf.mxu0
      %v1757 = vadd.f32 0.0, %v1756
      %v1758 = vpop.f32.mrf.mxu0
      %v1759 = vpop.f32.mrf.mxu0
      %v1760 = vadd.f32 0.0, %v1759
      %v1761 = vpop.f32.mrf.mxu0
      %1762 = vmatprep.mubr.bf16.mxu0 %v1466
      %1763 = vmatmul.mubr.bf16.gmra.mxu0 %v1465
      %v1764 = vpop.f32.mrf.mxu0
      %v1765 = vadd.f32 0.0, %v1764
      %v1766 = vpop.f32.mrf.mxu0
      %v1767 = vpop.f32.mrf.mxu0
      %v1768 = vadd.f32 0.0, %v1767
      %v1769 = vpop.f32.mrf.mxu0
      %1770 = vmatprep.mubr.bf16.mxu0 %v1469
      %1771 = vmatmul.mubr.bf16.gmra.mxu0 %v1468
      %v1772 = vpop.f32.mrf.mxu0
      %v1773 = vadd.f32 0.0, %v1772
      %v1774 = vpop.f32.mrf.mxu0
      %v1775 = vpop.f32.mrf.mxu0
      %v1776 = vadd.f32 0.0, %v1775
      %v1777 = vpop.f32.mrf.mxu0
      %1778 = vmatprep.mubr.bf16.mxu0 %v1472
      %1779 = vmatmul.mubr.bf16.gmra.mxu0 %v1471
      %v1780 = vpop.f32.mrf.mxu0
      %v1781 = vadd.f32 0.0, %v1780
      %v1782 = vpop.f32.mrf.mxu0
      %v1783 = vpop.f32.mrf.mxu0
      %v1784 = vadd.f32 0.0, %v1783
      %v1785 = vpop.f32.mrf.mxu0
      %1786 = vmatprep.mubr.bf16.mxu0 %v1475
      %1787 = vmatmul.mubr.bf16.gmra.mxu0 %v1474
      %v1788 = vpop.f32.mrf.mxu0
      %v1789 = vadd.f32 0.0, %v1788
      %v1790 = vpop.f32.mrf.mxu0
      %v1791 = vpop.f32.mrf.mxu0
      %v1792 = vadd.f32 0.0, %v1791
      %v1793 = vpop.f32.mrf.mxu0
      %1794 = vmatprep.mubr.bf16.mxu0 %v1478
      %1795 = vmatmul.mubr.bf16.gmra.mxu0 %v1477
      %v1796 = vpop.f32.mrf.mxu0
      %v1797 = vadd.f32 0.0, %v1796
      %v1798 = vpop.f32.mrf.mxu0
      %v1799 = vpop.f32.mrf.mxu0
      %v1800 = vadd.f32 0.0, %v1799
      %v1801 = vpop.f32.mrf.mxu0
      %1802 = vmatprep.mubr.bf16.mxu0 %v1481
      %1803 = vmatmul.mubr.bf16.gmra.mxu0 %v1480
      %v1804 = vpop.f32.mrf.mxu0
      %v1805 = vadd.f32 0.0, %v1804
      %v1806 = vpop.f32.mrf.mxu0
      %v1807 = vpop.f32.mrf.mxu0
      %v1808 = vadd.f32 0.0, %v1807
      %v1809 = vpop.f32.mrf.mxu0
      %1810 = vmatprep.mubr.bf16.mxu0 %v1484
      %1811 = vmatmul.mubr.bf16.gmra.mxu0 %v1483
      %v1812 = vpop.f32.mrf.mxu0
      %v1813 = vadd.f32 0.0, %v1812
      %v1814 = vpop.f32.mrf.mxu0
      %v1815 = vpop.f32.mrf.mxu0
      %v1816 = vadd.f32 0.0, %v1815
      %v1817 = vpop.f32.mrf.mxu0
      %1818 = vmatprep.mubr.bf16.mxu0 %v1487
      %1819 = vmatmul.mubr.bf16.gmra.mxu0 %v1486
      %v1820 = vpop.f32.mrf.mxu0
      %v1821 = vadd.f32 0.0, %v1820
      %v1822 = vpop.f32.mrf.mxu0
      %v1823 = vpop.f32.mrf.mxu0
      %v1824 = vadd.f32 0.0, %v1823
      %v1825 = vpop.f32.mrf.mxu0
      %1826 = vmatprep.mubr.bf16.mxu0 %v1490
      %1827 = vmatmul.mubr.bf16.gmra.mxu0 %v1489
      %v1828 = vpop.f32.mrf.mxu0
      %v1829 = vadd.f32 0.0, %v1828
      %v1830 = vpop.f32.mrf.mxu0
      %v1831 = vpop.f32.mrf.mxu0
      %v1832 = vadd.f32 0.0, %v1831
      %v1833 = vpop.f32.mrf.mxu0
      %1834 = vmatprep.mubr.bf16.mxu0 %v1493
      %1835 = vmatmul.mubr.bf16.gmra.mxu0 %v1492
      %v1836 = vpop.f32.mrf.mxu0
      %v1837 = vadd.f32 0.0, %v1836
      %v1838 = vpop.f32.mrf.mxu0
      %v1839 = vpop.f32.mrf.mxu0
      %v1840 = vadd.f32 0.0, %v1839
      %v1841 = vpop.f32.mrf.mxu0
      %1842 = vmatprep.mubr.bf16.mxu0 %v1496
      %1843 = vmatmul.mubr.bf16.gmra.mxu0 %v1495
      %v1844 = vpop.f32.mrf.mxu0
      %v1845 = vadd.f32 0.0, %v1844
      %v1846 = vpop.f32.mrf.mxu0
      %v1847 = vpop.f32.mrf.mxu0
      %v1848 = vadd.f32 0.0, %v1847
      %v1849 = vpop.f32.mrf.mxu0
      %1850 = vdwg.mxu0
      %1851 = vmatprep.subr.bf16.mxu0 0
      %1852 = vmatpush1.bf16.msra.mxu0 0
      %1853 = vmatprep.subr.bf16.mxu0 0
      %1854 = vmatpush1.bf16.msra.mxu0 0
      %1855 = vmatprep.subr.bf16.mxu0 0
      %1856 = vmatpush1.bf16.msra.mxu0 0
      %1857 = vmatprep.subr.bf16.mxu0 0
      %1858 = vmatpush1.bf16.msra.mxu0 0
      %1859 = vmatprep.subr.bf16.mxu0 0
      %1860 = vmatpush1.bf16.msra.mxu0 0
      %1861 = vmatprep.subr.bf16.mxu0 0
      %1862 = vmatpush1.bf16.msra.mxu0 0
      %1863 = vmatprep.subr.bf16.mxu0 0
      %1864 = vmatpush1.bf16.msra.mxu0 %v1623
      %1865 = vmatprep.subr.bf16.mxu0 0
      %1866 = vmatpush1.bf16.msra.mxu0 %v1622
      %1867 = vmatprep.subr.bf16.mxu0 0
      %1868 = vmatpush2.bf16.msra.mxu0 0
      %1869 = vmatprep.subr.bf16.mxu0 0
      %1870 = vmatpush2.bf16.msra.mxu0 0
      %1871 = vmatprep.subr.bf16.mxu0 0
      %1872 = vmatpush2.bf16.msra.mxu0 0
      %1873 = vmatprep.subr.bf16.mxu0 0
      %1874 = vmatpush2.bf16.msra.mxu0 0
      %1875 = vmatprep.subr.bf16.mxu0 0
      %1876 = vmatpush2.bf16.msra.mxu0 0
      %1877 = vmatprep.subr.bf16.mxu0 0
      %1878 = vmatpush2.bf16.msra.mxu0 0
      %1879 = vmatprep.subr.bf16.mxu0 0
      %1880 = vmatpush2.bf16.msra.mxu0 0
      %1881 = vmatprep.subr.bf16.mxu0 0
      %1882 = vmatpush2.bf16.msra.mxu0 0
      %1883 = vmatprep.mubr.bf16.mxu0 0
      %1884 = vmatmul.mubr.bf16.gmra.mxu0 %v1643
      %v1885 = vpop.f32.mrf.mxu0
      %v1886 = vadd.f32 %v1725, %v1885
      %v1887 = vpop.f32.mrf.mxu0
      %v1888 = vpop.f32.mrf.mxu0
      %v1889 = vadd.f32 %v1728, %v1888
      %v1890 = vpop.f32.mrf.mxu0
      %1891 = vmatprep.mubr.bf16.mxu0 0
      %1892 = vmatmul.mubr.bf16.gmra.mxu0 %v1646
      %v1893 = vpop.f32.mrf.mxu0
      %v1894 = vadd.f32 %v1733, %v1893
      %v1895 = vpop.f32.mrf.mxu0
      %v1896 = vpop.f32.mrf.mxu0
      %v1897 = vadd.f32 %v1736, %v1896
      %v1898 = vpop.f32.mrf.mxu0
      %1899 = vmatprep.mubr.bf16.mxu0 0
      %1900 = vmatmul.mubr.bf16.gmra.mxu0 %v1649
      %v1901 = vpop.f32.mrf.mxu0
      %v1902 = vadd.f32 %v1741, %v1901
      %v1903 = vpop.f32.mrf.mxu0
      %v1904 = vpop.f32.mrf.mxu0
      %v1905 = vadd.f32 %v1744, %v1904
      %v1906 = vpop.f32.mrf.mxu0
      %1907 = vmatprep.mubr.bf16.mxu0 0
      %1908 = vmatmul.mubr.bf16.gmra.mxu0 %v1652
      %v1909 = vpop.f32.mrf.mxu0
      %v1910 = vadd.f32 %v1749, %v1909
      %v1911 = vpop.f32.mrf.mxu0
      %v1912 = vpop.f32.mrf.mxu0
      %v1913 = vadd.f32 %v1752, %v1912
      %v1914 = vpop.f32.mrf.mxu0
      %1915 = vmatprep.mubr.bf16.mxu0 0
      %1916 = vmatmul.mubr.bf16.gmra.mxu0 %v1655
      %v1917 = vpop.f32.mrf.mxu0
      %v1918 = vadd.f32 %v1757, %v1917
      %v1919 = vpop.f32.mrf.mxu0
      %v1920 = vpop.f32.mrf.mxu0
      %v1921 = vadd.f32 %v1760, %v1920
      %v1922 = vpop.f32.mrf.mxu0
      %1923 = vmatprep.mubr.bf16.mxu0 0
      %1924 = vmatmul.mubr.bf16.gmra.mxu0 %v1658
      %v1925 = vpop.f32.mrf.mxu0
      %v1926 = vadd.f32 %v1765, %v1925
      %v1927 = vpop.f32.mrf.mxu0
      %v1928 = vpop.f32.mrf.mxu0
      %v1929 = vadd.f32 %v1768, %v1928
      %v1930 = vpop.f32.mrf.mxu0
      %1931 = vmatprep.mubr.bf16.mxu0 0
      %1932 = vmatmul.mubr.bf16.gmra.mxu0 %v1661
      %v1933 = vpop.f32.mrf.mxu0
      %v1934 = vadd.f32 %v1773, %v1933
      %v1935 = vpop.f32.mrf.mxu0
      %v1936 = vpop.f32.mrf.mxu0
      %v1937 = vadd.f32 %v1776, %v1936
      %v1938 = vpop.f32.mrf.mxu0
      %1939 = vmatprep.mubr.bf16.mxu0 0
      %1940 = vmatmul.mubr.bf16.gmra.mxu0 %v1664
      %v1941 = vpop.f32.mrf.mxu0
      %v1942 = vadd.f32 %v1781, %v1941
      %v1943 = vpop.f32.mrf.mxu0
      %v1944 = vpop.f32.mrf.mxu0
      %v1945 = vadd.f32 %v1784, %v1944
      %v1946 = vpop.f32.mrf.mxu0
      %1947 = vmatprep.mubr.bf16.mxu0 0
      %1948 = vmatmul.mubr.bf16.gmra.mxu0 %v1667
      %v1949 = vpop.f32.mrf.mxu0
      %v1950 = vadd.f32 %v1789, %v1949
      %v1951 = vpop.f32.mrf.mxu0
      %v1952 = vpop.f32.mrf.mxu0
      %v1953 = vadd.f32 %v1792, %v1952
      %v1954 = vpop.f32.mrf.mxu0
      %1955 = vmatprep.mubr.bf16.mxu0 0
      %1956 = vmatmul.mubr.bf16.gmra.mxu0 %v1670
      %v1957 = vpop.f32.mrf.mxu0
      %v1958 = vadd.f32 %v1797, %v1957
      %v1959 = vpop.f32.mrf.mxu0
      %v1960 = vpop.f32.mrf.mxu0
      %v1961 = vadd.f32 %v1800, %v1960
      %v1962 = vpop.f32.mrf.mxu0
      %1963 = vmatprep.mubr.bf16.mxu0 0
      %1964 = vmatmul.mubr.bf16.gmra.mxu0 %v1673
      %v1965 = vpop.f32.mrf.mxu0
      %v1966 = vadd.f32 %v1805, %v1965
      %v1967 = vpop.f32.mrf.mxu0
      %v1968 = vpop.f32.mrf.mxu0
      %v1969 = vadd.f32 %v1808, %v1968
      %v1970 = vpop.f32.mrf.mxu0
      %1971 = vmatprep.mubr.bf16.mxu0 0
      %1972 = vmatmul.mubr.bf16.gmra.mxu0 %v1676
      %v1973 = vpop.f32.mrf.mxu0
      %v1974 = vadd.f32 %v1813, %v1973
      %v1975 = vpop.f32.mrf.mxu0
      %v1976 = vpop.f32.mrf.mxu0
      %v1977 = vadd.f32 %v1816, %v1976
      %v1978 = vpop.f32.mrf.mxu0
      %1979 = vmatprep.mubr.bf16.mxu0 0
      %1980 = vmatmul.mubr.bf16.gmra.mxu0 %v1679
      %v1981 = vpop.f32.mrf.mxu0
      %v1982 = vadd.f32 %v1821, %v1981
      %v1983 = vpop.f32.mrf.mxu0
      %v1984 = vpop.f32.mrf.mxu0
      %v1985 = vadd.f32 %v1824, %v1984
      %v1986 = vpop.f32.mrf.mxu0
      %1987 = vmatprep.mubr.bf16.mxu0 0
      %1988 = vmatmul.mubr.bf16.gmra.mxu0 %v1682
      %v1989 = vpop.f32.mrf.mxu0
      %v1990 = vadd.f32 %v1829, %v1989
      %v1991 = vpop.f32.mrf.mxu0
      %v1992 = vpop.f32.mrf.mxu0
      %v1993 = vadd.f32 %v1832, %v1992
      %v1994 = vpop.f32.mrf.mxu0
      %1995 = vmatprep.mubr.bf16.mxu0 0
      %1996 = vmatmul.mubr.bf16.gmra.mxu0 %v1685
      %v1997 = vpop.f32.mrf.mxu0
      %v1998 = vadd.f32 %v1837, %v1997
      %v1999 = vpop.f32.mrf.mxu0
      %v2000 = vpop.f32.mrf.mxu0
      %v2001 = vadd.f32 %v1840, %v2000
      %v2002 = vpop.f32.mrf.mxu0
      %2003 = vmatprep.mubr.bf16.mxu0 0
      %2004 = vmatmul.mubr.bf16.gmra.mxu0 %v1688
      %v2005 = vpop.f32.mrf.mxu0
      %v2006 = vadd.f32 %v1845, %v2005
      %v2007 = vpop.f32.mrf.mxu0
      %v2008 = vpop.f32.mrf.mxu0
      %v2009 = vadd.f32 %v1848, %v2008
      %v2010 = vpop.f32.mrf.mxu0
      %2011 = vdwg.mxu0
      %2012 = vst.msk [vmem:[%s231] sm:$0xff] %vm1255, %v1886
      %2013 = vst.msk [vmem:[%s231 + $0x8] sm:$0xff] %vm1255, %v1889
      %2014 = vst.msk [vmem:[%s231 + $0x10] sm:$0xff] %vm1255, %v1894
      %2015 = vst.msk [vmem:[%s231 + $0x18] sm:$0xff] %vm1255, %v1897
      %2016 = vst.msk [vmem:[%s231 + $0x20] sm:$0xff] %vm1255, %v1902
      %2017 = vst.msk [vmem:[%s231 + $0x28] sm:$0xff] %vm1255, %v1905
      %2018 = vst.msk [vmem:[%s231 + $0x30] sm:$0xff] %vm1255, %v1910
      %2019 = vst.msk [vmem:[%s231 + $0x38] sm:$0xff] %vm1255, %v1913
      %2020 = vst.msk [vmem:[%s231 + $0x40] sm:$0xff] %vm1255, %v1918
      %2021 = vst.msk [vmem:[%s231 + $0x48] sm:$0xff] %vm1255, %v1921
      %2022 = vst.msk [vmem:[%s231 + $0x50] sm:$0xff] %vm1255, %v1926
      %2023 = vst.msk [vmem:[%s231 + $0x58] sm:$0xff] %vm1255, %v1929
      %2024 = vst.msk [vmem:[%s231 + $0x60] sm:$0xff] %vm1255, %v1934
      %2025 = vst.msk [vmem:[%s231 + $0x68] sm:$0xff] %vm1255, %v1937
      %2026 = vst.msk [vmem:[%s231 + $0x70] sm:$0xff] %vm1255, %v1942
      %2027 = vst.msk [vmem:[%s231 + $0x78] sm:$0xff] %vm1255, %v1945
      %2028 = vst.msk [vmem:[%s231 + $0x80] sm:$0xff] %vm1255, %v1950
      %2029 = vst.msk [vmem:[%s231 + $0x88] sm:$0xff] %vm1255, %v1953
      %2030 = vst.msk [vmem:[%s231 + $0x90] sm:$0xff] %vm1255, %v1958
      %2031 = vst.msk [vmem:[%s231 + $0x98] sm:$0xff] %vm1255, %v1961
      %2032 = vst.msk [vmem:[%s231 + $0xa0] sm:$0xff] %vm1255, %v1966
      %2033 = vst.msk [vmem:[%s231 + $0xa8] sm:$0xff] %vm1255, %v1969
      %2034 = vst.msk [vmem:[%s231 + $0xb0] sm:$0xff] %vm1255, %v1974
      %2035 = vst.msk [vmem:[%s231 + $0xb8] sm:$0xff] %vm1255, %v1977
      %2036 = vst.msk [vmem:[%s231 + $0xc0] sm:$0xff] %vm1255, %v1982
      %2037 = vst.msk [vmem:[%s231 + $0xc8] sm:$0xff] %vm1255, %v1985
      %2038 = vst.msk [vmem:[%s231 + $0xd0] sm:$0xff] %vm1255, %v1990
      %2039 = vst.msk [vmem:[%s231 + $0xd8] sm:$0xff] %vm1255, %v1993
      %2040 = vst.msk [vmem:[%s231 + $0xe0] sm:$0xff] %vm1255, %v1998
      %2041 = vst.msk [vmem:[%s231 + $0xe8] sm:$0xff] %vm1255, %v2001
      %2042 = vst.msk [vmem:[%s231 + $0xf0] sm:$0xff] %vm1255, %v2006
      %2043 = vst.msk [vmem:[%s231 + $0xf8] sm:$0xff] %vm1255, %v2009
      %v2044 = vsel %vm1255, %v1886, 0.0
      %v2045 = vsel %vm1255, %v1889, 0.0
      %v2046 = vadd.f32 %v2044, %v2045
      %v2047 = vsel %vm1255, %v1894, 0.0
      %v2048 = vadd.f32 %v2046, %v2047
      %v2049 = vsel %vm1255, %v1897, 0.0
      %v2050 = vadd.f32 %v2048, %v2049
      %v2051 = vsel %vm1255, %v1902, 0.0
      %v2052 = vadd.f32 %v2050, %v2051
      %v2053 = vsel %vm1255, %v1905, 0.0
      %v2054 = vadd.f32 %v2052, %v2053
      %v2055 = vsel %vm1255, %v1910, 0.0
      %v2056 = vadd.f32 %v2054, %v2055
      %v2057 = vsel %vm1255, %v1913, 0.0
      %v2058 = vadd.f32 %v2056, %v2057
      %v2059 = vsel %vm1255, %v1918, 0.0
      %v2060 = vadd.f32 %v2058, %v2059
      %v2061 = vsel %vm1255, %v1921, 0.0
      %v2062 = vadd.f32 %v2060, %v2061
      %v2063 = vsel %vm1255, %v1926, 0.0
      %v2064 = vadd.f32 %v2062, %v2063
      %v2065 = vsel %vm1255, %v1929, 0.0
      %v2066 = vadd.f32 %v2064, %v2065
      %v2067 = vsel %vm1255, %v1934, 0.0
      %v2068 = vadd.f32 %v2066, %v2067
      %v2069 = vsel %vm1255, %v1937, 0.0
      %v2070 = vadd.f32 %v2068, %v2069
      %v2071 = vsel %vm1255, %v1942, 0.0
      %v2072 = vadd.f32 %v2070, %v2071
      %v2073 = vsel %vm1255, %v1945, 0.0
      %v2074 = vadd.f32 %v2072, %v2073
      %v2075 = vsel %vm1255, %v1950, 0.0
      %v2076 = vadd.f32 %v2074, %v2075
      %v2077 = vsel %vm1255, %v1953, 0.0
      %v2078 = vadd.f32 %v2076, %v2077
      %v2079 = vsel %vm1255, %v1958, 0.0
      %v2080 = vadd.f32 %v2078, %v2079
      %v2081 = vsel %vm1255, %v1961, 0.0
      %v2082 = vadd.f32 %v2080, %v2081
      %v2083 = vsel %vm1255, %v1966, 0.0
      %v2084 = vadd.f32 %v2082, %v2083
      %v2085 = vsel %vm1255, %v1969, 0.0
      %v2086 = vadd.f32 %v2084, %v2085
      %v2087 = vsel %vm1255, %v1974, 0.0
      %v2088 = vadd.f32 %v2086, %v2087
      %v2089 = vsel %vm1255, %v1977, 0.0
      %v2090 = vadd.f32 %v2088, %v2089
      %v2091 = vsel %vm1255, %v1982, 0.0
      %v2092 = vadd.f32 %v2090, %v2091
      %v2093 = vsel %vm1255, %v1985, 0.0
      %v2094 = vadd.f32 %v2092, %v2093
      %v2095 = vsel %vm1255, %v1990, 0.0
      %v2096 = vadd.f32 %v2094, %v2095
      %v2097 = vsel %vm1255, %v1993, 0.0
      %v2098 = vadd.f32 %v2096, %v2097
      %v2099 = vsel %vm1255, %v1998, 0.0
      %v2100 = vadd.f32 %v2098, %v2099
      %v2101 = vsel %vm1255, %v2001, 0.0
      %v2102 = vadd.f32 %v2100, %v2101
      %v2103 = vsel %vm1255, %v2006, 0.0
      %v2104 = vadd.f32 %v2102, %v2103
      %v2105 = vsel %vm1255, %v2009, 0.0
      %v2106 = vadd.f32 %v2104, %v2105
      %v2107 = vrot.slane %v2106, 4
      %v2108 = vadd.f32 %v2106, %v2107
      %v2109 = vrot.slane %v2108, 2
      %v2110 = vadd.f32 %v2108, %v2109
      %v2111 = vrot.slane %v2110, 1
      %v2112 = vadd.f32 %v2110, %v2111
      %v2113 = vmul.f32 %v1886, %v1886
      %v2114 = vmul.f32 %v1889, %v1889
      %v2115 = vmul.f32 %v1894, %v1894
      %v2116 = vmul.f32 %v1897, %v1897
      %v2117 = vmul.f32 %v1902, %v1902
      %v2118 = vmul.f32 %v1905, %v1905
      %v2119 = vmul.f32 %v1910, %v1910
      %v2120 = vmul.f32 %v1913, %v1913
      %v2121 = vmul.f32 %v1918, %v1918
      %v2122 = vmul.f32 %v1921, %v1921
      %v2123 = vmul.f32 %v1926, %v1926
      %v2124 = vmul.f32 %v1929, %v1929
      %v2125 = vmul.f32 %v1934, %v1934
      %v2126 = vmul.f32 %v1937, %v1937
      %v2127 = vmul.f32 %v1942, %v1942
      %v2128 = vmul.f32 %v1945, %v1945
      %v2129 = vmul.f32 %v1950, %v1950
      %v2130 = vmul.f32 %v1953, %v1953
      %v2131 = vmul.f32 %v1958, %v1958
      %v2132 = vmul.f32 %v1961, %v1961
      %v2133 = vmul.f32 %v1966, %v1966
      %v2134 = vmul.f32 %v1969, %v1969
      %v2135 = vmul.f32 %v1974, %v1974
      %v2136 = vmul.f32 %v1977, %v1977
      %v2137 = vmul.f32 %v1982, %v1982
      %v2138 = vmul.f32 %v1985, %v1985
      %v2139 = vmul.f32 %v1990, %v1990
      %v2140 = vmul.f32 %v1993, %v1993
      %v2141 = vmul.f32 %v1998, %v1998
      %v2142 = vmul.f32 %v2001, %v2001
      %v2143 = vmul.f32 %v2006, %v2006
      %v2144 = vmul.f32 %v2009, %v2009
      %v2145 = vsel %vm1255, %v2113, 0.0
      %v2146 = vsel %vm1255, %v2114, 0.0
      %v2147 = vadd.f32 %v2145, %v2146
      %v2148 = vsel %vm1255, %v2115, 0.0
      %v2149 = vadd.f32 %v2147, %v2148
      %v2150 = vsel %vm1255, %v2116, 0.0
      %v2151 = vadd.f32 %v2149, %v2150
      %v2152 = vsel %vm1255, %v2117, 0.0
      %v2153 = vadd.f32 %v2151, %v2152
      %v2154 = vsel %vm1255, %v2118, 0.0
      %v2155 = vadd.f32 %v2153, %v2154
      %v2156 = vsel %vm1255, %v2119, 0.0
      %v2157 = vadd.f32 %v2155, %v2156
      %v2158 = vsel %vm1255, %v2120, 0.0
      %v2159 = vadd.f32 %v2157, %v2158
      %v2160 = vsel %vm1255, %v2121, 0.0
      %v2161 = vadd.f32 %v2159, %v2160
      %v2162 = vsel %vm1255, %v2122, 0.0
      %v2163 = vadd.f32 %v2161, %v2162
      %v2164 = vsel %vm1255, %v2123, 0.0
      %v2165 = vadd.f32 %v2163, %v2164
      %v2166 = vsel %vm1255, %v2124, 0.0
      %v2167 = vadd.f32 %v2165, %v2166
      %v2168 = vsel %vm1255, %v2125, 0.0
      %v2169 = vadd.f32 %v2167, %v2168
      %v2170 = vsel %vm1255, %v2126, 0.0
      %v2171 = vadd.f32 %v2169, %v2170
      %v2172 = vsel %vm1255, %v2127, 0.0
      %v2173 = vadd.f32 %v2171, %v2172
      %v2174 = vsel %vm1255, %v2128, 0.0
      %v2175 = vadd.f32 %v2173, %v2174
      %v2176 = vsel %vm1255, %v2129, 0.0
      %v2177 = vadd.f32 %v2175, %v2176
      %v2178 = vsel %vm1255, %v2130, 0.0
      %v2179 = vadd.f32 %v2177, %v2178
      %v2180 = vsel %vm1255, %v2131, 0.0
      %v2181 = vadd.f32 %v2179, %v2180
      %v2182 = vsel %vm1255, %v2132, 0.0
      %v2183 = vadd.f32 %v2181, %v2182
      %v2184 = vsel %vm1255, %v2133, 0.0
      %v2185 = vadd.f32 %v2183, %v2184
      %v2186 = vsel %vm1255, %v2134, 0.0
      %v2187 = vadd.f32 %v2185, %v2186
      %v2188 = vsel %vm1255, %v2135, 0.0
      %v2189 = vadd.f32 %v2187, %v2188
      %v2190 = vsel %vm1255, %v2136, 0.0
      %v2191 = vadd.f32 %v2189, %v2190
      %v2192 = vsel %vm1255, %v2137, 0.0
      %v2193 = vadd.f32 %v2191, %v2192
      %v2194 = vsel %vm1255, %v2138, 0.0
      %v2195 = vadd.f32 %v2193, %v2194
      %v2196 = vsel %vm1255, %v2139, 0.0
      %v2197 = vadd.f32 %v2195, %v2196
      %v2198 = vsel %vm1255, %v2140, 0.0
      %v2199 = vadd.f32 %v2197, %v2198
      %v2200 = vsel %vm1255, %v2141, 0.0
      %v2201 = vadd.f32 %v2199, %v2200
      %v2202 = vsel %vm1255, %v2142, 0.0
      %v2203 = vadd.f32 %v2201, %v2202
      %v2204 = vsel %vm1255, %v2143, 0.0
      %v2205 = vadd.f32 %v2203, %v2204
      %v2206 = vsel %vm1255, %v2144, 0.0
      %v2207 = vadd.f32 %v2205, %v2206
      %v2208 = vrot.slane %v2207, 4
      %v2209 = vadd.f32 %v2207, %v2208
      %v2210 = vrot.slane %v2209, 2
      %v2211 = vadd.f32 %v2209, %v2210
      %v2212 = vrot.slane %v2211, 1
      %v2213 = vadd.f32 %v2211, %v2212
      %vm2214 = vcmask 1040384
      %v2215 = vsel %vm2214, %v2112, %v2213
      %vm2216 = vcmask 254976
      %2217 = vst.msk [vmem:[%s235] sm:$0x3] %vm2216, %v2215
      %p2218 = scmp.lt.s32.totalorder %s17, 1
      %s2219 = scalar_select %p2218, %s17, 1
      %s2220 = smul.addr %s2219, 32
      %s2221 = smul.addr %s2220, 8
      %s2222 = scalar_lea.vmem %s4, %s2221
      %p2223 = scmp.lt.s32.totalorder %s17, 1
      %s2224 = scalar_select %p2223, %s17, 1
      %s2225 = smul.addr %s2224, 2
      %s2226 = scalar_lea.vmem %s5, %s2225
      // Predicated region
      $region37: #{bottleneck_forward.5} parent=35 // pred_check
        %p2227 = pneg %p124
      $region38: #{bottleneck_forward.5} parent=35 // pred_check_branch
        %2229 = sbr.rel (%p2227) target = $region40
      $region39: #{bottleneck_forward.5} parent=35 // pred_region
        _
      $region40: #{bottleneck_forward.5} parent=35 // pred_fallthru
        _
      // Predicated region
      $region41: #{bottleneck_forward.5} parent=35 // pred_check
        %p2230 = pneg %p150
      $region42: #{bottleneck_forward.5} parent=35 // pred_check_branch
        %2232 = sbr.rel (%p2230) target = $region44
      $region43: #{bottleneck_forward.5} parent=35 // pred_region
        _
      $region44: #{bottleneck_forward.5} parent=35 // pred_fallthru
        _
    $region36: #{bottleneck_forward.5} parent=5 // pred_fallthru
      _
    %p2233 = scmp.le.s32.totalorder 2, %s12
    // Predicated region
    $region45: #{bottleneck_forward.5} parent=5 // pred_check
      %p2234 = pneg %p2233
    $region46: #{bottleneck_forward.5} parent=5 // pred_check_branch
      %2236 = sbr.rel (%p2234) target = $region48
    $region47: #{bottleneck_forward.5} parent=5 // pred_region
      %s2237 = ssub.s32 %s12, 2
      // Predicated region
      $region49: #{bottleneck_forward.5} parent=47 // pred_check
        %p2238 = pneg %p130
      $region50: #{bottleneck_forward.5} parent=47 // pred_check_branch
        %2240 = sbr.rel (%p2238) target = $region52
      $region51: #{bottleneck_forward.5} parent=47 // pred_region
        %p2241 = scmp.lt.s32.totalorder %s18, 1
        %s2242 = scalar_select %p2241, %s18, 1
        %s2243 = smul.addr %s2242, 32
        %s2244 = smul.addr %s2243, 8
        %s2245 = scalar_lea.vmem %s4, %s2244
      $region52: #{bottleneck_forward.5} parent=47 // pred_fallthru
        _
      // Predicated region
      $region53: #{bottleneck_forward.5} parent=47 // pred_check
        %p2246 = pneg %p156
      $region54: #{bottleneck_forward.5} parent=47 // pred_check_branch
        %2248 = sbr.rel (%p2246) target = $region56
      $region55: #{bottleneck_forward.5} parent=47 // pred_region
        %p2249 = scmp.lt.s32.totalorder %s18, 1
        %s2250 = scalar_select %p2249, %s18, 1
        %s2251 = smul.addr %s2250, 2
        %s2252 = scalar_lea.vmem %s5, %s2251
      $region56: #{bottleneck_forward.5} parent=47 // pred_fallthru
        _
    $region48: #{bottleneck_forward.5} parent=5 // pred_fallthru
      _
  $region6: #{bottleneck_forward.5} parent=0 // loop_footer
    %s16 = sadd.s32 1, %s12
  $region7: #{bottleneck_forward.5} parent=0 // loop_footer_branch
    %11 = sbr.rel target = $region3
  $region8: #{bottleneck_forward.5} parent=0 // loop_exit
    _

</llo_original>
